<compile_context>
chip_gen: v7x
topology: tpu7x:2x2x1
jax: 0.10.0
libtpu: 0.0.40
codegen_flags: <defaults>
</compile_context>

<pallas_src>
import jax
import jax.numpy as jnp
from jax.experimental import pallas as pl
from jax.experimental.pallas import tpu as pltpu


# ----------------------------------------------------------------------------- kernel
def st_joint_att_kernel(x_ref, wf_ref, shf_ref, wtv_ref, btv_ref, o_ref):
    """NB batch elements per grid step, channels-last.

    x_ref   : (NB, T, V, C)   input activations (bf16 or f32)
    wf_ref  : (C, Ci)         fcn 1x1-conv weight with BN scale folded in
    shf_ref : (1, Ci)         folded fcn bias + BN shift
    wtv_ref : (Ci, 2C)        [conv_t | conv_v] weights stacked along output dim
    btv_ref : (1, 2C)         [conv_t | conv_v] biases stacked
    o_ref   : (NB, T, V, C)   attention map output
    """
    NB, T, V, C = x_ref.shape

    x = x_ref[...].astype(jnp.float32)                     # (NB, T, V, C)

    # --- spatio-temporal pooling (cheap vs. DMA; stays on VPU/XLU) ------------
    m_t = jnp.mean(x, axis=2).reshape(NB * T, C)           # mean over joints V
    m_v = jnp.mean(x, axis=1).reshape(NB * V, C)           # mean over frames T
    p = jnp.concatenate([m_t, m_v], axis=0)                # (NB*(T+V), C)

    # --- fcn: 1x1 conv (BN folded) + Hardswish, ONE matmul for all NB ---------
    y = jnp.dot(p, wf_ref[...],
                preferred_element_type=jnp.float32) + shf_ref[...]   # (NB*(T+V), Ci)
    y = y * (jnp.clip(y + 3.0, 0.0, 6.0) * (1.0 / 6.0))              # Hardswish

    # --- conv_t and conv_v fused into ONE matmul with stacked weights ---------
    z = jnp.dot(y, wtv_ref[...],
                preferred_element_type=jnp.float32) + btv_ref[...]   # (NB*(T+V), 2C)
    s = jax.nn.sigmoid(z)

    # rows [0 : NB*T] are the temporal branch, rows [NB*T :] the joint branch;
    # cols [0:C] are conv_t outputs, cols [C:2C] are conv_v outputs.  The two
    # unused quadrants are intentionally computed and discarded (MXU is idle).
    s_t = s[:NB * T, :C].reshape(NB, T, C)                 # (NB, T, C)
    s_v = s[NB * T:, C:].reshape(NB, V, C)                 # (NB, V, C)

    # --- outer-product broadcast: out[b, t, v, c] = s_t[b, t, c] * s_v[b, v, c]
    o_ref[...] = (s_t[:, :, None, :] * s_v[:, None, :, :]).astype(o_ref.dtype)


# ----------------------------------------------------------------------------- wrapper
def _pick_nb(n, itemsize, t, v, c, target_bytes=4 << 20):
    """Largest batch-block that (a) divides N, (b) keeps in+out block under
    ~target_bytes, (c) leaves >= 2 grid steps (so v7x megacore gets both TCs)."""
    per_batch = 2 * t * v * c * itemsize            # one input + one output tile
    best = 1
    for nb in range(1, n + 1):
        if n % nb:
            continue
        if nb * per_batch <= target_bytes and (n // nb >= 2 or n == 1):
            best = nb
    return best


def st_joint_att(x_ntvc, wf, shf, wtv, btv, nb=None):
    N, T, V, C = x_ntvc.shape
    if nb is None:
        nb = _pick_nb(N, jnp.dtype(x_ntvc.dtype).itemsize, T, V, C)
    assert N % nb == 0, "batch block must divide N"

    def rep_spec(a):
        nd = a.ndim
        return pl.BlockSpec(a.shape, lambda n, _nd=nd: (0,) * _nd)

    return pl.pallas_call(
        st_joint_att_kernel,
        out_shape=jax.ShapeDtypeStruct((N, T, V, C), x_ntvc.dtype),
        grid=(N // nb,),
        in_specs=[
            pl.BlockSpec((nb, T, V, C), lambda n: (n, 0, 0, 0)),
            rep_spec(wf), rep_spec(shf), rep_spec(wtv), rep_spec(btv),
        ],
        out_specs=pl.BlockSpec((nb, T, V, C), lambda n: (n, 0, 0, 0)),
        compiler_params=pltpu.CompilerParams(dimension_semantics=("parallel",)),
    )(x_ntvc, wf, shf, wtv, btv)


# ----------------------------------------------------------------------------- pure-JAX reference (NCHW, mirrors the PyTorch module)
def reference_nchw(x, Wf, bf, gamma, beta, mean, var, eps, Wt, bt, Wv, bv):
    N, C, T, V = x.shape
    x_t = jnp.mean(x, axis=3, keepdims=True)                            # (N,C,T,1)
    x_v = jnp.swapaxes(jnp.mean(x, axis=2, keepdims=True), 2, 3)        # (N,C,V,1)
    xc = jnp.concatenate([x_t, x_v], axis=2)                            # (N,C,T+V,1)

    y = jnp.einsum('oc,ncts->nots', Wf, xc) + bf[None, :, None, None]
    scale = gamma / jnp.sqrt(var + eps)
    y = y * scale[None, :, None, None] + (beta - mean * scale)[None, :, None, None]
    y = y * jnp.clip(y + 3.0, 0.0, 6.0) * (1.0 / 6.0)                   # Hardswish

    y_t, y_v = y[:, :, :T, :], y[:, :, T:, :]                           # split rows
    z_t = jnp.einsum('oc,ncts->nots', Wt, y_t) + bt[None, :, None, None]              # (N,C,T,1)
    z_v = jnp.einsum('oc,ncsv->nosv', Wv, jnp.swapaxes(y_v, 2, 3)) + bv[None, :, None, None]  # (N,C,1,V)

    s_t = 1.0 / (1.0 + jnp.exp(-z_t))
    s_v = 1.0 / (1.0 + jnp.exp(-z_v))
    return s_t * s_v                                                    # (N,C,T,V)


# ----------------------------------------------------------------------------- main
if __name__ == "__main__":
    # N batch, C channels (128 -> one full lane tile), T frames, V joints.
    N, C, T, V = 8, 128, 32, 16
    reduct_ratio = 4
    Ci = C // reduct_ratio
    eps = 1e-5

    ks = jax.random.split(jax.random.PRNGKey(0), 12)
    x_nchw = jax.random.normal(ks[0], (N, C, T, V), jnp.float32)

    # fcn: Conv2d(C, Ci, 1, bias=True) + BatchNorm2d(Ci)  (eval mode)
    Wf = 0.3 * jax.random.normal(ks[1], (Ci, C), jnp.float32)
    bf = 0.1 * jax.random.normal(ks[2], (Ci,), jnp.float32)
    gamma = 1.0 + 0.1 * jax.random.normal(ks[3], (Ci,), jnp.float32)
    beta = 0.1 * jax.random.normal(ks[4], (Ci,), jnp.float32)
    mean = 0.1 * jax.random.normal(ks[5], (Ci,), jnp.float32)
    var = jnp.abs(1.0 + 0.1 * jax.random.normal(ks[6], (Ci,), jnp.float32))

    # conv_t / conv_v: Conv2d(Ci, C, 1) with bias
    Wt = 0.3 * jax.random.normal(ks[7], (C, Ci), jnp.float32)
    bt = 0.1 * jax.random.normal(ks[8], (C,), jnp.float32)
    Wv = 0.3 * jax.random.normal(ks[9], (C, Ci), jnp.float32)
    bv = 0.1 * jax.random.normal(ks[10], (C,), jnp.float32)

    # --- wrapper-side parameter folding / packing ------------------------------
    scale = gamma / jnp.sqrt(var + eps)                 # BN scale
    shift = beta - mean * scale                         # BN shift
    wf_k = (Wf * scale[:, None]).T                      # (C, Ci)  BN scale folded
    shf_k = (bf * scale + shift).reshape(1, Ci)         # (1, Ci)  bias + BN shift
    wtv_k = jnp.concatenate([Wt.T, Wv.T], axis=1)       # (Ci, 2C) stacked branches
    btv_k = jnp.concatenate([bt, bv]).reshape(1, 2 * C) # (1, 2C)

    # channels-last, bf16 activations for the kernel (halves HBM traffic)
    x_ntvc = jnp.transpose(x_nchw, (0, 2, 3, 1)).astype(jnp.bfloat16)   # (N, T, V, C)

    out_ntvc = st_joint_att(x_ntvc, wf_k, shf_k, wtv_k, btv_k)
    out_ntvc = jax.block_until_ready(out_ntvc)
    out_nchw = jnp.transpose(out_ntvc.astype(jnp.float32), (0, 3, 1, 2))  # (N, C, T, V)

    # reference on the bf16-rounded input (fair comparison of the math itself)
    x_nchw_q = jnp.transpose(x_ntvc.astype(jnp.float32), (0, 3, 1, 2))
    ref = reference_nchw(x_nchw_q, Wf, bf, gamma, beta, mean, var, eps, Wt, bt, Wv, bv)
    max_err = float(jnp.max(jnp.abs(out_nchw - ref)))
    assert max_err < 3e-2, f"kernel mismatch vs reference: max_err={max_err}"

    print("KERNEL_OK")
</pallas_src>

<mosaic_0001>
module attributes {stable_mosaic.version = 11 : i64} {
  func.func @st_joint_att_kernel(%arg0: i32, %arg1: memref<4x32x16x128xbf16, #tpu.memory_space<vmem>>, %arg2: memref<128x32xf32, #tpu.memory_space<vmem>>, %arg3: memref<1x32xf32, #tpu.memory_space<vmem>>, %arg4: memref<32x256xf32, #tpu.memory_space<vmem>>, %arg5: memref<1x256xf32, #tpu.memory_space<vmem>>, %arg6: memref<4x32x16x128xbf16, #tpu.memory_space<vmem>>) attributes {dimension_semantics = [#tpu.dimension_semantics<parallel>], iteration_bounds = array<i64: 2>, scalar_prefetch = 0 : i64, scratch_operands = 0 : i64, tpu.core_type = #tpu.core_type<tc>, window_params = [{transform_indices = @transform_0, window_bounds = array<i64: 4, 32, 16, 128>}, {pipeline_mode = #tpu.pipeline_mode<synchronous>, transform_indices = @transform_1, window_bounds = array<i64: 128, 32>}, {pipeline_mode = #tpu.pipeline_mode<synchronous>, transform_indices = @transform_2, window_bounds = array<i64: 1, 32>}, {pipeline_mode = #tpu.pipeline_mode<synchronous>, transform_indices = @transform_3, window_bounds = array<i64: 32, 256>}, {pipeline_mode = #tpu.pipeline_mode<synchronous>, transform_indices = @transform_4, window_bounds = array<i64: 1, 256>}, {transform_indices = @transform_5, window_bounds = array<i64: 4, 32, 16, 128>}]} {
    %c0 = arith.constant 0 : index
    %c0_0 = arith.constant 0 : index
    %c0_1 = arith.constant 0 : index
    %c0_2 = arith.constant 0 : index
    %0 = vector.load %arg1[%c0, %c0_0, %c0_1, %c0_2] : memref<4x32x16x128xbf16, #tpu.memory_space<vmem>>, vector<4x32x16x128xbf16>
    %1 = arith.extf %0 : vector<4x32x16x128xbf16> to vector<4x32x16x128xf32>
    %cst = arith.constant dense<0.000000e+00> : vector<4x32x128xf32>
    %2 = vector.multi_reduction <add>, %1, %cst [2] : vector<4x32x16x128xf32> to vector<4x32x128xf32>
    %cst_3 = arith.constant 1.600000e+01 : f32
    %3 = vector.broadcast %cst_3 : f32 to vector<4x32x128xf32>
    %4 = arith.divf %2, %3 : vector<4x32x128xf32>
    %5 = vector.shape_cast %4 : vector<4x32x128xf32> to vector<128x128xf32>
    %cst_4 = arith.constant dense<0.000000e+00> : vector<4x16x128xf32>
    %6 = vector.multi_reduction <add>, %1, %cst_4 [1] : vector<4x32x16x128xf32> to vector<4x16x128xf32>
    %cst_5 = arith.constant 3.200000e+01 : f32
    %7 = vector.broadcast %cst_5 : f32 to vector<4x16x128xf32>
    %8 = arith.divf %6, %7 : vector<4x16x128xf32>
    %9 = vector.shape_cast %8 : vector<4x16x128xf32> to vector<64x128xf32>
    %10 = tpu.concatenate %5, %9 in 0 : vector<128x128xf32>, vector<64x128xf32> -> vector<192x128xf32>
    %c0_6 = arith.constant 0 : index
    %c0_7 = arith.constant 0 : index
    %11 = vector.load %arg2[%c0_6, %c0_7] : memref<128x32xf32, #tpu.memory_space<vmem>>, vector<128x32xf32>
    %cst_8 = arith.constant dense<0.000000e+00> : vector<192x32xf32>
    %12 = tpu.matmul %10, %11, %cst_8 {dimension_numbers = #tpu.dot_dimension_numbers<[1], [0], [0], [1], [0, 0, 1, 1], [], []>} : vector<192x128xf32>, vector<128x32xf32>, vector<192x32xf32> -> vector<192x32xf32>
    %c0_9 = arith.constant 0 : index
    %c0_10 = arith.constant 0 : index
    %13 = vector.load %arg3[%c0_9, %c0_10] : memref<1x32xf32, #tpu.memory_space<vmem>>, vector<1x32xf32>
    %14 = vector.broadcast %13 : vector<1x32xf32> to vector<192x32xf32>
    %15 = arith.addf %12, %14 : vector<192x32xf32>
    %cst_11 = arith.constant 3.000000e+00 : f32
    %16 = vector.broadcast %cst_11 : f32 to vector<192x32xf32>
    %17 = arith.addf %15, %16 : vector<192x32xf32>
    %cst_12 = arith.constant 0.000000e+00 : f32
    %cst_13 = arith.constant 6.000000e+00 : f32
    %18 = vector.broadcast %cst_12 : f32 to vector<192x32xf32>
    %19 = arith.maximumf %18, %17 : vector<192x32xf32>
    %20 = vector.broadcast %cst_13 : f32 to vector<192x32xf32>
    %21 = arith.minimumf %20, %19 : vector<192x32xf32>
    %cst_14 = arith.constant 0.166666672 : f32
    %22 = vector.broadcast %cst_14 : f32 to vector<192x32xf32>
    %23 = arith.mulf %21, %22 : vector<192x32xf32>
    %24 = arith.mulf %15, %23 : vector<192x32xf32>
    %c0_15 = arith.constant 0 : index
    %c0_16 = arith.constant 0 : index
    %25 = vector.load %arg4[%c0_15, %c0_16] : memref<32x256xf32, #tpu.memory_space<vmem>>, vector<32x256xf32>
    %cst_17 = arith.constant dense<0.000000e+00> : vector<192x256xf32>
    %26 = tpu.matmul %24, %25, %cst_17 {dimension_numbers = #tpu.dot_dimension_numbers<[1], [0], [0], [1], [0, 0, 1, 1], [], []>} : vector<192x32xf32>, vector<32x256xf32>, vector<192x256xf32> -> vector<192x256xf32>
    %c0_18 = arith.constant 0 : index
    %c0_19 = arith.constant 0 : index
    %27 = vector.load %arg5[%c0_18, %c0_19] : memref<1x256xf32, #tpu.memory_space<vmem>>, vector<1x256xf32>
    %28 = vector.broadcast %27 : vector<1x256xf32> to vector<192x256xf32>
    %29 = arith.addf %26, %28 : vector<192x256xf32>
    %30 = arith.negf %29 : vector<192x256xf32>
    %31 = math.exp %30 : vector<192x256xf32>
    %cst_20 = arith.constant 1.000000e+00 : f32
    %32 = vector.broadcast %cst_20 : f32 to vector<192x256xf32>
    %33 = arith.addf %32, %31 : vector<192x256xf32>
    %34 = arith.divf %32, %33 : vector<192x256xf32>
    %35 = vector.extract_strided_slice %34 {offsets = [0, 0], sizes = [128, 128], strides = [1, 1]} : vector<192x256xf32> to vector<128x128xf32>
    %36 = vector.shape_cast %35 : vector<128x128xf32> to vector<4x32x128xf32>
    %37 = vector.extract_strided_slice %34 {offsets = [128, 128], sizes = [64, 128], strides = [1, 1]} : vector<192x256xf32> to vector<64x128xf32>
    %38 = vector.shape_cast %37 : vector<64x128xf32> to vector<4x16x128xf32>
    %39 = vector.shape_cast %36 : vector<4x32x128xf32> to vector<4x32x1x128xf32>
    %40 = vector.shape_cast %38 : vector<4x16x128xf32> to vector<4x1x16x128xf32>
    %41 = vector.broadcast %39 : vector<4x32x1x128xf32> to vector<4x32x16x128xf32>
    %42 = vector.broadcast %40 : vector<4x1x16x128xf32> to vector<4x32x16x128xf32>
    %43 = arith.mulf %41, %42 : vector<4x32x16x128xf32>
    %44 = arith.truncf %43 : vector<4x32x16x128xf32> to vector<4x32x16x128xbf16>
    %c0_21 = arith.constant 0 : index
    %c0_22 = arith.constant 0 : index
    %c0_23 = arith.constant 0 : index
    %c0_24 = arith.constant 0 : index
    %45 = vector.load %arg6[%c0_21, %c0_22, %c0_23, %c0_24] : memref<4x32x16x128xbf16, #tpu.memory_space<vmem>>, vector<4x32x16x128xbf16>
    tpu.vector_store %arg6[%c0_21, %c0_22, %c0_23, %c0_24], %44 {strides = array<i32>} : memref<4x32x16x128xbf16, #tpu.memory_space<vmem>>, vector<4x32x16x128xbf16>,
    return
  }
  func.func @transform_0(%arg0: i32) -> (i32, i32, i32, i32) {
    %c0_i32 = arith.constant 0 : i32
    %c0_i32_0 = arith.constant 0 : i32
    %c0_i32_1 = arith.constant 0 : i32
    %c0_i32_2 = arith.constant 0 : i32
    return %arg0, %c0_i32, %c0_i32_0, %c0_i32_1 : i32, i32, i32, i32
  }
  func.func @transform_1(%arg0: i32) -> (i32, i32) {
    %c0_i32 = arith.constant 0 : i32
    %c0_i32_0 = arith.constant 0 : i32
    %c0_i32_1 = arith.constant 0 : i32
    return %c0_i32, %c0_i32_0 : i32, i32
  }
  func.func @transform_2(%arg0: i32) -> (i32, i32) {
    %c0_i32 = arith.constant 0 : i32
    %c0_i32_0 = arith.constant 0 : i32
    %c0_i32_1 = arith.constant 0 : i32
    return %c0_i32, %c0_i32_0 : i32, i32
  }
  func.func @transform_3(%arg0: i32) -> (i32, i32) {
    %c0_i32 = arith.constant 0 : i32
    %c0_i32_0 = arith.constant 0 : i32
    %c0_i32_1 = arith.constant 0 : i32
    return %c0_i32, %c0_i32_0 : i32, i32
  }
  func.func @transform_4(%arg0: i32) -> (i32, i32) {
    %c0_i32 = arith.constant 0 : i32
    %c0_i32_0 = arith.constant 0 : i32
    %c0_i32_1 = arith.constant 0 : i32
    return %c0_i32, %c0_i32_0 : i32, i32
  }
  func.func @transform_5(%arg0: i32) -> (i32, i32, i32, i32) {
    %c0_i32 = arith.constant 0 : i32
    %c0_i32_0 = arith.constant 0 : i32
    %c0_i32_1 = arith.constant 0 : i32
    %c0_i32_2 = arith.constant 0 : i32
    return %arg0, %c0_i32, %c0_i32_0, %c0_i32_1 : i32, i32, i32, i32
  }
}

</mosaic_0001>

<llo_original>
// kernel: tpu_custom_call.1
$region0: #{tpu_custom_call.1}
  #allocation0 [shape = 'u32[]', space=smem, size = 0x4, offset = 0x4, fixed_abs, tag = 'smem constant byte address 0x4 - core index']
  #allocation1 [shape = 'u32[144,128]{1,0:T(1,128)}', space=vmem, size = 0x12000, scoped, tag = 'internal scratch']
  %s0 = inlined_call_operand.hbm [shape: bf16[8,32,16,128], index: 0, kind: input, shape index: {}]
  %s1 = inlined_call_operand.vmem [shape: f32[128,32], index: 1, kind: input, shape index: {}]
  %s2 = inlined_call_operand.vmem [shape: f32[1,32], index: 2, kind: input, shape index: {}]
  %s3 = inlined_call_operand.vmem [shape: f32[32,256], index: 3, kind: input, shape index: {}]
  %s4 = inlined_call_operand.vmem [shape: f32[1,256], index: 4, kind: input, shape index: {}]
  %s5 = inlined_call_operand.hbm [shape: bf16[8,32,16,128], index: 5, kind: output, shape index: {}]
  %s6 = sld [smem:[#allocation0]]
  $region57: #{tpu_custom_call.1} parent=0
    _
  %s8 = ssub.s32 1, %s6
  %s9 = scalar_select 0, %s8, %s6
  $region1: #{tpu_custom_call.1} parent=0
    #allocation2 [shape = 'u8[1048576]{0}', space=vmem, size = 0x100000, scoped, tag = 'input window, operand 0']
    #allocation3 [shape = 's32[2]{0}', space=sflag, size = 0x8, scoped, tag = 'scoped memory for tpu_custom_call.1']
    #allocation4 [shape = 's32[2]{0}', space=sflag, size = 0x8, scoped, tag = 'scoped memory for tpu_custom_call.1']
    #allocation5 [shape = 'u8[1048576]{0}', space=vmem, size = 0x100000, scoped, tag = 'output window, operand 0']
    %10 = vsyncpa [#allocation3], 0
    %s11 = scalar_lea.sflag [#allocation3], 1
    %12 = vsyncpa %s11, 0
    %13 = vsyncpa [#allocation4], 0
    %s14 = scalar_lea.sflag [#allocation4], 1
    %15 = vsyncpa %s14, 0
    loop: start=0, step=1, limit=4
    $region2: #{tpu_custom_call.1} parent=1 // loop_pre_header
      _
    $region3: #{tpu_custom_call.1} parent=1 // loop_header
      %s17 = sphi 0, %s21
      %p18 = scmp.ge.s32.totalorder %s17, 4
      %s27 = sphi 0, %s29
      %s30 = sphi 0, %s27
      %s31 = sphi 0, %s30
      %s47 = sphi 0, %s31
      %s51 = sphi 0, %s51
      %s53 = sphi 0, %s51
      %s54 = sphi 0, %s53
      %s68 = sphi 0, %s54
      %s72 = sphi 0, %s72
      %s74 = sphi 0, %s72
      %s75 = sphi 0, %s74
      %s89 = sphi 0, %s75
      %s93 = sphi 0, %s93
      %s95 = sphi 0, %s93
      %s96 = sphi 0, %s95
      %s110 = sphi 0, %s96
      %s114 = sphi 0, %s114
      %s116 = sphi 0, %s114
      %s117 = sphi 0, %s116
      %s131 = sphi 0, %s117
      %s137 = sphi 0, %s139
      %s140 = sphi 0, %s137
      %s141 = sphi 0, %s140
      %s157 = sphi 0, %s141
    $region4: #{tpu_custom_call.1} parent=1 // loop_header_branch
      %20 = sbr.rel (%p18) target = $region8
    $region5: #{tpu_custom_call.1} parent=1 // loop_body
      %s22 = ssub.s32 %s17, 1
      %s23 = ssub.s32 %s17, 2
      %s24 = sadd.s32 %s17, 1
      %s25 = ssub.s32 %s17, %s24
      %p26 = scmp.eq.s32.totalorder %s25, 0
      %s28 = sadd.s32 %s27, 1
      %s29 = scalar_select %p26, %s27, %s28
      %p32 = pneg %p26
      %p33 = scmp.eq.s32.totalorder %s17, 1
      %p34 = por %p32, %p33
      %p35 = scmp.ne.s32.totalorder %s27, %s30
      %p36 = scmp.eq.s32.totalorder %s17, 0
      %p37 = por %p35, %p36
      %p38 = scmp.ne.s32.totalorder %s27, %s30
      %p39 = scmp.eq.s32.totalorder %s22, 1
      %p40 = por %p38, %p39
      %p41 = scmp.ne.s32.totalorder %s30, %s31
      %p42 = scmp.eq.s32.totalorder %s22, 0
      %p43 = por %p41, %p42
      %p44 = scmp.ne.s32.totalorder %s30, %s31
      %p45 = scmp.eq.s32.totalorder %s23, 1
      %p46 = por %p44, %p45
      %p48 = scmp.ne.s32.totalorder %s31, %s47
      %p49 = scmp.eq.s32.totalorder %s23, 0
      %p50 = por %p48, %p49
      %s52 = sadd.s32 %s51, 1
      %p55 = scmp.eq.s32.totalorder %s17, 1
      %p56 = scmp.ne.s32.totalorder %s51, %s53
      %p57 = scmp.eq.s32.totalorder %s17, 0
      %p58 = por %p56, %p57
      %p59 = scmp.ne.s32.totalorder %s51, %s53
      %p60 = scmp.eq.s32.totalorder %s22, 1
      %p61 = por %p59, %p60
      %p62 = scmp.ne.s32.totalorder %s53, %s54
      %p63 = scmp.eq.s32.totalorder %s22, 0
      %p64 = por %p62, %p63
      %p65 = scmp.ne.s32.totalorder %s53, %s54
      %p66 = scmp.eq.s32.totalorder %s23, 1
      %p67 = por %p65, %p66
      %p69 = scmp.ne.s32.totalorder %s54, %s68
      %p70 = scmp.eq.s32.totalorder %s23, 0
      %p71 = por %p69, %p70
      %s73 = sadd.s32 %s72, 1
      %p76 = scmp.eq.s32.totalorder %s17, 1
      %p77 = scmp.ne.s32.totalorder %s72, %s74
      %p78 = scmp.eq.s32.totalorder %s17, 0
      %p79 = por %p77, %p78
      %p80 = scmp.ne.s32.totalorder %s72, %s74
      %p81 = scmp.eq.s32.totalorder %s22, 1
      %p82 = por %p80, %p81
      %p83 = scmp.ne.s32.totalorder %s74, %s75
      %p84 = scmp.eq.s32.totalorder %s22, 0
      %p85 = por %p83, %p84
      %p86 = scmp.ne.s32.totalorder %s74, %s75
      %p87 = scmp.eq.s32.totalorder %s23, 1
      %p88 = por %p86, %p87
      %p90 = scmp.ne.s32.totalorder %s75, %s89
      %p91 = scmp.eq.s32.totalorder %s23, 0
      %p92 = por %p90, %p91
      %s94 = sadd.s32 %s93, 1
      %p97 = scmp.eq.s32.totalorder %s17, 1
      %p98 = scmp.ne.s32.totalorder %s93, %s95
      %p99 = scmp.eq.s32.totalorder %s17, 0
      %p100 = por %p98, %p99
      %p101 = scmp.ne.s32.totalorder %s93, %s95
      %p102 = scmp.eq.s32.totalorder %s22, 1
      %p103 = por %p101, %p102
      %p104 = scmp.ne.s32.totalorder %s95, %s96
      %p105 = scmp.eq.s32.totalorder %s22, 0
      %p106 = por %p104, %p105
      %p107 = scmp.ne.s32.totalorder %s95, %s96
      %p108 = scmp.eq.s32.totalorder %s23, 1
      %p109 = por %p107, %p108
      %p111 = scmp.ne.s32.totalorder %s96, %s110
      %p112 = scmp.eq.s32.totalorder %s23, 0
      %p113 = por %p111, %p112
      %s115 = sadd.s32 %s114, 1
      %p118 = scmp.eq.s32.totalorder %s17, 1
      %p119 = scmp.ne.s32.totalorder %s114, %s116
      %p120 = scmp.eq.s32.totalorder %s17, 0
      %p121 = por %p119, %p120
      %p122 = scmp.ne.s32.totalorder %s114, %s116
      %p123 = scmp.eq.s32.totalorder %s22, 1
      %p124 = por %p122, %p123
      %p125 = scmp.ne.s32.totalorder %s116, %s117
      %p126 = scmp.eq.s32.totalorder %s22, 0
      %p127 = por %p125, %p126
      %p128 = scmp.ne.s32.totalorder %s116, %s117
      %p129 = scmp.eq.s32.totalorder %s23, 1
      %p130 = por %p128, %p129
      %p132 = scmp.ne.s32.totalorder %s117, %s131
      %p133 = scmp.eq.s32.totalorder %s23, 0
      %p134 = por %p132, %p133
      %s135 = ssub.s32 %s17, %s24
      %p136 = scmp.eq.s32.totalorder %s135, 0
      %s138 = sadd.s32 %s137, 1
      %s139 = scalar_select %p136, %s137, %s138
      %p142 = pneg %p136
      %p143 = scmp.eq.s32.totalorder %s17, 1
      %p144 = por %p142, %p143
      %p145 = scmp.ne.s32.totalorder %s137, %s140
      %p146 = scmp.eq.s32.totalorder %s17, 0
      %p147 = por %p145, %p146
      %p148 = scmp.ne.s32.totalorder %s137, %s140
      %p149 = scmp.eq.s32.totalorder %s22, 1
      %p150 = por %p148, %p149
      %p151 = scmp.ne.s32.totalorder %s140, %s141
      %p152 = scmp.eq.s32.totalorder %s22, 0
      %p153 = por %p151, %p152
      %p154 = scmp.ne.s32.totalorder %s140, %s141
      %p155 = scmp.eq.s32.totalorder %s23, 1
      %p156 = por %p154, %p155
      %p158 = scmp.ne.s32.totalorder %s141, %s157
      %p159 = scmp.eq.s32.totalorder %s23, 0
      %p160 = por %p158, %p159
      %p161 = scmp.le.s32.totalorder 1, %s17
      %p162 = scmp.lt.s32.totalorder %s17, 3
      %p163 = pnand %p161, %p162
      %p164 = pneg %p163
      // Predicated region
      $region9: #{tpu_custom_call.1} parent=5 // pred_check
        _
      $region10: #{tpu_custom_call.1} parent=5 // pred_check_branch
        %166 = sbr.rel (%p163) target = $region12
      $region11: #{tpu_custom_call.1} parent=5 // pred_region
        %s167 = ssub.s32 %s17, 1
        // Predicated region
        $region13: #{tpu_custom_call.1} parent=11 // pred_check
          %p168 = pneg %p64
        $region14: #{tpu_custom_call.1} parent=11 // pred_check_branch
          %170 = sbr.rel (%p168) target = $region16
        $region15: #{tpu_custom_call.1} parent=11 // pred_region
          _
        $region16: #{tpu_custom_call.1} parent=11 // pred_fallthru
          _
        // Predicated region
        $region17: #{tpu_custom_call.1} parent=11 // pred_check
          %p171 = pneg %p85
        $region18: #{tpu_custom_call.1} parent=11 // pred_check_branch
          %173 = sbr.rel (%p171) target = $region20
        $region19: #{tpu_custom_call.1} parent=11 // pred_region
          _
        $region20: #{tpu_custom_call.1} parent=11 // pred_fallthru
          _
        // Predicated region
        $region21: #{tpu_custom_call.1} parent=11 // pred_check
          %p174 = pneg %p106
        $region22: #{tpu_custom_call.1} parent=11 // pred_check_branch
          %176 = sbr.rel (%p174) target = $region24
        $region23: #{tpu_custom_call.1} parent=11 // pred_region
          _
        $region24: #{tpu_custom_call.1} parent=11 // pred_fallthru
          _
        // Predicated region
        $region25: #{tpu_custom_call.1} parent=11 // pred_check
          %p177 = pneg %p127
        $region26: #{tpu_custom_call.1} parent=11 // pred_check_branch
          %179 = sbr.rel (%p177) target = $region28
        $region27: #{tpu_custom_call.1} parent=11 // pred_region
          _
        $region28: #{tpu_custom_call.1} parent=11 // pred_fallthru
          _
      $region12: #{tpu_custom_call.1} parent=5 // pred_fallthru
        _
      %p180 = scmp.lt.s32.totalorder %s17, 2
      // Predicated region
      $region29: #{tpu_custom_call.1} parent=5 // pred_check
        %p181 = pneg %p180
      $region30: #{tpu_custom_call.1} parent=5 // pred_check_branch
        %183 = sbr.rel (%p181) target = $region32
      $region31: #{tpu_custom_call.1} parent=5 // pred_region
        // Predicated region
        $region33: #{tpu_custom_call.1} parent=31 // pred_check
          %p184 = pneg %p37
        $region34: #{tpu_custom_call.1} parent=31 // pred_check_branch
          %186 = sbr.rel (%p184) target = $region36
        $region35: #{tpu_custom_call.1} parent=31 // pred_region
          %s187 = sand.u32 %s27, 1
          %s188 = scalar_lea.sflag [#allocation3], %s187
          %s189 = sand.u32 %s27, 1
          %s190 = smul.addr %s189, 1024
          %s191 = scalar_lea.vmem [#allocation2], %s190
          %s192 = smul.u32 4, %s17
          %s194 = ssub.s32 16384, 16384
          %195 = vsyncadd %s188, %s194
          %s196 = smul.addr %s192, 64
          %s197 = smul.addr %s196, 64
          %s198 = scalar_lea.hbm %s0, %s197
          %s199 = sshll.u32 %s191, 4
          %s200 = int_to_ptr.vmem [resolvable:$true] %s199
          %205 = dma.hbm_to_vmem [thread:$0]  %s198, 16384, %s200, %s188, 64, 64, 4
        $region36: #{tpu_custom_call.1} parent=31 // pred_fallthru
          _
      $region32: #{tpu_custom_call.1} parent=5 // pred_fallthru
        _
      %p206 = scmp.le.s32.totalorder 1, %s17
      %p207 = scmp.lt.s32.totalorder %s17, 3
      %p208 = pnand %p206, %p207
      %p209 = pneg %p208
      // Predicated region
      $region37: #{tpu_custom_call.1} parent=5 // pred_check
        _
      $region38: #{tpu_custom_call.1} parent=5 // pred_check_branch
        %211 = sbr.rel (%p208) target = $region40
      $region39: #{tpu_custom_call.1} parent=5 // pred_region
        %s212 = ssub.s32 %s17, 1
        %s213 = sand.u32 %s30, 1
        %s214 = scalar_lea.sflag [#allocation3], %s213
        %s215 = sand.u32 %s30, 1
        %s216 = smul.addr %s215, 1024
        %s217 = scalar_lea.vmem [#allocation2], %s216
        // Predicated region
        $region41: #{tpu_custom_call.1} parent=39 // pred_check
          %p218 = pneg %p43
        $region42: #{tpu_custom_call.1} parent=39 // pred_check_branch
          %220 = sbr.rel (%p218) target = $region44
        $region43: #{tpu_custom_call.1} parent=39 // pred_region
          %221 = dma.done %s214, 16384
        $region44: #{tpu_custom_call.1} parent=39 // pred_fallthru
          _
        %s222 = sand.u32 %s30, 1
        %s223 = scalar_lea.sflag [#allocation3], %s222
        %s224 = sand.u32 %s30, 1
        %s225 = smul.addr %s224, 1024
        %s226 = scalar_lea.vmem [#allocation2], %s225
        %p227 = pneg %p43
        %p228 = pneg %p40
        %p229 = pneg %p64
        %p230 = pneg %p61
        %p231 = pneg %p85
        %p232 = pneg %p82
        %p233 = pneg %p106
        %p234 = pneg %p103
        %p235 = pneg %p127
        %p236 = pneg %p124
        %p237 = pneg %p153
        %p238 = pneg %p150
        %s239 = sand.u32 %s140, 1
        %s240 = scalar_lea.sflag [#allocation4], %s239
        %s241 = sand.u32 %s140, 1
        %s242 = smul.addr %s241, 1024
        %s243 = scalar_lea.vmem [#allocation5], %s242
        %s244 = smul.u32 4, %s22
        %s245 = smul.u32 4, %s22
        %v246 = vld [vmem:[%s217] sm:$0xf]
        %v247 = vld [vmem:[%s217 + $0x4] sm:$0xf]
        %v248 = vld [vmem:[%s217 + $0x8] sm:$0xf]
        %v249 = vld [vmem:[%s217 + $0xc] sm:$0xf]
        %v250 = vld [vmem:[%s217 + $0x10] sm:$0xf]
        %v251 = vld [vmem:[%s217 + $0x14] sm:$0xf]
        %v252 = vld [vmem:[%s217 + $0x18] sm:$0xf]
        %v253 = vld [vmem:[%s217 + $0x1c] sm:$0xf]
        %v254 = vld [vmem:[%s217 + $0x20] sm:$0xf]
        %v255 = vld [vmem:[%s217 + $0x24] sm:$0xf]
        %v256 = vld [vmem:[%s217 + $0x28] sm:$0xf]
        %v257 = vld [vmem:[%s217 + $0x2c] sm:$0xf]
        %v258 = vld [vmem:[%s217 + $0x30] sm:$0xf]
        %v259 = vld [vmem:[%s217 + $0x34] sm:$0xf]
        %v260 = vld [vmem:[%s217 + $0x38] sm:$0xf]
        %v261 = vld [vmem:[%s217 + $0x3c] sm:$0xf]
        %v262 = vld [vmem:[%s217 + $0x40] sm:$0xf]
        %v263 = vld [vmem:[%s217 + $0x44] sm:$0xf]
        %v264 = vld [vmem:[%s217 + $0x48] sm:$0xf]
        %v265 = vld [vmem:[%s217 + $0x4c] sm:$0xf]
        %v266 = vld [vmem:[%s217 + $0x50] sm:$0xf]
        %v267 = vld [vmem:[%s217 + $0x54] sm:$0xf]
        %v268 = vld [vmem:[%s217 + $0x58] sm:$0xf]
        %v269 = vld [vmem:[%s217 + $0x5c] sm:$0xf]
        %v270 = vld [vmem:[%s217 + $0x60] sm:$0xf]
        %v271 = vld [vmem:[%s217 + $0x64] sm:$0xf]
        %v272 = vld [vmem:[%s217 + $0x68] sm:$0xf]
        %v273 = vld [vmem:[%s217 + $0x6c] sm:$0xf]
        %v274 = vld [vmem:[%s217 + $0x70] sm:$0xf]
        %v275 = vld [vmem:[%s217 + $0x74] sm:$0xf]
        %v276 = vld [vmem:[%s217 + $0x78] sm:$0xf]
        %v277 = vld [vmem:[%s217 + $0x7c] sm:$0xf]
        %v278 = vld [vmem:[%s217 + $0x80] sm:$0xf]
        %v279 = vld [vmem:[%s217 + $0x84] sm:$0xf]
        %v280 = vld [vmem:[%s217 + $0x88] sm:$0xf]
        %v281 = vld [vmem:[%s217 + $0x8c] sm:$0xf]
        %v282 = vld [vmem:[%s217 + $0x90] sm:$0xf]
        %v283 = vld [vmem:[%s217 + $0x94] sm:$0xf]
        %v284 = vld [vmem:[%s217 + $0x98] sm:$0xf]
        %v285 = vld [vmem:[%s217 + $0x9c] sm:$0xf]
        %v286 = vld [vmem:[%s217 + $0xa0] sm:$0xf]
        %v287 = vld [vmem:[%s217 + $0xa4] sm:$0xf]
        %v288 = vld [vmem:[%s217 + $0xa8] sm:$0xf]
        %v289 = vld [vmem:[%s217 + $0xac] sm:$0xf]
        %v290 = vld [vmem:[%s217 + $0xb0] sm:$0xf]
        %v291 = vld [vmem:[%s217 + $0xb4] sm:$0xf]
        %v292 = vld [vmem:[%s217 + $0xb8] sm:$0xf]
        %v293 = vld [vmem:[%s217 + $0xbc] sm:$0xf]
        %v294 = vld [vmem:[%s217 + $0xc0] sm:$0xf]
        %v295 = vld [vmem:[%s217 + $0xc4] sm:$0xf]
        %v296 = vld [vmem:[%s217 + $0xc8] sm:$0xf]
        %v297 = vld [vmem:[%s217 + $0xcc] sm:$0xf]
        %v298 = vld [vmem:[%s217 + $0xd0] sm:$0xf]
        %v299 = vld [vmem:[%s217 + $0xd4] sm:$0xf]
        %v300 = vld [vmem:[%s217 + $0xd8] sm:$0xf]
        %v301 = vld [vmem:[%s217 + $0xdc] sm:$0xf]
        %v302 = vld [vmem:[%s217 + $0xe0] sm:$0xf]
        %v303 = vld [vmem:[%s217 + $0xe4] sm:$0xf]
        %v304 = vld [vmem:[%s217 + $0xe8] sm:$0xf]
        %v305 = vld [vmem:[%s217 + $0xec] sm:$0xf]
        %v306 = vld [vmem:[%s217 + $0xf0] sm:$0xf]
        %v307 = vld [vmem:[%s217 + $0xf4] sm:$0xf]
        %v308 = vld [vmem:[%s217 + $0xf8] sm:$0xf]
        %v309 = vld [vmem:[%s217 + $0xfc] sm:$0xf]
        %v310 = vld [vmem:[%s217 + $0x100] sm:$0xf]
        %v311 = vld [vmem:[%s217 + $0x104] sm:$0xf]
        %v312 = vld [vmem:[%s217 + $0x108] sm:$0xf]
        %v313 = vld [vmem:[%s217 + $0x10c] sm:$0xf]
        %v314 = vld [vmem:[%s217 + $0x110] sm:$0xf]
        %v315 = vld [vmem:[%s217 + $0x114] sm:$0xf]
        %v316 = vld [vmem:[%s217 + $0x118] sm:$0xf]
        %v317 = vld [vmem:[%s217 + $0x11c] sm:$0xf]
        %v318 = vld [vmem:[%s217 + $0x120] sm:$0xf]
        %v319 = vld [vmem:[%s217 + $0x124] sm:$0xf]
        %v320 = vld [vmem:[%s217 + $0x128] sm:$0xf]
        %v321 = vld [vmem:[%s217 + $0x12c] sm:$0xf]
        %v322 = vld [vmem:[%s217 + $0x130] sm:$0xf]
        %v323 = vld [vmem:[%s217 + $0x134] sm:$0xf]
        %v324 = vld [vmem:[%s217 + $0x138] sm:$0xf]
        %v325 = vld [vmem:[%s217 + $0x13c] sm:$0xf]
        %v326 = vld [vmem:[%s217 + $0x140] sm:$0xf]
        %v327 = vld [vmem:[%s217 + $0x144] sm:$0xf]
        %v328 = vld [vmem:[%s217 + $0x148] sm:$0xf]
        %v329 = vld [vmem:[%s217 + $0x14c] sm:$0xf]
        %v330 = vld [vmem:[%s217 + $0x150] sm:$0xf]
        %v331 = vld [vmem:[%s217 + $0x154] sm:$0xf]
        %v332 = vld [vmem:[%s217 + $0x158] sm:$0xf]
        %v333 = vld [vmem:[%s217 + $0x15c] sm:$0xf]
        %v334 = vld [vmem:[%s217 + $0x160] sm:$0xf]
        %v335 = vld [vmem:[%s217 + $0x164] sm:$0xf]
        %v336 = vld [vmem:[%s217 + $0x168] sm:$0xf]
        %v337 = vld [vmem:[%s217 + $0x16c] sm:$0xf]
        %v338 = vld [vmem:[%s217 + $0x170] sm:$0xf]
        %v339 = vld [vmem:[%s217 + $0x174] sm:$0xf]
        %v340 = vld [vmem:[%s217 + $0x178] sm:$0xf]
        %v341 = vld [vmem:[%s217 + $0x17c] sm:$0xf]
        %v342 = vld [vmem:[%s217 + $0x180] sm:$0xf]
        %v343 = vld [vmem:[%s217 + $0x184] sm:$0xf]
        %v344 = vld [vmem:[%s217 + $0x188] sm:$0xf]
        %v345 = vld [vmem:[%s217 + $0x18c] sm:$0xf]
        %v346 = vld [vmem:[%s217 + $0x190] sm:$0xf]
        %v347 = vld [vmem:[%s217 + $0x194] sm:$0xf]
        %v348 = vld [vmem:[%s217 + $0x198] sm:$0xf]
        %v349 = vld [vmem:[%s217 + $0x19c] sm:$0xf]
        %v350 = vld [vmem:[%s217 + $0x1a0] sm:$0xf]
        %v351 = vld [vmem:[%s217 + $0x1a4] sm:$0xf]
        %v352 = vld [vmem:[%s217 + $0x1a8] sm:$0xf]
        %v353 = vld [vmem:[%s217 + $0x1ac] sm:$0xf]
        %v354 = vld [vmem:[%s217 + $0x1b0] sm:$0xf]
        %v355 = vld [vmem:[%s217 + $0x1b4] sm:$0xf]
        %v356 = vld [vmem:[%s217 + $0x1b8] sm:$0xf]
        %v357 = vld [vmem:[%s217 + $0x1bc] sm:$0xf]
        %v358 = vld [vmem:[%s217 + $0x1c0] sm:$0xf]
        %v359 = vld [vmem:[%s217 + $0x1c4] sm:$0xf]
        %v360 = vld [vmem:[%s217 + $0x1c8] sm:$0xf]
        %v361 = vld [vmem:[%s217 + $0x1cc] sm:$0xf]
        %v362 = vld [vmem:[%s217 + $0x1d0] sm:$0xf]
        %v363 = vld [vmem:[%s217 + $0x1d4] sm:$0xf]
        %v364 = vld [vmem:[%s217 + $0x1d8] sm:$0xf]
        %v365 = vld [vmem:[%s217 + $0x1dc] sm:$0xf]
        %v366 = vld [vmem:[%s217 + $0x1e0] sm:$0xf]
        %v367 = vld [vmem:[%s217 + $0x1e4] sm:$0xf]
        %v368 = vld [vmem:[%s217 + $0x1e8] sm:$0xf]
        %v369 = vld [vmem:[%s217 + $0x1ec] sm:$0xf]
        %v370 = vld [vmem:[%s217 + $0x1f0] sm:$0xf]
        %v371 = vld [vmem:[%s217 + $0x1f4] sm:$0xf]
        %v372 = vld [vmem:[%s217 + $0x1f8] sm:$0xf]
        %v373 = vld [vmem:[%s217 + $0x1fc] sm:$0xf]
        %v374 = vld [vmem:[%s217 + $0x200] sm:$0xf]
        %v375 = vld [vmem:[%s217 + $0x204] sm:$0xf]
        %v376 = vld [vmem:[%s217 + $0x208] sm:$0xf]
        %v377 = vld [vmem:[%s217 + $0x20c] sm:$0xf]
        %v378 = vld [vmem:[%s217 + $0x210] sm:$0xf]
        %v379 = vld [vmem:[%s217 + $0x214] sm:$0xf]
        %v380 = vld [vmem:[%s217 + $0x218] sm:$0xf]
        %v381 = vld [vmem:[%s217 + $0x21c] sm:$0xf]
        %v382 = vld [vmem:[%s217 + $0x220] sm:$0xf]
        %v383 = vld [vmem:[%s217 + $0x224] sm:$0xf]
        %v384 = vld [vmem:[%s217 + $0x228] sm:$0xf]
        %v385 = vld [vmem:[%s217 + $0x22c] sm:$0xf]
        %v386 = vld [vmem:[%s217 + $0x230] sm:$0xf]
        %v387 = vld [vmem:[%s217 + $0x234] sm:$0xf]
        %v388 = vld [vmem:[%s217 + $0x238] sm:$0xf]
        %v389 = vld [vmem:[%s217 + $0x23c] sm:$0xf]
        %v390 = vld [vmem:[%s217 + $0x240] sm:$0xf]
        %v391 = vld [vmem:[%s217 + $0x244] sm:$0xf]
        %v392 = vld [vmem:[%s217 + $0x248] sm:$0xf]
        %v393 = vld [vmem:[%s217 + $0x24c] sm:$0xf]
        %v394 = vld [vmem:[%s217 + $0x250] sm:$0xf]
        %v395 = vld [vmem:[%s217 + $0x254] sm:$0xf]
        %v396 = vld [vmem:[%s217 + $0x258] sm:$0xf]
        %v397 = vld [vmem:[%s217 + $0x25c] sm:$0xf]
        %v398 = vld [vmem:[%s217 + $0x260] sm:$0xf]
        %v399 = vld [vmem:[%s217 + $0x264] sm:$0xf]
        %v400 = vld [vmem:[%s217 + $0x268] sm:$0xf]
        %v401 = vld [vmem:[%s217 + $0x26c] sm:$0xf]
        %v402 = vld [vmem:[%s217 + $0x270] sm:$0xf]
        %v403 = vld [vmem:[%s217 + $0x274] sm:$0xf]
        %v404 = vld [vmem:[%s217 + $0x278] sm:$0xf]
        %v405 = vld [vmem:[%s217 + $0x27c] sm:$0xf]
        %v406 = vld [vmem:[%s217 + $0x280] sm:$0xf]
        %v407 = vld [vmem:[%s217 + $0x284] sm:$0xf]
        %v408 = vld [vmem:[%s217 + $0x288] sm:$0xf]
        %v409 = vld [vmem:[%s217 + $0x28c] sm:$0xf]
        %v410 = vld [vmem:[%s217 + $0x290] sm:$0xf]
        %v411 = vld [vmem:[%s217 + $0x294] sm:$0xf]
        %v412 = vld [vmem:[%s217 + $0x298] sm:$0xf]
        %v413 = vld [vmem:[%s217 + $0x29c] sm:$0xf]
        %v414 = vld [vmem:[%s217 + $0x2a0] sm:$0xf]
        %v415 = vld [vmem:[%s217 + $0x2a4] sm:$0xf]
        %v416 = vld [vmem:[%s217 + $0x2a8] sm:$0xf]
        %v417 = vld [vmem:[%s217 + $0x2ac] sm:$0xf]
        %v418 = vld [vmem:[%s217 + $0x2b0] sm:$0xf]
        %v419 = vld [vmem:[%s217 + $0x2b4] sm:$0xf]
        %v420 = vld [vmem:[%s217 + $0x2b8] sm:$0xf]
        %v421 = vld [vmem:[%s217 + $0x2bc] sm:$0xf]
        %v422 = vld [vmem:[%s217 + $0x2c0] sm:$0xf]
        %v423 = vld [vmem:[%s217 + $0x2c4] sm:$0xf]
        %v424 = vld [vmem:[%s217 + $0x2c8] sm:$0xf]
        %v425 = vld [vmem:[%s217 + $0x2cc] sm:$0xf]
        %v426 = vld [vmem:[%s217 + $0x2d0] sm:$0xf]
        %v427 = vld [vmem:[%s217 + $0x2d4] sm:$0xf]
        %v428 = vld [vmem:[%s217 + $0x2d8] sm:$0xf]
        %v429 = vld [vmem:[%s217 + $0x2dc] sm:$0xf]
        %v430 = vld [vmem:[%s217 + $0x2e0] sm:$0xf]
        %v431 = vld [vmem:[%s217 + $0x2e4] sm:$0xf]
        %v432 = vld [vmem:[%s217 + $0x2e8] sm:$0xf]
        %v433 = vld [vmem:[%s217 + $0x2ec] sm:$0xf]
        %v434 = vld [vmem:[%s217 + $0x2f0] sm:$0xf]
        %v435 = vld [vmem:[%s217 + $0x2f4] sm:$0xf]
        %v436 = vld [vmem:[%s217 + $0x2f8] sm:$0xf]
        %v437 = vld [vmem:[%s217 + $0x2fc] sm:$0xf]
        %v438 = vld [vmem:[%s217 + $0x300] sm:$0xf]
        %v439 = vld [vmem:[%s217 + $0x304] sm:$0xf]
        %v440 = vld [vmem:[%s217 + $0x308] sm:$0xf]
        %v441 = vld [vmem:[%s217 + $0x30c] sm:$0xf]
        %v442 = vld [vmem:[%s217 + $0x310] sm:$0xf]
        %v443 = vld [vmem:[%s217 + $0x314] sm:$0xf]
        %v444 = vld [vmem:[%s217 + $0x318] sm:$0xf]
        %v445 = vld [vmem:[%s217 + $0x31c] sm:$0xf]
        %v446 = vld [vmem:[%s217 + $0x320] sm:$0xf]
        %v447 = vld [vmem:[%s217 + $0x324] sm:$0xf]
        %v448 = vld [vmem:[%s217 + $0x328] sm:$0xf]
        %v449 = vld [vmem:[%s217 + $0x32c] sm:$0xf]
        %v450 = vld [vmem:[%s217 + $0x330] sm:$0xf]
        %v451 = vld [vmem:[%s217 + $0x334] sm:$0xf]
        %v452 = vld [vmem:[%s217 + $0x338] sm:$0xf]
        %v453 = vld [vmem:[%s217 + $0x33c] sm:$0xf]
        %v454 = vld [vmem:[%s217 + $0x340] sm:$0xf]
        %v455 = vld [vmem:[%s217 + $0x344] sm:$0xf]
        %v456 = vld [vmem:[%s217 + $0x348] sm:$0xf]
        %v457 = vld [vmem:[%s217 + $0x34c] sm:$0xf]
        %v458 = vld [vmem:[%s217 + $0x350] sm:$0xf]
        %v459 = vld [vmem:[%s217 + $0x354] sm:$0xf]
        %v460 = vld [vmem:[%s217 + $0x358] sm:$0xf]
        %v461 = vld [vmem:[%s217 + $0x35c] sm:$0xf]
        %v462 = vld [vmem:[%s217 + $0x360] sm:$0xf]
        %v463 = vld [vmem:[%s217 + $0x364] sm:$0xf]
        %v464 = vld [vmem:[%s217 + $0x368] sm:$0xf]
        %v465 = vld [vmem:[%s217 + $0x36c] sm:$0xf]
        %v466 = vld [vmem:[%s217 + $0x370] sm:$0xf]
        %v467 = vld [vmem:[%s217 + $0x374] sm:$0xf]
        %v468 = vld [vmem:[%s217 + $0x378] sm:$0xf]
        %v469 = vld [vmem:[%s217 + $0x37c] sm:$0xf]
        %v470 = vld [vmem:[%s217 + $0x380] sm:$0xf]
        %v471 = vld [vmem:[%s217 + $0x384] sm:$0xf]
        %v472 = vld [vmem:[%s217 + $0x388] sm:$0xf]
        %v473 = vld [vmem:[%s217 + $0x38c] sm:$0xf]
        %v474 = vld [vmem:[%s217 + $0x390] sm:$0xf]
        %v475 = vld [vmem:[%s217 + $0x394] sm:$0xf]
        %v476 = vld [vmem:[%s217 + $0x398] sm:$0xf]
        %v477 = vld [vmem:[%s217 + $0x39c] sm:$0xf]
        %v478 = vld [vmem:[%s217 + $0x3a0] sm:$0xf]
        %v479 = vld [vmem:[%s217 + $0x3a4] sm:$0xf]
        %v480 = vld [vmem:[%s217 + $0x3a8] sm:$0xf]
        %v481 = vld [vmem:[%s217 + $0x3ac] sm:$0xf]
        %v482 = vld [vmem:[%s217 + $0x3b0] sm:$0xf]
        %v483 = vld [vmem:[%s217 + $0x3b4] sm:$0xf]
        %v484 = vld [vmem:[%s217 + $0x3b8] sm:$0xf]
        %v485 = vld [vmem:[%s217 + $0x3bc] sm:$0xf]
        %v486 = vld [vmem:[%s217 + $0x3c0] sm:$0xf]
        %v487 = vld [vmem:[%s217 + $0x3c4] sm:$0xf]
        %v488 = vld [vmem:[%s217 + $0x3c8] sm:$0xf]
        %v489 = vld [vmem:[%s217 + $0x3cc] sm:$0xf]
        %v490 = vld [vmem:[%s217 + $0x3d0] sm:$0xf]
        %v491 = vld [vmem:[%s217 + $0x3d4] sm:$0xf]
        %v492 = vld [vmem:[%s217 + $0x3d8] sm:$0xf]
        %v493 = vld [vmem:[%s217 + $0x3dc] sm:$0xf]
        %v494 = vld [vmem:[%s217 + $0x3e0] sm:$0xf]
        %v495 = vld [vmem:[%s217 + $0x3e4] sm:$0xf]
        %v496 = vld [vmem:[%s217 + $0x3e8] sm:$0xf]
        %v497 = vld [vmem:[%s217 + $0x3ec] sm:$0xf]
        %v498 = vld [vmem:[%s217 + $0x3f0] sm:$0xf]
        %v499 = vld [vmem:[%s217 + $0x3f4] sm:$0xf]
        %v500 = vld [vmem:[%s217 + $0x3f8] sm:$0xf]
        %v501 = vld [vmem:[%s217 + $0x3fc] sm:$0xf]
        %v502 = vunpack.c.l.bf16 %v246
        %v503 = vunpack.c.l.bf16 %v247
        %v504 = vunpack.c.l.bf16 %v248
        %v505 = vunpack.c.l.bf16 %v249
        %v506 = vunpack.c.l.bf16 %v250
        %v507 = vunpack.c.l.bf16 %v251
        %v508 = vunpack.c.l.bf16 %v252
        %v509 = vunpack.c.l.bf16 %v253
        %v510 = vunpack.c.l.bf16 %v254
        %v511 = vunpack.c.l.bf16 %v255
        %v512 = vunpack.c.l.bf16 %v256
        %v513 = vunpack.c.l.bf16 %v257
        %v514 = vunpack.c.l.bf16 %v258
        %v515 = vunpack.c.l.bf16 %v259
        %v516 = vunpack.c.l.bf16 %v260
        %v517 = vunpack.c.l.bf16 %v261
        %v518 = vunpack.c.l.bf16 %v262
        %v519 = vunpack.c.l.bf16 %v263
        %v520 = vunpack.c.l.bf16 %v264
        %v521 = vunpack.c.l.bf16 %v265
        %v522 = vunpack.c.l.bf16 %v266
        %v523 = vunpack.c.l.bf16 %v267
        %v524 = vunpack.c.l.bf16 %v268
        %v525 = vunpack.c.l.bf16 %v269
        %v526 = vunpack.c.l.bf16 %v270
        %v527 = vunpack.c.l.bf16 %v271
        %v528 = vunpack.c.l.bf16 %v272
        %v529 = vunpack.c.l.bf16 %v273
        %v530 = vunpack.c.l.bf16 %v274
        %v531 = vunpack.c.l.bf16 %v275
        %v532 = vunpack.c.l.bf16 %v276
        %v533 = vunpack.c.l.bf16 %v277
        %v534 = vunpack.c.l.bf16 %v278
        %v535 = vunpack.c.l.bf16 %v279
        %v536 = vunpack.c.l.bf16 %v280
        %v537 = vunpack.c.l.bf16 %v281
        %v538 = vunpack.c.l.bf16 %v282
        %v539 = vunpack.c.l.bf16 %v283
        %v540 = vunpack.c.l.bf16 %v284
        %v541 = vunpack.c.l.bf16 %v285
        %v542 = vunpack.c.l.bf16 %v286
        %v543 = vunpack.c.l.bf16 %v287
        %v544 = vunpack.c.l.bf16 %v288
        %v545 = vunpack.c.l.bf16 %v289
        %v546 = vunpack.c.l.bf16 %v290
        %v547 = vunpack.c.l.bf16 %v291
        %v548 = vunpack.c.l.bf16 %v292
        %v549 = vunpack.c.l.bf16 %v293
        %v550 = vunpack.c.l.bf16 %v294
        %v551 = vunpack.c.l.bf16 %v295
        %v552 = vunpack.c.l.bf16 %v296
        %v553 = vunpack.c.l.bf16 %v297
        %v554 = vunpack.c.l.bf16 %v298
        %v555 = vunpack.c.l.bf16 %v299
        %v556 = vunpack.c.l.bf16 %v300
        %v557 = vunpack.c.l.bf16 %v301
        %v558 = vunpack.c.l.bf16 %v302
        %v559 = vunpack.c.l.bf16 %v303
        %v560 = vunpack.c.l.bf16 %v304
        %v561 = vunpack.c.l.bf16 %v305
        %v562 = vunpack.c.l.bf16 %v306
        %v563 = vunpack.c.l.bf16 %v307
        %v564 = vunpack.c.l.bf16 %v308
        %v565 = vunpack.c.l.bf16 %v309
        %v566 = vunpack.c.l.bf16 %v310
        %v567 = vunpack.c.l.bf16 %v311
        %v568 = vunpack.c.l.bf16 %v312
        %v569 = vunpack.c.l.bf16 %v313
        %v570 = vunpack.c.l.bf16 %v314
        %v571 = vunpack.c.l.bf16 %v315
        %v572 = vunpack.c.l.bf16 %v316
        %v573 = vunpack.c.l.bf16 %v317
        %v574 = vunpack.c.l.bf16 %v318
        %v575 = vunpack.c.l.bf16 %v319
        %v576 = vunpack.c.l.bf16 %v320
        %v577 = vunpack.c.l.bf16 %v321
        %v578 = vunpack.c.l.bf16 %v322
        %v579 = vunpack.c.l.bf16 %v323
        %v580 = vunpack.c.l.bf16 %v324
        %v581 = vunpack.c.l.bf16 %v325
        %v582 = vunpack.c.l.bf16 %v326
        %v583 = vunpack.c.l.bf16 %v327
        %v584 = vunpack.c.l.bf16 %v328
        %v585 = vunpack.c.l.bf16 %v329
        %v586 = vunpack.c.l.bf16 %v330
        %v587 = vunpack.c.l.bf16 %v331
        %v588 = vunpack.c.l.bf16 %v332
        %v589 = vunpack.c.l.bf16 %v333
        %v590 = vunpack.c.l.bf16 %v334
        %v591 = vunpack.c.l.bf16 %v335
        %v592 = vunpack.c.l.bf16 %v336
        %v593 = vunpack.c.l.bf16 %v337
        %v594 = vunpack.c.l.bf16 %v338
        %v595 = vunpack.c.l.bf16 %v339
        %v596 = vunpack.c.l.bf16 %v340
        %v597 = vunpack.c.l.bf16 %v341
        %v598 = vunpack.c.l.bf16 %v342
        %v599 = vunpack.c.l.bf16 %v343
        %v600 = vunpack.c.l.bf16 %v344
        %v601 = vunpack.c.l.bf16 %v345
        %v602 = vunpack.c.l.bf16 %v346
        %v603 = vunpack.c.l.bf16 %v347
        %v604 = vunpack.c.l.bf16 %v348
        %v605 = vunpack.c.l.bf16 %v349
        %v606 = vunpack.c.l.bf16 %v350
        %v607 = vunpack.c.l.bf16 %v351
        %v608 = vunpack.c.l.bf16 %v352
        %v609 = vunpack.c.l.bf16 %v353
        %v610 = vunpack.c.l.bf16 %v354
        %v611 = vunpack.c.l.bf16 %v355
        %v612 = vunpack.c.l.bf16 %v356
        %v613 = vunpack.c.l.bf16 %v357
        %v614 = vunpack.c.l.bf16 %v358
        %v615 = vunpack.c.l.bf16 %v359
        %v616 = vunpack.c.l.bf16 %v360
        %v617 = vunpack.c.l.bf16 %v361
        %v618 = vunpack.c.l.bf16 %v362
        %v619 = vunpack.c.l.bf16 %v363
        %v620 = vunpack.c.l.bf16 %v364
        %v621 = vunpack.c.l.bf16 %v365
        %v622 = vunpack.c.l.bf16 %v366
        %v623 = vunpack.c.l.bf16 %v367
        %v624 = vunpack.c.l.bf16 %v368
        %v625 = vunpack.c.l.bf16 %v369
        %v626 = vunpack.c.l.bf16 %v370
        %v627 = vunpack.c.l.bf16 %v371
        %v628 = vunpack.c.l.bf16 %v372
        %v629 = vunpack.c.l.bf16 %v373
        %v630 = vunpack.c.l.bf16 %v374
        %v631 = vunpack.c.l.bf16 %v375
        %v632 = vunpack.c.l.bf16 %v376
        %v633 = vunpack.c.l.bf16 %v377
        %v634 = vunpack.c.l.bf16 %v378
        %v635 = vunpack.c.l.bf16 %v379
        %v636 = vunpack.c.l.bf16 %v380
        %v637 = vunpack.c.l.bf16 %v381
        %v638 = vunpack.c.l.bf16 %v382
        %v639 = vunpack.c.l.bf16 %v383
        %v640 = vunpack.c.l.bf16 %v384
        %v641 = vunpack.c.l.bf16 %v385
        %v642 = vunpack.c.l.bf16 %v386
        %v643 = vunpack.c.l.bf16 %v387
        %v644 = vunpack.c.l.bf16 %v388
        %v645 = vunpack.c.l.bf16 %v389
        %v646 = vunpack.c.l.bf16 %v390
        %v647 = vunpack.c.l.bf16 %v391
        %v648 = vunpack.c.l.bf16 %v392
        %v649 = vunpack.c.l.bf16 %v393
        %v650 = vunpack.c.l.bf16 %v394
        %v651 = vunpack.c.l.bf16 %v395
        %v652 = vunpack.c.l.bf16 %v396
        %v653 = vunpack.c.l.bf16 %v397
        %v654 = vunpack.c.l.bf16 %v398
        %v655 = vunpack.c.l.bf16 %v399
        %v656 = vunpack.c.l.bf16 %v400
        %v657 = vunpack.c.l.bf16 %v401
        %v658 = vunpack.c.l.bf16 %v402
        %v659 = vunpack.c.l.bf16 %v403
        %v660 = vunpack.c.l.bf16 %v404
        %v661 = vunpack.c.l.bf16 %v405
        %v662 = vunpack.c.l.bf16 %v406
        %v663 = vunpack.c.l.bf16 %v407
        %v664 = vunpack.c.l.bf16 %v408
        %v665 = vunpack.c.l.bf16 %v409
        %v666 = vunpack.c.l.bf16 %v410
        %v667 = vunpack.c.l.bf16 %v411
        %v668 = vunpack.c.l.bf16 %v412
        %v669 = vunpack.c.l.bf16 %v413
        %v670 = vunpack.c.l.bf16 %v414
        %v671 = vunpack.c.l.bf16 %v415
        %v672 = vunpack.c.l.bf16 %v416
        %v673 = vunpack.c.l.bf16 %v417
        %v674 = vunpack.c.l.bf16 %v418
        %v675 = vunpack.c.l.bf16 %v419
        %v676 = vunpack.c.l.bf16 %v420
        %v677 = vunpack.c.l.bf16 %v421
        %v678 = vunpack.c.l.bf16 %v422
        %v679 = vunpack.c.l.bf16 %v423
        %v680 = vunpack.c.l.bf16 %v424
        %v681 = vunpack.c.l.bf16 %v425
        %v682 = vunpack.c.l.bf16 %v426
        %v683 = vunpack.c.l.bf16 %v427
        %v684 = vunpack.c.l.bf16 %v428
        %v685 = vunpack.c.l.bf16 %v429
        %v686 = vunpack.c.l.bf16 %v430
        %v687 = vunpack.c.l.bf16 %v431
        %v688 = vunpack.c.l.bf16 %v432
        %v689 = vunpack.c.l.bf16 %v433
        %v690 = vunpack.c.l.bf16 %v434
        %v691 = vunpack.c.l.bf16 %v435
        %v692 = vunpack.c.l.bf16 %v436
        %v693 = vunpack.c.l.bf16 %v437
        %v694 = vunpack.c.l.bf16 %v438
        %v695 = vunpack.c.l.bf16 %v439
        %v696 = vunpack.c.l.bf16 %v440
        %v697 = vunpack.c.l.bf16 %v441
        %v698 = vunpack.c.l.bf16 %v442
        %v699 = vunpack.c.l.bf16 %v443
        %v700 = vunpack.c.l.bf16 %v444
        %v701 = vunpack.c.l.bf16 %v445
        %v702 = vunpack.c.l.bf16 %v446
        %v703 = vunpack.c.l.bf16 %v447
        %v704 = vunpack.c.l.bf16 %v448
        %v705 = vunpack.c.l.bf16 %v449
        %v706 = vunpack.c.l.bf16 %v450
        %v707 = vunpack.c.l.bf16 %v451
        %v708 = vunpack.c.l.bf16 %v452
        %v709 = vunpack.c.l.bf16 %v453
        %v710 = vunpack.c.l.bf16 %v454
        %v711 = vunpack.c.l.bf16 %v455
        %v712 = vunpack.c.l.bf16 %v456
        %v713 = vunpack.c.l.bf16 %v457
        %v714 = vunpack.c.l.bf16 %v458
        %v715 = vunpack.c.l.bf16 %v459
        %v716 = vunpack.c.l.bf16 %v460
        %v717 = vunpack.c.l.bf16 %v461
        %v718 = vunpack.c.l.bf16 %v462
        %v719 = vunpack.c.l.bf16 %v463
        %v720 = vunpack.c.l.bf16 %v464
        %v721 = vunpack.c.l.bf16 %v465
        %v722 = vunpack.c.l.bf16 %v466
        %v723 = vunpack.c.l.bf16 %v467
        %v724 = vunpack.c.l.bf16 %v468
        %v725 = vunpack.c.l.bf16 %v469
        %v726 = vunpack.c.l.bf16 %v470
        %v727 = vunpack.c.l.bf16 %v471
        %v728 = vunpack.c.l.bf16 %v472
        %v729 = vunpack.c.l.bf16 %v473
        %v730 = vunpack.c.l.bf16 %v474
        %v731 = vunpack.c.l.bf16 %v475
        %v732 = vunpack.c.l.bf16 %v476
        %v733 = vunpack.c.l.bf16 %v477
        %v734 = vunpack.c.l.bf16 %v478
        %v735 = vunpack.c.l.bf16 %v479
        %v736 = vunpack.c.l.bf16 %v480
        %v737 = vunpack.c.l.bf16 %v481
        %v738 = vunpack.c.l.bf16 %v482
        %v739 = vunpack.c.l.bf16 %v483
        %v740 = vunpack.c.l.bf16 %v484
        %v741 = vunpack.c.l.bf16 %v485
        %v742 = vunpack.c.l.bf16 %v486
        %v743 = vunpack.c.l.bf16 %v487
        %v744 = vunpack.c.l.bf16 %v488
        %v745 = vunpack.c.l.bf16 %v489
        %v746 = vunpack.c.l.bf16 %v490
        %v747 = vunpack.c.l.bf16 %v491
        %v748 = vunpack.c.l.bf16 %v492
        %v749 = vunpack.c.l.bf16 %v493
        %v750 = vunpack.c.l.bf16 %v494
        %v751 = vunpack.c.l.bf16 %v495
        %v752 = vunpack.c.l.bf16 %v496
        %v753 = vunpack.c.l.bf16 %v497
        %v754 = vunpack.c.l.bf16 %v498
        %v755 = vunpack.c.l.bf16 %v499
        %v756 = vunpack.c.l.bf16 %v500
        %v757 = vunpack.c.l.bf16 %v501
        %v758 = vadd.f32 %v502, %v503
        %v759 = vrot.slane %v758, 4
        %v760 = vadd.f32 %v758, %v759
        %v761 = vrot.slane %v760, 2
        %v762 = vadd.f32 %v760, %v761
        %v763 = vrot.slane %v762, 1
        %v764 = vadd.f32 %v762, %v763
        %v765 = vadd.f32 %v504, %v505
        %v766 = vrot.slane %v765, 4
        %v767 = vadd.f32 %v765, %v766
        %v768 = vrot.slane %v767, 2
        %v769 = vadd.f32 %v767, %v768
        %v770 = vrot.slane %v769, 1
        %v771 = vadd.f32 %v769, %v770
        %v772 = vadd.f32 %v506, %v507
        %v773 = vrot.slane %v772, 4
        %v774 = vadd.f32 %v772, %v773
        %v775 = vrot.slane %v774, 2
        %v776 = vadd.f32 %v774, %v775
        %v777 = vrot.slane %v776, 1
        %v778 = vadd.f32 %v776, %v777
        %v779 = vadd.f32 %v508, %v509
        %v780 = vrot.slane %v779, 4
        %v781 = vadd.f32 %v779, %v780
        %v782 = vrot.slane %v781, 2
        %v783 = vadd.f32 %v781, %v782
        %v784 = vrot.slane %v783, 1
        %v785 = vadd.f32 %v783, %v784
        %v786 = vadd.f32 %v510, %v511
        %v787 = vrot.slane %v786, 4
        %v788 = vadd.f32 %v786, %v787
        %v789 = vrot.slane %v788, 2
        %v790 = vadd.f32 %v788, %v789
        %v791 = vrot.slane %v790, 1
        %v792 = vadd.f32 %v790, %v791
        %v793 = vadd.f32 %v512, %v513
        %v794 = vrot.slane %v793, 4
        %v795 = vadd.f32 %v793, %v794
        %v796 = vrot.slane %v795, 2
        %v797 = vadd.f32 %v795, %v796
        %v798 = vrot.slane %v797, 1
        %v799 = vadd.f32 %v797, %v798
        %v800 = vadd.f32 %v514, %v515
        %v801 = vrot.slane %v800, 4
        %v802 = vadd.f32 %v800, %v801
        %v803 = vrot.slane %v802, 2
        %v804 = vadd.f32 %v802, %v803
        %v805 = vrot.slane %v804, 1
        %v806 = vadd.f32 %v804, %v805
        %v807 = vadd.f32 %v516, %v517
        %v808 = vrot.slane %v807, 4
        %v809 = vadd.f32 %v807, %v808
        %v810 = vrot.slane %v809, 2
        %v811 = vadd.f32 %v809, %v810
        %v812 = vrot.slane %v811, 1
        %v813 = vadd.f32 %v811, %v812
        %v814 = vadd.f32 %v518, %v519
        %v815 = vrot.slane %v814, 4
        %v816 = vadd.f32 %v814, %v815
        %v817 = vrot.slane %v816, 2
        %v818 = vadd.f32 %v816, %v817
        %v819 = vrot.slane %v818, 1
        %v820 = vadd.f32 %v818, %v819
        %v821 = vadd.f32 %v520, %v521
        %v822 = vrot.slane %v821, 4
        %v823 = vadd.f32 %v821, %v822
        %v824 = vrot.slane %v823, 2
        %v825 = vadd.f32 %v823, %v824
        %v826 = vrot.slane %v825, 1
        %v827 = vadd.f32 %v825, %v826
        %v828 = vadd.f32 %v522, %v523
        %v829 = vrot.slane %v828, 4
        %v830 = vadd.f32 %v828, %v829
        %v831 = vrot.slane %v830, 2
        %v832 = vadd.f32 %v830, %v831
        %v833 = vrot.slane %v832, 1
        %v834 = vadd.f32 %v832, %v833
        %v835 = vadd.f32 %v524, %v525
        %v836 = vrot.slane %v835, 4
        %v837 = vadd.f32 %v835, %v836
        %v838 = vrot.slane %v837, 2
        %v839 = vadd.f32 %v837, %v838
        %v840 = vrot.slane %v839, 1
        %v841 = vadd.f32 %v839, %v840
        %v842 = vadd.f32 %v526, %v527
        %v843 = vrot.slane %v842, 4
        %v844 = vadd.f32 %v842, %v843
        %v845 = vrot.slane %v844, 2
        %v846 = vadd.f32 %v844, %v845
        %v847 = vrot.slane %v846, 1
        %v848 = vadd.f32 %v846, %v847
        %v849 = vadd.f32 %v528, %v529
        %v850 = vrot.slane %v849, 4
        %v851 = vadd.f32 %v849, %v850
        %v852 = vrot.slane %v851, 2
        %v853 = vadd.f32 %v851, %v852
        %v854 = vrot.slane %v853, 1
        %v855 = vadd.f32 %v853, %v854
        %v856 = vadd.f32 %v530, %v531
        %v857 = vrot.slane %v856, 4
        %v858 = vadd.f32 %v856, %v857
        %v859 = vrot.slane %v858, 2
        %v860 = vadd.f32 %v858, %v859
        %v861 = vrot.slane %v860, 1
        %v862 = vadd.f32 %v860, %v861
        %v863 = vadd.f32 %v532, %v533
        %v864 = vrot.slane %v863, 4
        %v865 = vadd.f32 %v863, %v864
        %v866 = vrot.slane %v865, 2
        %v867 = vadd.f32 %v865, %v866
        %v868 = vrot.slane %v867, 1
        %v869 = vadd.f32 %v867, %v868
        %v870 = vadd.f32 %v534, %v535
        %v871 = vrot.slane %v870, 4
        %v872 = vadd.f32 %v870, %v871
        %v873 = vrot.slane %v872, 2
        %v874 = vadd.f32 %v872, %v873
        %v875 = vrot.slane %v874, 1
        %v876 = vadd.f32 %v874, %v875
        %v877 = vadd.f32 %v536, %v537
        %v878 = vrot.slane %v877, 4
        %v879 = vadd.f32 %v877, %v878
        %v880 = vrot.slane %v879, 2
        %v881 = vadd.f32 %v879, %v880
        %v882 = vrot.slane %v881, 1
        %v883 = vadd.f32 %v881, %v882
        %v884 = vadd.f32 %v538, %v539
        %v885 = vrot.slane %v884, 4
        %v886 = vadd.f32 %v884, %v885
        %v887 = vrot.slane %v886, 2
        %v888 = vadd.f32 %v886, %v887
        %v889 = vrot.slane %v888, 1
        %v890 = vadd.f32 %v888, %v889
        %v891 = vadd.f32 %v540, %v541
        %v892 = vrot.slane %v891, 4
        %v893 = vadd.f32 %v891, %v892
        %v894 = vrot.slane %v893, 2
        %v895 = vadd.f32 %v893, %v894
        %v896 = vrot.slane %v895, 1
        %v897 = vadd.f32 %v895, %v896
        %v898 = vadd.f32 %v542, %v543
        %v899 = vrot.slane %v898, 4
        %v900 = vadd.f32 %v898, %v899
        %v901 = vrot.slane %v900, 2
        %v902 = vadd.f32 %v900, %v901
        %v903 = vrot.slane %v902, 1
        %v904 = vadd.f32 %v902, %v903
        %v905 = vadd.f32 %v544, %v545
        %v906 = vrot.slane %v905, 4
        %v907 = vadd.f32 %v905, %v906
        %v908 = vrot.slane %v907, 2
        %v909 = vadd.f32 %v907, %v908
        %v910 = vrot.slane %v909, 1
        %v911 = vadd.f32 %v909, %v910
        %v912 = vadd.f32 %v546, %v547
        %v913 = vrot.slane %v912, 4
        %v914 = vadd.f32 %v912, %v913
        %v915 = vrot.slane %v914, 2
        %v916 = vadd.f32 %v914, %v915
        %v917 = vrot.slane %v916, 1
        %v918 = vadd.f32 %v916, %v917
        %v919 = vadd.f32 %v548, %v549
        %v920 = vrot.slane %v919, 4
        %v921 = vadd.f32 %v919, %v920
        %v922 = vrot.slane %v921, 2
        %v923 = vadd.f32 %v921, %v922
        %v924 = vrot.slane %v923, 1
        %v925 = vadd.f32 %v923, %v924
        %v926 = vadd.f32 %v550, %v551
        %v927 = vrot.slane %v926, 4
        %v928 = vadd.f32 %v926, %v927
        %v929 = vrot.slane %v928, 2
        %v930 = vadd.f32 %v928, %v929
        %v931 = vrot.slane %v930, 1
        %v932 = vadd.f32 %v930, %v931
        %v933 = vadd.f32 %v552, %v553
        %v934 = vrot.slane %v933, 4
        %v935 = vadd.f32 %v933, %v934
        %v936 = vrot.slane %v935, 2
        %v937 = vadd.f32 %v935, %v936
        %v938 = vrot.slane %v937, 1
        %v939 = vadd.f32 %v937, %v938
        %v940 = vadd.f32 %v554, %v555
        %v941 = vrot.slane %v940, 4
        %v942 = vadd.f32 %v940, %v941
        %v943 = vrot.slane %v942, 2
        %v944 = vadd.f32 %v942, %v943
        %v945 = vrot.slane %v944, 1
        %v946 = vadd.f32 %v944, %v945
        %v947 = vadd.f32 %v556, %v557
        %v948 = vrot.slane %v947, 4
        %v949 = vadd.f32 %v947, %v948
        %v950 = vrot.slane %v949, 2
        %v951 = vadd.f32 %v949, %v950
        %v952 = vrot.slane %v951, 1
        %v953 = vadd.f32 %v951, %v952
        %v954 = vadd.f32 %v558, %v559
        %v955 = vrot.slane %v954, 4
        %v956 = vadd.f32 %v954, %v955
        %v957 = vrot.slane %v956, 2
        %v958 = vadd.f32 %v956, %v957
        %v959 = vrot.slane %v958, 1
        %v960 = vadd.f32 %v958, %v959
        %v961 = vadd.f32 %v560, %v561
        %v962 = vrot.slane %v961, 4
        %v963 = vadd.f32 %v961, %v962
        %v964 = vrot.slane %v963, 2
        %v965 = vadd.f32 %v963, %v964
        %v966 = vrot.slane %v965, 1
        %v967 = vadd.f32 %v965, %v966
        %v968 = vadd.f32 %v562, %v563
        %v969 = vrot.slane %v968, 4
        %v970 = vadd.f32 %v968, %v969
        %v971 = vrot.slane %v970, 2
        %v972 = vadd.f32 %v970, %v971
        %v973 = vrot.slane %v972, 1
        %v974 = vadd.f32 %v972, %v973
        %v975 = vadd.f32 %v564, %v565
        %v976 = vrot.slane %v975, 4
        %v977 = vadd.f32 %v975, %v976
        %v978 = vrot.slane %v977, 2
        %v979 = vadd.f32 %v977, %v978
        %v980 = vrot.slane %v979, 1
        %v981 = vadd.f32 %v979, %v980
        %v982 = vadd.f32 %v566, %v567
        %v983 = vrot.slane %v982, 4
        %v984 = vadd.f32 %v982, %v983
        %v985 = vrot.slane %v984, 2
        %v986 = vadd.f32 %v984, %v985
        %v987 = vrot.slane %v986, 1
        %v988 = vadd.f32 %v986, %v987
        %v989 = vadd.f32 %v568, %v569
        %v990 = vrot.slane %v989, 4
        %v991 = vadd.f32 %v989, %v990
        %v992 = vrot.slane %v991, 2
        %v993 = vadd.f32 %v991, %v992
        %v994 = vrot.slane %v993, 1
        %v995 = vadd.f32 %v993, %v994
        %v996 = vadd.f32 %v570, %v571
        %v997 = vrot.slane %v996, 4
        %v998 = vadd.f32 %v996, %v997
        %v999 = vrot.slane %v998, 2
        %v1000 = vadd.f32 %v998, %v999
        %v1001 = vrot.slane %v1000, 1
        %v1002 = vadd.f32 %v1000, %v1001
        %v1003 = vadd.f32 %v572, %v573
        %v1004 = vrot.slane %v1003, 4
        %v1005 = vadd.f32 %v1003, %v1004
        %v1006 = vrot.slane %v1005, 2
        %v1007 = vadd.f32 %v1005, %v1006
        %v1008 = vrot.slane %v1007, 1
        %v1009 = vadd.f32 %v1007, %v1008
        %v1010 = vadd.f32 %v574, %v575
        %v1011 = vrot.slane %v1010, 4
        %v1012 = vadd.f32 %v1010, %v1011
        %v1013 = vrot.slane %v1012, 2
        %v1014 = vadd.f32 %v1012, %v1013
        %v1015 = vrot.slane %v1014, 1
        %v1016 = vadd.f32 %v1014, %v1015
        %v1017 = vadd.f32 %v576, %v577
        %v1018 = vrot.slane %v1017, 4
        %v1019 = vadd.f32 %v1017, %v1018
        %v1020 = vrot.slane %v1019, 2
        %v1021 = vadd.f32 %v1019, %v1020
        %v1022 = vrot.slane %v1021, 1
        %v1023 = vadd.f32 %v1021, %v1022
        %v1024 = vadd.f32 %v578, %v579
        %v1025 = vrot.slane %v1024, 4
        %v1026 = vadd.f32 %v1024, %v1025
        %v1027 = vrot.slane %v1026, 2
        %v1028 = vadd.f32 %v1026, %v1027
        %v1029 = vrot.slane %v1028, 1
        %v1030 = vadd.f32 %v1028, %v1029
        %v1031 = vadd.f32 %v580, %v581
        %v1032 = vrot.slane %v1031, 4
        %v1033 = vadd.f32 %v1031, %v1032
        %v1034 = vrot.slane %v1033, 2
        %v1035 = vadd.f32 %v1033, %v1034
        %v1036 = vrot.slane %v1035, 1
        %v1037 = vadd.f32 %v1035, %v1036
        %v1038 = vadd.f32 %v582, %v583
        %v1039 = vrot.slane %v1038, 4
        %v1040 = vadd.f32 %v1038, %v1039
        %v1041 = vrot.slane %v1040, 2
        %v1042 = vadd.f32 %v1040, %v1041
        %v1043 = vrot.slane %v1042, 1
        %v1044 = vadd.f32 %v1042, %v1043
        %v1045 = vadd.f32 %v584, %v585
        %v1046 = vrot.slane %v1045, 4
        %v1047 = vadd.f32 %v1045, %v1046
        %v1048 = vrot.slane %v1047, 2
        %v1049 = vadd.f32 %v1047, %v1048
        %v1050 = vrot.slane %v1049, 1
        %v1051 = vadd.f32 %v1049, %v1050
        %v1052 = vadd.f32 %v586, %v587
        %v1053 = vrot.slane %v1052, 4
        %v1054 = vadd.f32 %v1052, %v1053
        %v1055 = vrot.slane %v1054, 2
        %v1056 = vadd.f32 %v1054, %v1055
        %v1057 = vrot.slane %v1056, 1
        %v1058 = vadd.f32 %v1056, %v1057
        %v1059 = vadd.f32 %v588, %v589
        %v1060 = vrot.slane %v1059, 4
        %v1061 = vadd.f32 %v1059, %v1060
        %v1062 = vrot.slane %v1061, 2
        %v1063 = vadd.f32 %v1061, %v1062
        %v1064 = vrot.slane %v1063, 1
        %v1065 = vadd.f32 %v1063, %v1064
        %v1066 = vadd.f32 %v590, %v591
        %v1067 = vrot.slane %v1066, 4
        %v1068 = vadd.f32 %v1066, %v1067
        %v1069 = vrot.slane %v1068, 2
        %v1070 = vadd.f32 %v1068, %v1069
        %v1071 = vrot.slane %v1070, 1
        %v1072 = vadd.f32 %v1070, %v1071
        %v1073 = vadd.f32 %v592, %v593
        %v1074 = vrot.slane %v1073, 4
        %v1075 = vadd.f32 %v1073, %v1074
        %v1076 = vrot.slane %v1075, 2
        %v1077 = vadd.f32 %v1075, %v1076
        %v1078 = vrot.slane %v1077, 1
        %v1079 = vadd.f32 %v1077, %v1078
        %v1080 = vadd.f32 %v594, %v595
        %v1081 = vrot.slane %v1080, 4
        %v1082 = vadd.f32 %v1080, %v1081
        %v1083 = vrot.slane %v1082, 2
        %v1084 = vadd.f32 %v1082, %v1083
        %v1085 = vrot.slane %v1084, 1
        %v1086 = vadd.f32 %v1084, %v1085
        %v1087 = vadd.f32 %v596, %v597
        %v1088 = vrot.slane %v1087, 4
        %v1089 = vadd.f32 %v1087, %v1088
        %v1090 = vrot.slane %v1089, 2
        %v1091 = vadd.f32 %v1089, %v1090
        %v1092 = vrot.slane %v1091, 1
        %v1093 = vadd.f32 %v1091, %v1092
        %v1094 = vadd.f32 %v598, %v599
        %v1095 = vrot.slane %v1094, 4
        %v1096 = vadd.f32 %v1094, %v1095
        %v1097 = vrot.slane %v1096, 2
        %v1098 = vadd.f32 %v1096, %v1097
        %v1099 = vrot.slane %v1098, 1
        %v1100 = vadd.f32 %v1098, %v1099
        %v1101 = vadd.f32 %v600, %v601
        %v1102 = vrot.slane %v1101, 4
        %v1103 = vadd.f32 %v1101, %v1102
        %v1104 = vrot.slane %v1103, 2
        %v1105 = vadd.f32 %v1103, %v1104
        %v1106 = vrot.slane %v1105, 1
        %v1107 = vadd.f32 %v1105, %v1106
        %v1108 = vadd.f32 %v602, %v603
        %v1109 = vrot.slane %v1108, 4
        %v1110 = vadd.f32 %v1108, %v1109
        %v1111 = vrot.slane %v1110, 2
        %v1112 = vadd.f32 %v1110, %v1111
        %v1113 = vrot.slane %v1112, 1
        %v1114 = vadd.f32 %v1112, %v1113
        %v1115 = vadd.f32 %v604, %v605
        %v1116 = vrot.slane %v1115, 4
        %v1117 = vadd.f32 %v1115, %v1116
        %v1118 = vrot.slane %v1117, 2
        %v1119 = vadd.f32 %v1117, %v1118
        %v1120 = vrot.slane %v1119, 1
        %v1121 = vadd.f32 %v1119, %v1120
        %v1122 = vadd.f32 %v606, %v607
        %v1123 = vrot.slane %v1122, 4
        %v1124 = vadd.f32 %v1122, %v1123
        %v1125 = vrot.slane %v1124, 2
        %v1126 = vadd.f32 %v1124, %v1125
        %v1127 = vrot.slane %v1126, 1
        %v1128 = vadd.f32 %v1126, %v1127
        %v1129 = vadd.f32 %v608, %v609
        %v1130 = vrot.slane %v1129, 4
        %v1131 = vadd.f32 %v1129, %v1130
        %v1132 = vrot.slane %v1131, 2
        %v1133 = vadd.f32 %v1131, %v1132
        %v1134 = vrot.slane %v1133, 1
        %v1135 = vadd.f32 %v1133, %v1134
        %v1136 = vadd.f32 %v610, %v611
        %v1137 = vrot.slane %v1136, 4
        %v1138 = vadd.f32 %v1136, %v1137
        %v1139 = vrot.slane %v1138, 2
        %v1140 = vadd.f32 %v1138, %v1139
        %v1141 = vrot.slane %v1140, 1
        %v1142 = vadd.f32 %v1140, %v1141
        %v1143 = vadd.f32 %v612, %v613
        %v1144 = vrot.slane %v1143, 4
        %v1145 = vadd.f32 %v1143, %v1144
        %v1146 = vrot.slane %v1145, 2
        %v1147 = vadd.f32 %v1145, %v1146
        %v1148 = vrot.slane %v1147, 1
        %v1149 = vadd.f32 %v1147, %v1148
        %v1150 = vadd.f32 %v614, %v615
        %v1151 = vrot.slane %v1150, 4
        %v1152 = vadd.f32 %v1150, %v1151
        %v1153 = vrot.slane %v1152, 2
        %v1154 = vadd.f32 %v1152, %v1153
        %v1155 = vrot.slane %v1154, 1
        %v1156 = vadd.f32 %v1154, %v1155
        %v1157 = vadd.f32 %v616, %v617
        %v1158 = vrot.slane %v1157, 4
        %v1159 = vadd.f32 %v1157, %v1158
        %v1160 = vrot.slane %v1159, 2
        %v1161 = vadd.f32 %v1159, %v1160
        %v1162 = vrot.slane %v1161, 1
        %v1163 = vadd.f32 %v1161, %v1162
        %v1164 = vadd.f32 %v618, %v619
        %v1165 = vrot.slane %v1164, 4
        %v1166 = vadd.f32 %v1164, %v1165
        %v1167 = vrot.slane %v1166, 2
        %v1168 = vadd.f32 %v1166, %v1167
        %v1169 = vrot.slane %v1168, 1
        %v1170 = vadd.f32 %v1168, %v1169
        %v1171 = vadd.f32 %v620, %v621
        %v1172 = vrot.slane %v1171, 4
        %v1173 = vadd.f32 %v1171, %v1172
        %v1174 = vrot.slane %v1173, 2
        %v1175 = vadd.f32 %v1173, %v1174
        %v1176 = vrot.slane %v1175, 1
        %v1177 = vadd.f32 %v1175, %v1176
        %v1178 = vadd.f32 %v622, %v623
        %v1179 = vrot.slane %v1178, 4
        %v1180 = vadd.f32 %v1178, %v1179
        %v1181 = vrot.slane %v1180, 2
        %v1182 = vadd.f32 %v1180, %v1181
        %v1183 = vrot.slane %v1182, 1
        %v1184 = vadd.f32 %v1182, %v1183
        %v1185 = vadd.f32 %v624, %v625
        %v1186 = vrot.slane %v1185, 4
        %v1187 = vadd.f32 %v1185, %v1186
        %v1188 = vrot.slane %v1187, 2
        %v1189 = vadd.f32 %v1187, %v1188
        %v1190 = vrot.slane %v1189, 1
        %v1191 = vadd.f32 %v1189, %v1190
        %v1192 = vadd.f32 %v626, %v627
        %v1193 = vrot.slane %v1192, 4
        %v1194 = vadd.f32 %v1192, %v1193
        %v1195 = vrot.slane %v1194, 2
        %v1196 = vadd.f32 %v1194, %v1195
        %v1197 = vrot.slane %v1196, 1
        %v1198 = vadd.f32 %v1196, %v1197
        %v1199 = vadd.f32 %v628, %v629
        %v1200 = vrot.slane %v1199, 4
        %v1201 = vadd.f32 %v1199, %v1200
        %v1202 = vrot.slane %v1201, 2
        %v1203 = vadd.f32 %v1201, %v1202
        %v1204 = vrot.slane %v1203, 1
        %v1205 = vadd.f32 %v1203, %v1204
        %v1206 = vadd.f32 %v630, %v631
        %v1207 = vrot.slane %v1206, 4
        %v1208 = vadd.f32 %v1206, %v1207
        %v1209 = vrot.slane %v1208, 2
        %v1210 = vadd.f32 %v1208, %v1209
        %v1211 = vrot.slane %v1210, 1
        %v1212 = vadd.f32 %v1210, %v1211
        %v1213 = vadd.f32 %v632, %v633
        %v1214 = vrot.slane %v1213, 4
        %v1215 = vadd.f32 %v1213, %v1214
        %v1216 = vrot.slane %v1215, 2
        %v1217 = vadd.f32 %v1215, %v1216
        %v1218 = vrot.slane %v1217, 1
        %v1219 = vadd.f32 %v1217, %v1218
        %v1220 = vadd.f32 %v634, %v635
        %v1221 = vrot.slane %v1220, 4
        %v1222 = vadd.f32 %v1220, %v1221
        %v1223 = vrot.slane %v1222, 2
        %v1224 = vadd.f32 %v1222, %v1223
        %v1225 = vrot.slane %v1224, 1
        %v1226 = vadd.f32 %v1224, %v1225
        %v1227 = vadd.f32 %v636, %v637
        %v1228 = vrot.slane %v1227, 4
        %v1229 = vadd.f32 %v1227, %v1228
        %v1230 = vrot.slane %v1229, 2
        %v1231 = vadd.f32 %v1229, %v1230
        %v1232 = vrot.slane %v1231, 1
        %v1233 = vadd.f32 %v1231, %v1232
        %v1234 = vadd.f32 %v638, %v639
        %v1235 = vrot.slane %v1234, 4
        %v1236 = vadd.f32 %v1234, %v1235
        %v1237 = vrot.slane %v1236, 2
        %v1238 = vadd.f32 %v1236, %v1237
        %v1239 = vrot.slane %v1238, 1
        %v1240 = vadd.f32 %v1238, %v1239
        %v1241 = vadd.f32 %v640, %v641
        %v1242 = vrot.slane %v1241, 4
        %v1243 = vadd.f32 %v1241, %v1242
        %v1244 = vrot.slane %v1243, 2
        %v1245 = vadd.f32 %v1243, %v1244
        %v1246 = vrot.slane %v1245, 1
        %v1247 = vadd.f32 %v1245, %v1246
        %v1248 = vadd.f32 %v642, %v643
        %v1249 = vrot.slane %v1248, 4
        %v1250 = vadd.f32 %v1248, %v1249
        %v1251 = vrot.slane %v1250, 2
        %v1252 = vadd.f32 %v1250, %v1251
        %v1253 = vrot.slane %v1252, 1
        %v1254 = vadd.f32 %v1252, %v1253
        %v1255 = vadd.f32 %v644, %v645
        %v1256 = vrot.slane %v1255, 4
        %v1257 = vadd.f32 %v1255, %v1256
        %v1258 = vrot.slane %v1257, 2
        %v1259 = vadd.f32 %v1257, %v1258
        %v1260 = vrot.slane %v1259, 1
        %v1261 = vadd.f32 %v1259, %v1260
        %v1262 = vadd.f32 %v646, %v647
        %v1263 = vrot.slane %v1262, 4
        %v1264 = vadd.f32 %v1262, %v1263
        %v1265 = vrot.slane %v1264, 2
        %v1266 = vadd.f32 %v1264, %v1265
        %v1267 = vrot.slane %v1266, 1
        %v1268 = vadd.f32 %v1266, %v1267
        %v1269 = vadd.f32 %v648, %v649
        %v1270 = vrot.slane %v1269, 4
        %v1271 = vadd.f32 %v1269, %v1270
        %v1272 = vrot.slane %v1271, 2
        %v1273 = vadd.f32 %v1271, %v1272
        %v1274 = vrot.slane %v1273, 1
        %v1275 = vadd.f32 %v1273, %v1274
        %v1276 = vadd.f32 %v650, %v651
        %v1277 = vrot.slane %v1276, 4
        %v1278 = vadd.f32 %v1276, %v1277
        %v1279 = vrot.slane %v1278, 2
        %v1280 = vadd.f32 %v1278, %v1279
        %v1281 = vrot.slane %v1280, 1
        %v1282 = vadd.f32 %v1280, %v1281
        %v1283 = vadd.f32 %v652, %v653
        %v1284 = vrot.slane %v1283, 4
        %v1285 = vadd.f32 %v1283, %v1284
        %v1286 = vrot.slane %v1285, 2
        %v1287 = vadd.f32 %v1285, %v1286
        %v1288 = vrot.slane %v1287, 1
        %v1289 = vadd.f32 %v1287, %v1288
        %v1290 = vadd.f32 %v654, %v655
        %v1291 = vrot.slane %v1290, 4
        %v1292 = vadd.f32 %v1290, %v1291
        %v1293 = vrot.slane %v1292, 2
        %v1294 = vadd.f32 %v1292, %v1293
        %v1295 = vrot.slane %v1294, 1
        %v1296 = vadd.f32 %v1294, %v1295
        %v1297 = vadd.f32 %v656, %v657
        %v1298 = vrot.slane %v1297, 4
        %v1299 = vadd.f32 %v1297, %v1298
        %v1300 = vrot.slane %v1299, 2
        %v1301 = vadd.f32 %v1299, %v1300
        %v1302 = vrot.slane %v1301, 1
        %v1303 = vadd.f32 %v1301, %v1302
        %v1304 = vadd.f32 %v658, %v659
        %v1305 = vrot.slane %v1304, 4
        %v1306 = vadd.f32 %v1304, %v1305
        %v1307 = vrot.slane %v1306, 2
        %v1308 = vadd.f32 %v1306, %v1307
        %v1309 = vrot.slane %v1308, 1
        %v1310 = vadd.f32 %v1308, %v1309
        %v1311 = vadd.f32 %v660, %v661
        %v1312 = vrot.slane %v1311, 4
        %v1313 = vadd.f32 %v1311, %v1312
        %v1314 = vrot.slane %v1313, 2
        %v1315 = vadd.f32 %v1313, %v1314
        %v1316 = vrot.slane %v1315, 1
        %v1317 = vadd.f32 %v1315, %v1316
        %v1318 = vadd.f32 %v662, %v663
        %v1319 = vrot.slane %v1318, 4
        %v1320 = vadd.f32 %v1318, %v1319
        %v1321 = vrot.slane %v1320, 2
        %v1322 = vadd.f32 %v1320, %v1321
        %v1323 = vrot.slane %v1322, 1
        %v1324 = vadd.f32 %v1322, %v1323
        %v1325 = vadd.f32 %v664, %v665
        %v1326 = vrot.slane %v1325, 4
        %v1327 = vadd.f32 %v1325, %v1326
        %v1328 = vrot.slane %v1327, 2
        %v1329 = vadd.f32 %v1327, %v1328
        %v1330 = vrot.slane %v1329, 1
        %v1331 = vadd.f32 %v1329, %v1330
        %v1332 = vadd.f32 %v666, %v667
        %v1333 = vrot.slane %v1332, 4
        %v1334 = vadd.f32 %v1332, %v1333
        %v1335 = vrot.slane %v1334, 2
        %v1336 = vadd.f32 %v1334, %v1335
        %v1337 = vrot.slane %v1336, 1
        %v1338 = vadd.f32 %v1336, %v1337
        %v1339 = vadd.f32 %v668, %v669
        %v1340 = vrot.slane %v1339, 4
        %v1341 = vadd.f32 %v1339, %v1340
        %v1342 = vrot.slane %v1341, 2
        %v1343 = vadd.f32 %v1341, %v1342
        %v1344 = vrot.slane %v1343, 1
        %v1345 = vadd.f32 %v1343, %v1344
        %v1346 = vadd.f32 %v670, %v671
        %v1347 = vrot.slane %v1346, 4
        %v1348 = vadd.f32 %v1346, %v1347
        %v1349 = vrot.slane %v1348, 2
        %v1350 = vadd.f32 %v1348, %v1349
        %v1351 = vrot.slane %v1350, 1
        %v1352 = vadd.f32 %v1350, %v1351
        %v1353 = vadd.f32 %v672, %v673
        %v1354 = vrot.slane %v1353, 4
        %v1355 = vadd.f32 %v1353, %v1354
        %v1356 = vrot.slane %v1355, 2
        %v1357 = vadd.f32 %v1355, %v1356
        %v1358 = vrot.slane %v1357, 1
        %v1359 = vadd.f32 %v1357, %v1358
        %v1360 = vadd.f32 %v674, %v675
        %v1361 = vrot.slane %v1360, 4
        %v1362 = vadd.f32 %v1360, %v1361
        %v1363 = vrot.slane %v1362, 2
        %v1364 = vadd.f32 %v1362, %v1363
        %v1365 = vrot.slane %v1364, 1
        %v1366 = vadd.f32 %v1364, %v1365
        %v1367 = vadd.f32 %v676, %v677
        %v1368 = vrot.slane %v1367, 4
        %v1369 = vadd.f32 %v1367, %v1368
        %v1370 = vrot.slane %v1369, 2
        %v1371 = vadd.f32 %v1369, %v1370
        %v1372 = vrot.slane %v1371, 1
        %v1373 = vadd.f32 %v1371, %v1372
        %v1374 = vadd.f32 %v678, %v679
        %v1375 = vrot.slane %v1374, 4
        %v1376 = vadd.f32 %v1374, %v1375
        %v1377 = vrot.slane %v1376, 2
        %v1378 = vadd.f32 %v1376, %v1377
        %v1379 = vrot.slane %v1378, 1
        %v1380 = vadd.f32 %v1378, %v1379
        %v1381 = vadd.f32 %v680, %v681
        %v1382 = vrot.slane %v1381, 4
        %v1383 = vadd.f32 %v1381, %v1382
        %v1384 = vrot.slane %v1383, 2
        %v1385 = vadd.f32 %v1383, %v1384
        %v1386 = vrot.slane %v1385, 1
        %v1387 = vadd.f32 %v1385, %v1386
        %v1388 = vadd.f32 %v682, %v683
        %v1389 = vrot.slane %v1388, 4
        %v1390 = vadd.f32 %v1388, %v1389
        %v1391 = vrot.slane %v1390, 2
        %v1392 = vadd.f32 %v1390, %v1391
        %v1393 = vrot.slane %v1392, 1
        %v1394 = vadd.f32 %v1392, %v1393
        %v1395 = vadd.f32 %v684, %v685
        %v1396 = vrot.slane %v1395, 4
        %v1397 = vadd.f32 %v1395, %v1396
        %v1398 = vrot.slane %v1397, 2
        %v1399 = vadd.f32 %v1397, %v1398
        %v1400 = vrot.slane %v1399, 1
        %v1401 = vadd.f32 %v1399, %v1400
        %v1402 = vadd.f32 %v686, %v687
        %v1403 = vrot.slane %v1402, 4
        %v1404 = vadd.f32 %v1402, %v1403
        %v1405 = vrot.slane %v1404, 2
        %v1406 = vadd.f32 %v1404, %v1405
        %v1407 = vrot.slane %v1406, 1
        %v1408 = vadd.f32 %v1406, %v1407
        %v1409 = vadd.f32 %v688, %v689
        %v1410 = vrot.slane %v1409, 4
        %v1411 = vadd.f32 %v1409, %v1410
        %v1412 = vrot.slane %v1411, 2
        %v1413 = vadd.f32 %v1411, %v1412
        %v1414 = vrot.slane %v1413, 1
        %v1415 = vadd.f32 %v1413, %v1414
        %v1416 = vadd.f32 %v690, %v691
        %v1417 = vrot.slane %v1416, 4
        %v1418 = vadd.f32 %v1416, %v1417
        %v1419 = vrot.slane %v1418, 2
        %v1420 = vadd.f32 %v1418, %v1419
        %v1421 = vrot.slane %v1420, 1
        %v1422 = vadd.f32 %v1420, %v1421
        %v1423 = vadd.f32 %v692, %v693
        %v1424 = vrot.slane %v1423, 4
        %v1425 = vadd.f32 %v1423, %v1424
        %v1426 = vrot.slane %v1425, 2
        %v1427 = vadd.f32 %v1425, %v1426
        %v1428 = vrot.slane %v1427, 1
        %v1429 = vadd.f32 %v1427, %v1428
        %v1430 = vadd.f32 %v694, %v695
        %v1431 = vrot.slane %v1430, 4
        %v1432 = vadd.f32 %v1430, %v1431
        %v1433 = vrot.slane %v1432, 2
        %v1434 = vadd.f32 %v1432, %v1433
        %v1435 = vrot.slane %v1434, 1
        %v1436 = vadd.f32 %v1434, %v1435
        %v1437 = vadd.f32 %v696, %v697
        %v1438 = vrot.slane %v1437, 4
        %v1439 = vadd.f32 %v1437, %v1438
        %v1440 = vrot.slane %v1439, 2
        %v1441 = vadd.f32 %v1439, %v1440
        %v1442 = vrot.slane %v1441, 1
        %v1443 = vadd.f32 %v1441, %v1442
        %v1444 = vadd.f32 %v698, %v699
        %v1445 = vrot.slane %v1444, 4
        %v1446 = vadd.f32 %v1444, %v1445
        %v1447 = vrot.slane %v1446, 2
        %v1448 = vadd.f32 %v1446, %v1447
        %v1449 = vrot.slane %v1448, 1
        %v1450 = vadd.f32 %v1448, %v1449
        %v1451 = vadd.f32 %v700, %v701
        %v1452 = vrot.slane %v1451, 4
        %v1453 = vadd.f32 %v1451, %v1452
        %v1454 = vrot.slane %v1453, 2
        %v1455 = vadd.f32 %v1453, %v1454
        %v1456 = vrot.slane %v1455, 1
        %v1457 = vadd.f32 %v1455, %v1456
        %v1458 = vadd.f32 %v702, %v703
        %v1459 = vrot.slane %v1458, 4
        %v1460 = vadd.f32 %v1458, %v1459
        %v1461 = vrot.slane %v1460, 2
        %v1462 = vadd.f32 %v1460, %v1461
        %v1463 = vrot.slane %v1462, 1
        %v1464 = vadd.f32 %v1462, %v1463
        %v1465 = vadd.f32 %v704, %v705
        %v1466 = vrot.slane %v1465, 4
        %v1467 = vadd.f32 %v1465, %v1466
        %v1468 = vrot.slane %v1467, 2
        %v1469 = vadd.f32 %v1467, %v1468
        %v1470 = vrot.slane %v1469, 1
        %v1471 = vadd.f32 %v1469, %v1470
        %v1472 = vadd.f32 %v706, %v707
        %v1473 = vrot.slane %v1472, 4
        %v1474 = vadd.f32 %v1472, %v1473
        %v1475 = vrot.slane %v1474, 2
        %v1476 = vadd.f32 %v1474, %v1475
        %v1477 = vrot.slane %v1476, 1
        %v1478 = vadd.f32 %v1476, %v1477
        %v1479 = vadd.f32 %v708, %v709
        %v1480 = vrot.slane %v1479, 4
        %v1481 = vadd.f32 %v1479, %v1480
        %v1482 = vrot.slane %v1481, 2
        %v1483 = vadd.f32 %v1481, %v1482
        %v1484 = vrot.slane %v1483, 1
        %v1485 = vadd.f32 %v1483, %v1484
        %v1486 = vadd.f32 %v710, %v711
        %v1487 = vrot.slane %v1486, 4
        %v1488 = vadd.f32 %v1486, %v1487
        %v1489 = vrot.slane %v1488, 2
        %v1490 = vadd.f32 %v1488, %v1489
        %v1491 = vrot.slane %v1490, 1
        %v1492 = vadd.f32 %v1490, %v1491
        %v1493 = vadd.f32 %v712, %v713
        %v1494 = vrot.slane %v1493, 4
        %v1495 = vadd.f32 %v1493, %v1494
        %v1496 = vrot.slane %v1495, 2
        %v1497 = vadd.f32 %v1495, %v1496
        %v1498 = vrot.slane %v1497, 1
        %v1499 = vadd.f32 %v1497, %v1498
        %v1500 = vadd.f32 %v714, %v715
        %v1501 = vrot.slane %v1500, 4
        %v1502 = vadd.f32 %v1500, %v1501
        %v1503 = vrot.slane %v1502, 2
        %v1504 = vadd.f32 %v1502, %v1503
        %v1505 = vrot.slane %v1504, 1
        %v1506 = vadd.f32 %v1504, %v1505
        %v1507 = vadd.f32 %v716, %v717
        %v1508 = vrot.slane %v1507, 4
        %v1509 = vadd.f32 %v1507, %v1508
        %v1510 = vrot.slane %v1509, 2
        %v1511 = vadd.f32 %v1509, %v1510
        %v1512 = vrot.slane %v1511, 1
        %v1513 = vadd.f32 %v1511, %v1512
        %v1514 = vadd.f32 %v718, %v719
        %v1515 = vrot.slane %v1514, 4
        %v1516 = vadd.f32 %v1514, %v1515
        %v1517 = vrot.slane %v1516, 2
        %v1518 = vadd.f32 %v1516, %v1517
        %v1519 = vrot.slane %v1518, 1
        %v1520 = vadd.f32 %v1518, %v1519
        %v1521 = vadd.f32 %v720, %v721
        %v1522 = vrot.slane %v1521, 4
        %v1523 = vadd.f32 %v1521, %v1522
        %v1524 = vrot.slane %v1523, 2
        %v1525 = vadd.f32 %v1523, %v1524
        %v1526 = vrot.slane %v1525, 1
        %v1527 = vadd.f32 %v1525, %v1526
        %v1528 = vadd.f32 %v722, %v723
        %v1529 = vrot.slane %v1528, 4
        %v1530 = vadd.f32 %v1528, %v1529
        %v1531 = vrot.slane %v1530, 2
        %v1532 = vadd.f32 %v1530, %v1531
        %v1533 = vrot.slane %v1532, 1
        %v1534 = vadd.f32 %v1532, %v1533
        %v1535 = vadd.f32 %v724, %v725
        %v1536 = vrot.slane %v1535, 4
        %v1537 = vadd.f32 %v1535, %v1536
        %v1538 = vrot.slane %v1537, 2
        %v1539 = vadd.f32 %v1537, %v1538
        %v1540 = vrot.slane %v1539, 1
        %v1541 = vadd.f32 %v1539, %v1540
        %v1542 = vadd.f32 %v726, %v727
        %v1543 = vrot.slane %v1542, 4
        %v1544 = vadd.f32 %v1542, %v1543
        %v1545 = vrot.slane %v1544, 2
        %v1546 = vadd.f32 %v1544, %v1545
        %v1547 = vrot.slane %v1546, 1
        %v1548 = vadd.f32 %v1546, %v1547
        %v1549 = vadd.f32 %v728, %v729
        %v1550 = vrot.slane %v1549, 4
        %v1551 = vadd.f32 %v1549, %v1550
        %v1552 = vrot.slane %v1551, 2
        %v1553 = vadd.f32 %v1551, %v1552
        %v1554 = vrot.slane %v1553, 1
        %v1555 = vadd.f32 %v1553, %v1554
        %v1556 = vadd.f32 %v730, %v731
        %v1557 = vrot.slane %v1556, 4
        %v1558 = vadd.f32 %v1556, %v1557
        %v1559 = vrot.slane %v1558, 2
        %v1560 = vadd.f32 %v1558, %v1559
        %v1561 = vrot.slane %v1560, 1
        %v1562 = vadd.f32 %v1560, %v1561
        %v1563 = vadd.f32 %v732, %v733
        %v1564 = vrot.slane %v1563, 4
        %v1565 = vadd.f32 %v1563, %v1564
        %v1566 = vrot.slane %v1565, 2
        %v1567 = vadd.f32 %v1565, %v1566
        %v1568 = vrot.slane %v1567, 1
        %v1569 = vadd.f32 %v1567, %v1568
        %v1570 = vadd.f32 %v734, %v735
        %v1571 = vrot.slane %v1570, 4
        %v1572 = vadd.f32 %v1570, %v1571
        %v1573 = vrot.slane %v1572, 2
        %v1574 = vadd.f32 %v1572, %v1573
        %v1575 = vrot.slane %v1574, 1
        %v1576 = vadd.f32 %v1574, %v1575
        %v1577 = vadd.f32 %v736, %v737
        %v1578 = vrot.slane %v1577, 4
        %v1579 = vadd.f32 %v1577, %v1578
        %v1580 = vrot.slane %v1579, 2
        %v1581 = vadd.f32 %v1579, %v1580
        %v1582 = vrot.slane %v1581, 1
        %v1583 = vadd.f32 %v1581, %v1582
        %v1584 = vadd.f32 %v738, %v739
        %v1585 = vrot.slane %v1584, 4
        %v1586 = vadd.f32 %v1584, %v1585
        %v1587 = vrot.slane %v1586, 2
        %v1588 = vadd.f32 %v1586, %v1587
        %v1589 = vrot.slane %v1588, 1
        %v1590 = vadd.f32 %v1588, %v1589
        %v1591 = vadd.f32 %v740, %v741
        %v1592 = vrot.slane %v1591, 4
        %v1593 = vadd.f32 %v1591, %v1592
        %v1594 = vrot.slane %v1593, 2
        %v1595 = vadd.f32 %v1593, %v1594
        %v1596 = vrot.slane %v1595, 1
        %v1597 = vadd.f32 %v1595, %v1596
        %v1598 = vadd.f32 %v742, %v743
        %v1599 = vrot.slane %v1598, 4
        %v1600 = vadd.f32 %v1598, %v1599
        %v1601 = vrot.slane %v1600, 2
        %v1602 = vadd.f32 %v1600, %v1601
        %v1603 = vrot.slane %v1602, 1
        %v1604 = vadd.f32 %v1602, %v1603
        %v1605 = vadd.f32 %v744, %v745
        %v1606 = vrot.slane %v1605, 4
        %v1607 = vadd.f32 %v1605, %v1606
        %v1608 = vrot.slane %v1607, 2
        %v1609 = vadd.f32 %v1607, %v1608
        %v1610 = vrot.slane %v1609, 1
        %v1611 = vadd.f32 %v1609, %v1610
        %v1612 = vadd.f32 %v746, %v747
        %v1613 = vrot.slane %v1612, 4
        %v1614 = vadd.f32 %v1612, %v1613
        %v1615 = vrot.slane %v1614, 2
        %v1616 = vadd.f32 %v1614, %v1615
        %v1617 = vrot.slane %v1616, 1
        %v1618 = vadd.f32 %v1616, %v1617
        %v1619 = vadd.f32 %v748, %v749
        %v1620 = vrot.slane %v1619, 4
        %v1621 = vadd.f32 %v1619, %v1620
        %v1622 = vrot.slane %v1621, 2
        %v1623 = vadd.f32 %v1621, %v1622
        %v1624 = vrot.slane %v1623, 1
        %v1625 = vadd.f32 %v1623, %v1624
        %v1626 = vadd.f32 %v750, %v751
        %v1627 = vrot.slane %v1626, 4
        %v1628 = vadd.f32 %v1626, %v1627
        %v1629 = vrot.slane %v1628, 2
        %v1630 = vadd.f32 %v1628, %v1629
        %v1631 = vrot.slane %v1630, 1
        %v1632 = vadd.f32 %v1630, %v1631
        %v1633 = vadd.f32 %v752, %v753
        %v1634 = vrot.slane %v1633, 4
        %v1635 = vadd.f32 %v1633, %v1634
        %v1636 = vrot.slane %v1635, 2
        %v1637 = vadd.f32 %v1635, %v1636
        %v1638 = vrot.slane %v1637, 1
        %v1639 = vadd.f32 %v1637, %v1638
        %v1640 = vadd.f32 %v754, %v755
        %v1641 = vrot.slane %v1640, 4
        %v1642 = vadd.f32 %v1640, %v1641
        %v1643 = vrot.slane %v1642, 2
        %v1644 = vadd.f32 %v1642, %v1643
        %v1645 = vrot.slane %v1644, 1
        %v1646 = vadd.f32 %v1644, %v1645
        %v1647 = vadd.f32 %v756, %v757
        %v1648 = vrot.slane %v1647, 4
        %v1649 = vadd.f32 %v1647, %v1648
        %v1650 = vrot.slane %v1649, 2
        %v1651 = vadd.f32 %v1649, %v1650
        %v1652 = vrot.slane %v1651, 1
        %v1653 = vadd.f32 %v1651, %v1652
        %v1654 = vrcp.pop 16.0
        %v1655 = vmul.f32 %v764, %v1654
        %v1656 = vmul.f32 %v771, %v1654
        %v1657 = vmul.f32 %v778, %v1654
        %v1658 = vmul.f32 %v785, %v1654
        %v1659 = vmul.f32 %v792, %v1654
        %v1660 = vmul.f32 %v799, %v1654
        %v1661 = vmul.f32 %v806, %v1654
        %v1662 = vmul.f32 %v813, %v1654
        %v1663 = vmul.f32 %v820, %v1654
        %v1664 = vmul.f32 %v827, %v1654
        %v1665 = vmul.f32 %v834, %v1654
        %v1666 = vmul.f32 %v841, %v1654
        %v1667 = vmul.f32 %v848, %v1654
        %v1668 = vmul.f32 %v855, %v1654
        %v1669 = vmul.f32 %v862, %v1654
        %v1670 = vmul.f32 %v869, %v1654
        %v1671 = vmul.f32 %v876, %v1654
        %v1672 = vmul.f32 %v883, %v1654
        %v1673 = vmul.f32 %v890, %v1654
        %v1674 = vmul.f32 %v897, %v1654
        %v1675 = vmul.f32 %v904, %v1654
        %v1676 = vmul.f32 %v911, %v1654
        %v1677 = vmul.f32 %v918, %v1654
        %v1678 = vmul.f32 %v925, %v1654
        %v1679 = vmul.f32 %v932, %v1654
        %v1680 = vmul.f32 %v939, %v1654
        %v1681 = vmul.f32 %v946, %v1654
        %v1682 = vmul.f32 %v953, %v1654
        %v1683 = vmul.f32 %v960, %v1654
        %v1684 = vmul.f32 %v967, %v1654
        %v1685 = vmul.f32 %v974, %v1654
        %v1686 = vmul.f32 %v981, %v1654
        %v1687 = vmul.f32 %v988, %v1654
        %v1688 = vmul.f32 %v995, %v1654
        %v1689 = vmul.f32 %v1002, %v1654
        %v1690 = vmul.f32 %v1009, %v1654
        %v1691 = vmul.f32 %v1016, %v1654
        %v1692 = vmul.f32 %v1023, %v1654
        %v1693 = vmul.f32 %v1030, %v1654
        %v1694 = vmul.f32 %v1037, %v1654
        %v1695 = vmul.f32 %v1044, %v1654
        %v1696 = vmul.f32 %v1051, %v1654
        %v1697 = vmul.f32 %v1058, %v1654
        %v1698 = vmul.f32 %v1065, %v1654
        %v1699 = vmul.f32 %v1072, %v1654
        %v1700 = vmul.f32 %v1079, %v1654
        %v1701 = vmul.f32 %v1086, %v1654
        %v1702 = vmul.f32 %v1093, %v1654
        %v1703 = vmul.f32 %v1100, %v1654
        %v1704 = vmul.f32 %v1107, %v1654
        %v1705 = vmul.f32 %v1114, %v1654
        %v1706 = vmul.f32 %v1121, %v1654
        %v1707 = vmul.f32 %v1128, %v1654
        %v1708 = vmul.f32 %v1135, %v1654
        %v1709 = vmul.f32 %v1142, %v1654
        %v1710 = vmul.f32 %v1149, %v1654
        %v1711 = vmul.f32 %v1156, %v1654
        %v1712 = vmul.f32 %v1163, %v1654
        %v1713 = vmul.f32 %v1170, %v1654
        %v1714 = vmul.f32 %v1177, %v1654
        %v1715 = vmul.f32 %v1184, %v1654
        %v1716 = vmul.f32 %v1191, %v1654
        %v1717 = vmul.f32 %v1198, %v1654
        %v1718 = vmul.f32 %v1205, %v1654
        %v1719 = vmul.f32 %v1212, %v1654
        %v1720 = vmul.f32 %v1219, %v1654
        %v1721 = vmul.f32 %v1226, %v1654
        %v1722 = vmul.f32 %v1233, %v1654
        %v1723 = vmul.f32 %v1240, %v1654
        %v1724 = vmul.f32 %v1247, %v1654
        %v1725 = vmul.f32 %v1254, %v1654
        %v1726 = vmul.f32 %v1261, %v1654
        %v1727 = vmul.f32 %v1268, %v1654
        %v1728 = vmul.f32 %v1275, %v1654
        %v1729 = vmul.f32 %v1282, %v1654
        %v1730 = vmul.f32 %v1289, %v1654
        %v1731 = vmul.f32 %v1296, %v1654
        %v1732 = vmul.f32 %v1303, %v1654
        %v1733 = vmul.f32 %v1310, %v1654
        %v1734 = vmul.f32 %v1317, %v1654
        %v1735 = vmul.f32 %v1324, %v1654
        %v1736 = vmul.f32 %v1331, %v1654
        %v1737 = vmul.f32 %v1338, %v1654
        %v1738 = vmul.f32 %v1345, %v1654
        %v1739 = vmul.f32 %v1352, %v1654
        %v1740 = vmul.f32 %v1359, %v1654
        %v1741 = vmul.f32 %v1366, %v1654
        %v1742 = vmul.f32 %v1373, %v1654
        %v1743 = vmul.f32 %v1380, %v1654
        %v1744 = vmul.f32 %v1387, %v1654
        %v1745 = vmul.f32 %v1394, %v1654
        %v1746 = vmul.f32 %v1401, %v1654
        %v1747 = vmul.f32 %v1408, %v1654
        %v1748 = vmul.f32 %v1415, %v1654
        %v1749 = vmul.f32 %v1422, %v1654
        %v1750 = vmul.f32 %v1429, %v1654
        %v1751 = vmul.f32 %v1436, %v1654
        %v1752 = vmul.f32 %v1443, %v1654
        %v1753 = vmul.f32 %v1450, %v1654
        %v1754 = vmul.f32 %v1457, %v1654
        %v1755 = vmul.f32 %v1464, %v1654
        %v1756 = vmul.f32 %v1471, %v1654
        %v1757 = vmul.f32 %v1478, %v1654
        %v1758 = vmul.f32 %v1485, %v1654
        %v1759 = vmul.f32 %v1492, %v1654
        %v1760 = vmul.f32 %v1499, %v1654
        %v1761 = vmul.f32 %v1506, %v1654
        %v1762 = vmul.f32 %v1513, %v1654
        %v1763 = vmul.f32 %v1520, %v1654
        %v1764 = vmul.f32 %v1527, %v1654
        %v1765 = vmul.f32 %v1534, %v1654
        %v1766 = vmul.f32 %v1541, %v1654
        %v1767 = vmul.f32 %v1548, %v1654
        %v1768 = vmul.f32 %v1555, %v1654
        %v1769 = vmul.f32 %v1562, %v1654
        %v1770 = vmul.f32 %v1569, %v1654
        %v1771 = vmul.f32 %v1576, %v1654
        %v1772 = vmul.f32 %v1583, %v1654
        %v1773 = vmul.f32 %v1590, %v1654
        %v1774 = vmul.f32 %v1597, %v1654
        %v1775 = vmul.f32 %v1604, %v1654
        %v1776 = vmul.f32 %v1611, %v1654
        %v1777 = vmul.f32 %v1618, %v1654
        %v1778 = vmul.f32 %v1625, %v1654
        %v1779 = vmul.f32 %v1632, %v1654
        %v1780 = vmul.f32 %v1639, %v1654
        %v1781 = vmul.f32 %v1646, %v1654
        %v1782 = vmul.f32 %v1653, %v1654
        %v1783 = vadd.f32 %v502, %v504
        %v1784 = vadd.f32 %v1783, %v506
        %v1785 = vadd.f32 %v1784, %v508
        %v1786 = vadd.f32 %v1785, %v510
        %v1787 = vadd.f32 %v1786, %v512
        %v1788 = vadd.f32 %v1787, %v514
        %v1789 = vadd.f32 %v1788, %v516
        %v1790 = vadd.f32 %v1789, %v518
        %v1791 = vadd.f32 %v1790, %v520
        %v1792 = vadd.f32 %v1791, %v522
        %v1793 = vadd.f32 %v1792, %v524
        %v1794 = vadd.f32 %v1793, %v526
        %v1795 = vadd.f32 %v1794, %v528
        %v1796 = vadd.f32 %v1795, %v530
        %v1797 = vadd.f32 %v1796, %v532
        %v1798 = vadd.f32 %v1797, %v534
        %v1799 = vadd.f32 %v1798, %v536
        %v1800 = vadd.f32 %v1799, %v538
        %v1801 = vadd.f32 %v1800, %v540
        %v1802 = vadd.f32 %v1801, %v542
        %v1803 = vadd.f32 %v1802, %v544
        %v1804 = vadd.f32 %v1803, %v546
        %v1805 = vadd.f32 %v1804, %v548
        %v1806 = vadd.f32 %v1805, %v550
        %v1807 = vadd.f32 %v1806, %v552
        %v1808 = vadd.f32 %v1807, %v554
        %v1809 = vadd.f32 %v1808, %v556
        %v1810 = vadd.f32 %v1809, %v558
        %v1811 = vadd.f32 %v1810, %v560
        %v1812 = vadd.f32 %v1811, %v562
        %v1813 = vadd.f32 %v1812, %v564
        %v1814 = vadd.f32 %v503, %v505
        %v1815 = vadd.f32 %v1814, %v507
        %v1816 = vadd.f32 %v1815, %v509
        %v1817 = vadd.f32 %v1816, %v511
        %v1818 = vadd.f32 %v1817, %v513
        %v1819 = vadd.f32 %v1818, %v515
        %v1820 = vadd.f32 %v1819, %v517
        %v1821 = vadd.f32 %v1820, %v519
        %v1822 = vadd.f32 %v1821, %v521
        %v1823 = vadd.f32 %v1822, %v523
        %v1824 = vadd.f32 %v1823, %v525
        %v1825 = vadd.f32 %v1824, %v527
        %v1826 = vadd.f32 %v1825, %v529
        %v1827 = vadd.f32 %v1826, %v531
        %v1828 = vadd.f32 %v1827, %v533
        %v1829 = vadd.f32 %v1828, %v535
        %v1830 = vadd.f32 %v1829, %v537
        %v1831 = vadd.f32 %v1830, %v539
        %v1832 = vadd.f32 %v1831, %v541
        %v1833 = vadd.f32 %v1832, %v543
        %v1834 = vadd.f32 %v1833, %v545
        %v1835 = vadd.f32 %v1834, %v547
        %v1836 = vadd.f32 %v1835, %v549
        %v1837 = vadd.f32 %v1836, %v551
        %v1838 = vadd.f32 %v1837, %v553
        %v1839 = vadd.f32 %v1838, %v555
        %v1840 = vadd.f32 %v1839, %v557
        %v1841 = vadd.f32 %v1840, %v559
        %v1842 = vadd.f32 %v1841, %v561
        %v1843 = vadd.f32 %v1842, %v563
        %v1844 = vadd.f32 %v1843, %v565
        %v1845 = vadd.f32 %v566, %v568
        %v1846 = vadd.f32 %v1845, %v570
        %v1847 = vadd.f32 %v1846, %v572
        %v1848 = vadd.f32 %v1847, %v574
        %v1849 = vadd.f32 %v1848, %v576
        %v1850 = vadd.f32 %v1849, %v578
        %v1851 = vadd.f32 %v1850, %v580
        %v1852 = vadd.f32 %v1851, %v582
        %v1853 = vadd.f32 %v1852, %v584
        %v1854 = vadd.f32 %v1853, %v586
        %v1855 = vadd.f32 %v1854, %v588
        %v1856 = vadd.f32 %v1855, %v590
        %v1857 = vadd.f32 %v1856, %v592
        %v1858 = vadd.f32 %v1857, %v594
        %v1859 = vadd.f32 %v1858, %v596
        %v1860 = vadd.f32 %v1859, %v598
        %v1861 = vadd.f32 %v1860, %v600
        %v1862 = vadd.f32 %v1861, %v602
        %v1863 = vadd.f32 %v1862, %v604
        %v1864 = vadd.f32 %v1863, %v606
        %v1865 = vadd.f32 %v1864, %v608
        %v1866 = vadd.f32 %v1865, %v610
        %v1867 = vadd.f32 %v1866, %v612
        %v1868 = vadd.f32 %v1867, %v614
        %v1869 = vadd.f32 %v1868, %v616
        %v1870 = vadd.f32 %v1869, %v618
        %v1871 = vadd.f32 %v1870, %v620
        %v1872 = vadd.f32 %v1871, %v622
        %v1873 = vadd.f32 %v1872, %v624
        %v1874 = vadd.f32 %v1873, %v626
        %v1875 = vadd.f32 %v1874, %v628
        %v1876 = vadd.f32 %v567, %v569
        %v1877 = vadd.f32 %v1876, %v571
        %v1878 = vadd.f32 %v1877, %v573
        %v1879 = vadd.f32 %v1878, %v575
        %v1880 = vadd.f32 %v1879, %v577
        %v1881 = vadd.f32 %v1880, %v579
        %v1882 = vadd.f32 %v1881, %v581
        %v1883 = vadd.f32 %v1882, %v583
        %v1884 = vadd.f32 %v1883, %v585
        %v1885 = vadd.f32 %v1884, %v587
        %v1886 = vadd.f32 %v1885, %v589
        %v1887 = vadd.f32 %v1886, %v591
        %v1888 = vadd.f32 %v1887, %v593
        %v1889 = vadd.f32 %v1888, %v595
        %v1890 = vadd.f32 %v1889, %v597
        %v1891 = vadd.f32 %v1890, %v599
        %v1892 = vadd.f32 %v1891, %v601
        %v1893 = vadd.f32 %v1892, %v603
        %v1894 = vadd.f32 %v1893, %v605
        %v1895 = vadd.f32 %v1894, %v607
        %v1896 = vadd.f32 %v1895, %v609
        %v1897 = vadd.f32 %v1896, %v611
        %v1898 = vadd.f32 %v1897, %v613
        %v1899 = vadd.f32 %v1898, %v615
        %v1900 = vadd.f32 %v1899, %v617
        %v1901 = vadd.f32 %v1900, %v619
        %v1902 = vadd.f32 %v1901, %v621
        %v1903 = vadd.f32 %v1902, %v623
        %v1904 = vadd.f32 %v1903, %v625
        %v1905 = vadd.f32 %v1904, %v627
        %v1906 = vadd.f32 %v1905, %v629
        %v1907 = vadd.f32 %v630, %v632
        %v1908 = vadd.f32 %v1907, %v634
        %v1909 = vadd.f32 %v1908, %v636
        %v1910 = vadd.f32 %v1909, %v638
        %v1911 = vadd.f32 %v1910, %v640
        %v1912 = vadd.f32 %v1911, %v642
        %v1913 = vadd.f32 %v1912, %v644
        %v1914 = vadd.f32 %v1913, %v646
        %v1915 = vadd.f32 %v1914, %v648
        %v1916 = vadd.f32 %v1915, %v650
        %v1917 = vadd.f32 %v1916, %v652
        %v1918 = vadd.f32 %v1917, %v654
        %v1919 = vadd.f32 %v1918, %v656
        %v1920 = vadd.f32 %v1919, %v658
        %v1921 = vadd.f32 %v1920, %v660
        %v1922 = vadd.f32 %v1921, %v662
        %v1923 = vadd.f32 %v1922, %v664
        %v1924 = vadd.f32 %v1923, %v666
        %v1925 = vadd.f32 %v1924, %v668
        %v1926 = vadd.f32 %v1925, %v670
        %v1927 = vadd.f32 %v1926, %v672
        %v1928 = vadd.f32 %v1927, %v674
        %v1929 = vadd.f32 %v1928, %v676
        %v1930 = vadd.f32 %v1929, %v678
        %v1931 = vadd.f32 %v1930, %v680
        %v1932 = vadd.f32 %v1931, %v682
        %v1933 = vadd.f32 %v1932, %v684
        %v1934 = vadd.f32 %v1933, %v686
        %v1935 = vadd.f32 %v1934, %v688
        %v1936 = vadd.f32 %v1935, %v690
        %v1937 = vadd.f32 %v1936, %v692
        %v1938 = vadd.f32 %v631, %v633
        %v1939 = vadd.f32 %v1938, %v635
        %v1940 = vadd.f32 %v1939, %v637
        %v1941 = vadd.f32 %v1940, %v639
        %v1942 = vadd.f32 %v1941, %v641
        %v1943 = vadd.f32 %v1942, %v643
        %v1944 = vadd.f32 %v1943, %v645
        %v1945 = vadd.f32 %v1944, %v647
        %v1946 = vadd.f32 %v1945, %v649
        %v1947 = vadd.f32 %v1946, %v651
        %v1948 = vadd.f32 %v1947, %v653
        %v1949 = vadd.f32 %v1948, %v655
        %v1950 = vadd.f32 %v1949, %v657
        %v1951 = vadd.f32 %v1950, %v659
        %v1952 = vadd.f32 %v1951, %v661
        %v1953 = vadd.f32 %v1952, %v663
        %v1954 = vadd.f32 %v1953, %v665
        %v1955 = vadd.f32 %v1954, %v667
        %v1956 = vadd.f32 %v1955, %v669
        %v1957 = vadd.f32 %v1956, %v671
        %v1958 = vadd.f32 %v1957, %v673
        %v1959 = vadd.f32 %v1958, %v675
        %v1960 = vadd.f32 %v1959, %v677
        %v1961 = vadd.f32 %v1960, %v679
        %v1962 = vadd.f32 %v1961, %v681
        %v1963 = vadd.f32 %v1962, %v683
        %v1964 = vadd.f32 %v1963, %v685
        %v1965 = vadd.f32 %v1964, %v687
        %v1966 = vadd.f32 %v1965, %v689
        %v1967 = vadd.f32 %v1966, %v691
        %v1968 = vadd.f32 %v1967, %v693
        %v1969 = vadd.f32 %v694, %v696
        %v1970 = vadd.f32 %v1969, %v698
        %v1971 = vadd.f32 %v1970, %v700
        %v1972 = vadd.f32 %v1971, %v702
        %v1973 = vadd.f32 %v1972, %v704
        %v1974 = vadd.f32 %v1973, %v706
        %v1975 = vadd.f32 %v1974, %v708
        %v1976 = vadd.f32 %v1975, %v710
        %v1977 = vadd.f32 %v1976, %v712
        %v1978 = vadd.f32 %v1977, %v714
        %v1979 = vadd.f32 %v1978, %v716
        %v1980 = vadd.f32 %v1979, %v718
        %v1981 = vadd.f32 %v1980, %v720
        %v1982 = vadd.f32 %v1981, %v722
        %v1983 = vadd.f32 %v1982, %v724
        %v1984 = vadd.f32 %v1983, %v726
        %v1985 = vadd.f32 %v1984, %v728
        %v1986 = vadd.f32 %v1985, %v730
        %v1987 = vadd.f32 %v1986, %v732
        %v1988 = vadd.f32 %v1987, %v734
        %v1989 = vadd.f32 %v1988, %v736
        %v1990 = vadd.f32 %v1989, %v738
        %v1991 = vadd.f32 %v1990, %v740
        %v1992 = vadd.f32 %v1991, %v742
        %v1993 = vadd.f32 %v1992, %v744
        %v1994 = vadd.f32 %v1993, %v746
        %v1995 = vadd.f32 %v1994, %v748
        %v1996 = vadd.f32 %v1995, %v750
        %v1997 = vadd.f32 %v1996, %v752
        %v1998 = vadd.f32 %v1997, %v754
        %v1999 = vadd.f32 %v1998, %v756
        %v2000 = vadd.f32 %v695, %v697
        %v2001 = vadd.f32 %v2000, %v699
        %v2002 = vadd.f32 %v2001, %v701
        %v2003 = vadd.f32 %v2002, %v703
        %v2004 = vadd.f32 %v2003, %v705
        %v2005 = vadd.f32 %v2004, %v707
        %v2006 = vadd.f32 %v2005, %v709
        %v2007 = vadd.f32 %v2006, %v711
        %v2008 = vadd.f32 %v2007, %v713
        %v2009 = vadd.f32 %v2008, %v715
        %v2010 = vadd.f32 %v2009, %v717
        %v2011 = vadd.f32 %v2010, %v719
        %v2012 = vadd.f32 %v2011, %v721
        %v2013 = vadd.f32 %v2012, %v723
        %v2014 = vadd.f32 %v2013, %v725
        %v2015 = vadd.f32 %v2014, %v727
        %v2016 = vadd.f32 %v2015, %v729
        %v2017 = vadd.f32 %v2016, %v731
        %v2018 = vadd.f32 %v2017, %v733
        %v2019 = vadd.f32 %v2018, %v735
        %v2020 = vadd.f32 %v2019, %v737
        %v2021 = vadd.f32 %v2020, %v739
        %v2022 = vadd.f32 %v2021, %v741
        %v2023 = vadd.f32 %v2022, %v743
        %v2024 = vadd.f32 %v2023, %v745
        %v2025 = vadd.f32 %v2024, %v747
        %v2026 = vadd.f32 %v2025, %v749
        %v2027 = vadd.f32 %v2026, %v751
        %v2028 = vadd.f32 %v2027, %v753
        %v2029 = vadd.f32 %v2028, %v755
        %v2030 = vadd.f32 %v2029, %v757
        %v2031 = vrcp.pop 32.0
        %v2032 = vmul.f32 %v1813, %v2031
        %v2033 = vmul.f32 %v1844, %v2031
        %v2034 = vmul.f32 %v1875, %v2031
        %v2035 = vmul.f32 %v1906, %v2031
        %v2036 = vmul.f32 %v1937, %v2031
        %v2037 = vmul.f32 %v1968, %v2031
        %v2038 = vmul.f32 %v1999, %v2031
        %v2039 = vmul.f32 %v2030, %v2031
        %vm2168 = vcmask 1041409
        %v2169 = vsel %vm2168, %v1656, %v1655
        %vm2170 = vcmask 1042434
        %v2171 = vsel %vm2170, %v1657, %v2169
        %vm2172 = vcmask 1043459
        %v2173 = vsel %vm2172, %v1658, %v2171
        %vm2174 = vcmask 1044484
        %v2175 = vsel %vm2174, %v1659, %v2173
        %vm2176 = vcmask 1045509
        %v2177 = vsel %vm2176, %v1660, %v2175
        %vm2178 = vcmask 1046534
        %v2179 = vsel %vm2178, %v1661, %v2177
        %vm2180 = vcmask 1047559
        %v2181 = vsel %vm2180, %v1662, %v2179
        %v2182 = vsel %vm2168, %v1664, %v1663
        %v2183 = vsel %vm2170, %v1665, %v2182
        %v2184 = vsel %vm2172, %v1666, %v2183
        %v2185 = vsel %vm2174, %v1667, %v2184
        %v2186 = vsel %vm2176, %v1668, %v2185
        %v2187 = vsel %vm2178, %v1669, %v2186
        %v2188 = vsel %vm2180, %v1670, %v2187
        %v2189 = vsel %vm2168, %v1672, %v1671
        %v2190 = vsel %vm2170, %v1673, %v2189
        %v2191 = vsel %vm2172, %v1674, %v2190
        %v2192 = vsel %vm2174, %v1675, %v2191
        %v2193 = vsel %vm2176, %v1676, %v2192
        %v2194 = vsel %vm2178, %v1677, %v2193
        %v2195 = vsel %vm2180, %v1678, %v2194
        %v2196 = vsel %vm2168, %v1680, %v1679
        %v2197 = vsel %vm2170, %v1681, %v2196
        %v2198 = vsel %vm2172, %v1682, %v2197
        %v2199 = vsel %vm2174, %v1683, %v2198
        %v2200 = vsel %vm2176, %v1684, %v2199
        %v2201 = vsel %vm2178, %v1685, %v2200
        %v2202 = vsel %vm2180, %v1686, %v2201
        %v2203 = vsel %vm2168, %v1688, %v1687
        %v2204 = vsel %vm2170, %v1689, %v2203
        %v2205 = vsel %vm2172, %v1690, %v2204
        %v2206 = vsel %vm2174, %v1691, %v2205
        %v2207 = vsel %vm2176, %v1692, %v2206
        %v2208 = vsel %vm2178, %v1693, %v2207
        %v2209 = vsel %vm2180, %v1694, %v2208
        %v2210 = vsel %vm2168, %v1696, %v1695
        %v2211 = vsel %vm2170, %v1697, %v2210
        %v2212 = vsel %vm2172, %v1698, %v2211
        %v2213 = vsel %vm2174, %v1699, %v2212
        %v2214 = vsel %vm2176, %v1700, %v2213
        %v2215 = vsel %vm2178, %v1701, %v2214
        %v2216 = vsel %vm2180, %v1702, %v2215
        %v2217 = vsel %vm2168, %v1704, %v1703
        %v2218 = vsel %vm2170, %v1705, %v2217
        %v2219 = vsel %vm2172, %v1706, %v2218
        %v2220 = vsel %vm2174, %v1707, %v2219
        %v2221 = vsel %vm2176, %v1708, %v2220
        %v2222 = vsel %vm2178, %v1709, %v2221
        %v2223 = vsel %vm2180, %v1710, %v2222
        %v2224 = vsel %vm2168, %v1712, %v1711
        %v2225 = vsel %vm2170, %v1713, %v2224
        %v2226 = vsel %vm2172, %v1714, %v2225
        %v2227 = vsel %vm2174, %v1715, %v2226
        %v2228 = vsel %vm2176, %v1716, %v2227
        %v2229 = vsel %vm2178, %v1717, %v2228
        %v2230 = vsel %vm2180, %v1718, %v2229
        %v2231 = vsel %vm2168, %v1720, %v1719
        %v2232 = vsel %vm2170, %v1721, %v2231
        %v2233 = vsel %vm2172, %v1722, %v2232
        %v2234 = vsel %vm2174, %v1723, %v2233
        %v2235 = vsel %vm2176, %v1724, %v2234
        %v2236 = vsel %vm2178, %v1725, %v2235
        %v2237 = vsel %vm2180, %v1726, %v2236
        %v2238 = vsel %vm2168, %v1728, %v1727
        %v2239 = vsel %vm2170, %v1729, %v2238
        %v2240 = vsel %vm2172, %v1730, %v2239
        %v2241 = vsel %vm2174, %v1731, %v2240
        %v2242 = vsel %vm2176, %v1732, %v2241
        %v2243 = vsel %vm2178, %v1733, %v2242
        %v2244 = vsel %vm2180, %v1734, %v2243
        %v2245 = vsel %vm2168, %v1736, %v1735
        %v2246 = vsel %vm2170, %v1737, %v2245
        %v2247 = vsel %vm2172, %v1738, %v2246
        %v2248 = vsel %vm2174, %v1739, %v2247
        %v2249 = vsel %vm2176, %v1740, %v2248
        %v2250 = vsel %vm2178, %v1741, %v2249
        %v2251 = vsel %vm2180, %v1742, %v2250
        %v2252 = vsel %vm2168, %v1744, %v1743
        %v2253 = vsel %vm2170, %v1745, %v2252
        %v2254 = vsel %vm2172, %v1746, %v2253
        %v2255 = vsel %vm2174, %v1747, %v2254
        %v2256 = vsel %vm2176, %v1748, %v2255
        %v2257 = vsel %vm2178, %v1749, %v2256
        %v2258 = vsel %vm2180, %v1750, %v2257
        %v2259 = vsel %vm2168, %v1752, %v1751
        %v2260 = vsel %vm2170, %v1753, %v2259
        %v2261 = vsel %vm2172, %v1754, %v2260
        %v2262 = vsel %vm2174, %v1755, %v2261
        %v2263 = vsel %vm2176, %v1756, %v2262
        %v2264 = vsel %vm2178, %v1757, %v2263
        %v2265 = vsel %vm2180, %v1758, %v2264
        %v2266 = vsel %vm2168, %v1760, %v1759
        %v2267 = vsel %vm2170, %v1761, %v2266
        %v2268 = vsel %vm2172, %v1762, %v2267
        %v2269 = vsel %vm2174, %v1763, %v2268
        %v2270 = vsel %vm2176, %v1764, %v2269
        %v2271 = vsel %vm2178, %v1765, %v2270
        %v2272 = vsel %vm2180, %v1766, %v2271
        %v2273 = vsel %vm2168, %v1768, %v1767
        %v2274 = vsel %vm2170, %v1769, %v2273
        %v2275 = vsel %vm2172, %v1770, %v2274
        %v2276 = vsel %vm2174, %v1771, %v2275
        %v2277 = vsel %vm2176, %v1772, %v2276
        %v2278 = vsel %vm2178, %v1773, %v2277
        %v2279 = vsel %vm2180, %v1774, %v2278
        %v2280 = vsel %vm2168, %v1776, %v1775
        %v2281 = vsel %vm2170, %v1777, %v2280
        %v2282 = vsel %vm2172, %v1778, %v2281
        %v2283 = vsel %vm2174, %v1779, %v2282
        %v2284 = vsel %vm2176, %v1780, %v2283
        %v2285 = vsel %vm2178, %v1781, %v2284
        %v2286 = vsel %vm2180, %v1782, %v2285
        %v2303 = vld [vmem:[%s1] sm:$0xff]
        %v2304 = vld [vmem:[%s1 + $0x8] sm:$0xff]
        %v2305 = vld [vmem:[%s1 + $0x10] sm:$0xff]
        %v2306 = vld [vmem:[%s1 + $0x18] sm:$0xff]
        %v2307 = vld [vmem:[%s1 + $0x20] sm:$0xff]
        %v2308 = vld [vmem:[%s1 + $0x28] sm:$0xff]
        %v2309 = vld [vmem:[%s1 + $0x30] sm:$0xff]
        %v2310 = vld [vmem:[%s1 + $0x38] sm:$0xff]
        %v2311 = vld [vmem:[%s1 + $0x40] sm:$0xff]
        %v2312 = vld [vmem:[%s1 + $0x48] sm:$0xff]
        %v2313 = vld [vmem:[%s1 + $0x50] sm:$0xff]
        %v2314 = vld [vmem:[%s1 + $0x58] sm:$0xff]
        %v2315 = vld [vmem:[%s1 + $0x60] sm:$0xff]
        %v2316 = vld [vmem:[%s1 + $0x68] sm:$0xff]
        %v2317 = vld [vmem:[%s1 + $0x70] sm:$0xff]
        %v2318 = vld [vmem:[%s1 + $0x78] sm:$0xff]
        %v2319 = vld [vmem:[%s2] sm:$0x1]
        %v2321 = vlaneseq
        %v2322 = vshrl.u32 %v2321, 7
        %v2323 = vsub.s32 0, %v2322
        %v2324 = vrot.slane %v2319, %v2323
        %2326 = vmatprep.subr.mxu0 0.0
        %2327 = vmatpush1.msra.mxu0 %v2303
        %2328 = vmatprep.subr.mxu0 0.0
        %2329 = vmatpush1.msra.mxu0 %v2304
        %2330 = vmatprep.subr.mxu0 0.0
        %2331 = vmatpush1.msra.mxu0 %v2305
        %2332 = vmatprep.subr.mxu0 0.0
        %2333 = vmatpush1.msra.mxu0 %v2306
        %2334 = vmatprep.subr.mxu0 0.0
        %2335 = vmatpush1.msra.mxu0 %v2307
        %2336 = vmatprep.subr.mxu0 0.0
        %2337 = vmatpush1.msra.mxu0 %v2308
        %2338 = vmatprep.subr.mxu0 0.0
        %2339 = vmatpush1.msra.mxu0 %v2309
        %2340 = vmatprep.subr.mxu0 0.0
        %2341 = vmatpush1.msra.mxu0 %v2310
        %2342 = vmatprep.subr.mxu0 0.0
        %2343 = vmatpush1.msra.mxu0 %v2311
        %2344 = vmatprep.subr.mxu0 0.0
        %2345 = vmatpush1.msra.mxu0 %v2312
        %2346 = vmatprep.subr.mxu0 0.0
        %2347 = vmatpush1.msra.mxu0 %v2313
        %2348 = vmatprep.subr.mxu0 0.0
        %2349 = vmatpush1.msra.mxu0 %v2314
        %2350 = vmatprep.subr.mxu0 0.0
        %2351 = vmatpush1.msra.mxu0 %v2315
        %2352 = vmatprep.subr.mxu0 0.0
        %2353 = vmatpush1.msra.mxu0 %v2316
        %2354 = vmatprep.subr.mxu0 0.0
        %2355 = vmatpush1.msra.mxu0 %v2317
        %2356 = vmatprep.subr.mxu0 0.0
        %2357 = vmatpush1.msra.mxu0 %v2318
        %2358 = vmatprep.subr.mxu0 0.0
        %2359 = vmatpush1.msra.mxu0 0.0
        %2360 = vmatprep.subr.mxu0 0.0
        %2361 = vmatpush1.msra.mxu0 0.0
        %2362 = vmatprep.subr.mxu0 0.0
        %2363 = vmatpush1.msra.mxu0 0.0
        %2364 = vmatprep.subr.mxu0 0.0
        %2365 = vmatpush1.msra.mxu0 0.0
        %2366 = vmatprep.subr.mxu0 0.0
        %2367 = vmatpush1.msra.mxu0 0.0
        %2368 = vmatprep.subr.mxu0 0.0
        %2369 = vmatpush1.msra.mxu0 0.0
        %2370 = vmatprep.subr.mxu0 0.0
        %2371 = vmatpush1.msra.mxu0 0.0
        %2372 = vmatprep.subr.mxu0 0.0
        %2373 = vmatpush1.msra.mxu0 0.0
        %2374 = vmatprep.subr.mxu0 0.0
        %2375 = vmatpush1.msra.mxu0 0.0
        %2376 = vmatprep.subr.mxu0 0.0
        %2377 = vmatpush1.msra.mxu0 0.0
        %2378 = vmatprep.subr.mxu0 0.0
        %2379 = vmatpush1.msra.mxu0 0.0
        %2380 = vmatprep.subr.mxu0 0.0
        %2381 = vmatpush1.msra.mxu0 0.0
        %2382 = vmatprep.subr.mxu0 0.0
        %2383 = vmatpush1.msra.mxu0 0.0
        %2384 = vmatprep.subr.mxu0 0.0
        %2385 = vmatpush1.msra.mxu0 0.0
        %2386 = vmatprep.subr.mxu0 0.0
        %2387 = vmatpush1.msra.mxu0 0.0
        %2388 = vmatprep.subr.mxu0 0.0
        %2389 = vmatpush1.msra.mxu0 0.0
        %2390 = vmatprep.mubr.f32.mxu0 0.0
        %2391 = vmatmul.mubr.f32.gmra.mrb[0].mxu0 %v2181
        %v2392 = vpop.f32.mrb[0].mxu0
        %v2393 = vadd.f32 %v2324, %v2392
        %v2394 = vpop.f32.mrb[0].mxu0
        %2395 = vmatprep.mubr.f32.mxu0 0.0
        %2396 = vmatmul.mubr.f32.gmra.mrb[0].mxu0 %v2188
        %v2397 = vpop.f32.mrb[0].mxu0
        %v2398 = vadd.f32 %v2324, %v2397
        %v2399 = vpop.f32.mrb[0].mxu0
        %2400 = vmatprep.mubr.f32.mxu0 0.0
        %2401 = vmatmul.mubr.f32.gmra.mrb[0].mxu0 %v2195
        %v2402 = vpop.f32.mrb[0].mxu0
        %v2403 = vadd.f32 %v2324, %v2402
        %v2404 = vpop.f32.mrb[0].mxu0
        %2405 = vmatprep.mubr.f32.mxu0 0.0
        %2406 = vmatmul.mubr.f32.gmra.mrb[0].mxu0 %v2202
        %v2407 = vpop.f32.mrb[0].mxu0
        %v2408 = vadd.f32 %v2324, %v2407
        %v2409 = vpop.f32.mrb[0].mxu0
        %2410 = vmatprep.mubr.f32.mxu0 0.0
        %2411 = vmatmul.mubr.f32.gmra.mrb[0].mxu0 %v2209
        %v2412 = vpop.f32.mrb[0].mxu0
        %v2413 = vadd.f32 %v2324, %v2412
        %v2414 = vpop.f32.mrb[0].mxu0
        %2415 = vmatprep.mubr.f32.mxu0 0.0
        %2416 = vmatmul.mubr.f32.gmra.mrb[0].mxu0 %v2216
        %v2417 = vpop.f32.mrb[0].mxu0
        %v2418 = vadd.f32 %v2324, %v2417
        %v2419 = vpop.f32.mrb[0].mxu0
        %2420 = vmatprep.mubr.f32.mxu0 0.0
        %2421 = vmatmul.mubr.f32.gmra.mrb[0].mxu0 %v2223
        %v2422 = vpop.f32.mrb[0].mxu0
        %v2423 = vadd.f32 %v2324, %v2422
        %v2424 = vpop.f32.mrb[0].mxu0
        %2425 = vmatprep.mubr.f32.mxu0 0.0
        %2426 = vmatmul.mubr.f32.gmra.mrb[0].mxu0 %v2230
        %v2427 = vpop.f32.mrb[0].mxu0
        %v2428 = vadd.f32 %v2324, %v2427
        %v2429 = vpop.f32.mrb[0].mxu0
        %2430 = vmatprep.mubr.f32.mxu0 0.0
        %2431 = vmatmul.mubr.f32.gmra.mrb[0].mxu0 %v2237
        %v2432 = vpop.f32.mrb[0].mxu0
        %v2433 = vadd.f32 %v2324, %v2432
        %v2434 = vpop.f32.mrb[0].mxu0
        %2435 = vmatprep.mubr.f32.mxu0 0.0
        %2436 = vmatmul.mubr.f32.gmra.mrb[0].mxu0 %v2244
        %v2437 = vpop.f32.mrb[0].mxu0
        %v2438 = vadd.f32 %v2324, %v2437
        %v2439 = vpop.f32.mrb[0].mxu0
        %2440 = vmatprep.mubr.f32.mxu0 0.0
        %2441 = vmatmul.mubr.f32.gmra.mrb[0].mxu0 %v2251
        %v2442 = vpop.f32.mrb[0].mxu0
        %v2443 = vadd.f32 %v2324, %v2442
        %v2444 = vpop.f32.mrb[0].mxu0
        %2445 = vmatprep.mubr.f32.mxu0 0.0
        %2446 = vmatmul.mubr.f32.gmra.mrb[0].mxu0 %v2258
        %v2447 = vpop.f32.mrb[0].mxu0
        %v2448 = vadd.f32 %v2324, %v2447
        %v2449 = vpop.f32.mrb[0].mxu0
        %2450 = vmatprep.mubr.f32.mxu0 0.0
        %2451 = vmatmul.mubr.f32.gmra.mrb[0].mxu0 %v2265
        %v2452 = vpop.f32.mrb[0].mxu0
        %v2453 = vadd.f32 %v2324, %v2452
        %v2454 = vpop.f32.mrb[0].mxu0
        %2455 = vmatprep.mubr.f32.mxu0 0.0
        %2456 = vmatmul.mubr.f32.gmra.mrb[0].mxu0 %v2272
        %v2457 = vpop.f32.mrb[0].mxu0
        %v2458 = vadd.f32 %v2324, %v2457
        %v2459 = vpop.f32.mrb[0].mxu0
        %2460 = vmatprep.mubr.f32.mxu0 0.0
        %2461 = vmatmul.mubr.f32.gmra.mrb[0].mxu0 %v2279
        %v2462 = vpop.f32.mrb[0].mxu0
        %v2463 = vadd.f32 %v2324, %v2462
        %v2464 = vpop.f32.mrb[0].mxu0
        %2465 = vmatprep.mubr.f32.mxu0 0.0
        %2466 = vmatmul.mubr.f32.gmra.mrb[0].mxu0 %v2286
        %v2467 = vpop.f32.mrb[0].mxu0
        %v2468 = vadd.f32 %v2324, %v2467
        %v2469 = vpop.f32.mrb[0].mxu0
        %2470 = vmatprep.mubr.f32.mxu0 0.0
        %2471 = vmatmul.mubr.f32.gmra.mrb[0].mxu0 %v2032
        %v2472 = vpop.f32.mrb[0].mxu0
        %v2473 = vadd.f32 %v2324, %v2472
        %v2474 = vpop.f32.mrb[0].mxu0
        %2475 = vmatprep.mubr.f32.mxu0 0.0
        %2476 = vmatmul.mubr.f32.gmra.mrb[0].mxu0 %v2033
        %v2477 = vpop.f32.mrb[0].mxu0
        %v2478 = vadd.f32 %v2324, %v2477
        %v2479 = vpop.f32.mrb[0].mxu0
        %2480 = vmatprep.mubr.f32.mxu0 0.0
        %2481 = vmatmul.mubr.f32.gmra.mrb[0].mxu0 %v2034
        %v2482 = vpop.f32.mrb[0].mxu0
        %v2483 = vadd.f32 %v2324, %v2482
        %v2484 = vpop.f32.mrb[0].mxu0
        %2485 = vmatprep.mubr.f32.mxu0 0.0
        %2486 = vmatmul.mubr.f32.gmra.mrb[0].mxu0 %v2035
        %v2487 = vpop.f32.mrb[0].mxu0
        %v2488 = vadd.f32 %v2324, %v2487
        %v2489 = vpop.f32.mrb[0].mxu0
        %2490 = vmatprep.mubr.f32.mxu0 0.0
        %2491 = vmatmul.mubr.f32.gmra.mrb[0].mxu0 %v2036
        %v2492 = vpop.f32.mrb[0].mxu0
        %v2493 = vadd.f32 %v2324, %v2492
        %v2494 = vpop.f32.mrb[0].mxu0
        %2495 = vmatprep.mubr.f32.mxu0 0.0
        %2496 = vmatmul.mubr.f32.gmra.mrb[0].mxu0 %v2037
        %v2497 = vpop.f32.mrb[0].mxu0
        %v2498 = vadd.f32 %v2324, %v2497
        %v2499 = vpop.f32.mrb[0].mxu0
        %2500 = vmatprep.mubr.f32.mxu0 0.0
        %2501 = vmatmul.mubr.f32.gmra.mrb[0].mxu0 %v2038
        %v2502 = vpop.f32.mrb[0].mxu0
        %v2503 = vadd.f32 %v2324, %v2502
        %v2504 = vpop.f32.mrb[0].mxu0
        %2505 = vmatprep.mubr.f32.mxu0 0.0
        %2506 = vmatmul.mubr.f32.gmra.mrb[0].mxu0 %v2039
        %v2507 = vpop.f32.mrb[0].mxu0
        %v2508 = vadd.f32 %v2324, %v2507
        %v2509 = vpop.f32.mrb[0].mxu0
        %2510 = vdwg.mxu0
        %v2511 = vadd.f32 %v2393, 3.0
        %v2512 = vadd.f32 %v2398, 3.0
        %v2513 = vadd.f32 %v2403, 3.0
        %v2514 = vadd.f32 %v2408, 3.0
        %v2515 = vadd.f32 %v2413, 3.0
        %v2516 = vadd.f32 %v2418, 3.0
        %v2517 = vadd.f32 %v2423, 3.0
        %v2518 = vadd.f32 %v2428, 3.0
        %v2519 = vadd.f32 %v2433, 3.0
        %v2520 = vadd.f32 %v2438, 3.0
        %v2521 = vadd.f32 %v2443, 3.0
        %v2522 = vadd.f32 %v2448, 3.0
        %v2523 = vadd.f32 %v2453, 3.0
        %v2524 = vadd.f32 %v2458, 3.0
        %v2525 = vadd.f32 %v2463, 3.0
        %v2526 = vadd.f32 %v2468, 3.0
        %v2527 = vadd.f32 %v2473, 3.0
        %v2528 = vadd.f32 %v2478, 3.0
        %v2529 = vadd.f32 %v2483, 3.0
        %v2530 = vadd.f32 %v2488, 3.0
        %v2531 = vadd.f32 %v2493, 3.0
        %v2532 = vadd.f32 %v2498, 3.0
        %v2533 = vadd.f32 %v2503, 3.0
        %v2534 = vadd.f32 %v2508, 3.0
        %v2535 = vmax.f32 %v2511, 0.0
        %v2536 = vmax.f32 %v2512, 0.0
        %v2537 = vmax.f32 %v2513, 0.0
        %v2538 = vmax.f32 %v2514, 0.0
        %v2539 = vmax.f32 %v2515, 0.0
        %v2540 = vmax.f32 %v2516, 0.0
        %v2541 = vmax.f32 %v2517, 0.0
        %v2542 = vmax.f32 %v2518, 0.0
        %v2543 = vmax.f32 %v2519, 0.0
        %v2544 = vmax.f32 %v2520, 0.0
        %v2545 = vmax.f32 %v2521, 0.0
        %v2546 = vmax.f32 %v2522, 0.0
        %v2547 = vmax.f32 %v2523, 0.0
        %v2548 = vmax.f32 %v2524, 0.0
        %v2549 = vmax.f32 %v2525, 0.0
        %v2550 = vmax.f32 %v2526, 0.0
        %v2551 = vmax.f32 %v2527, 0.0
        %v2552 = vmax.f32 %v2528, 0.0
        %v2553 = vmax.f32 %v2529, 0.0
        %v2554 = vmax.f32 %v2530, 0.0
        %v2555 = vmax.f32 %v2531, 0.0
        %v2556 = vmax.f32 %v2532, 0.0
        %v2557 = vmax.f32 %v2533, 0.0
        %v2558 = vmax.f32 %v2534, 0.0
        %v2559 = vmin.f32 %v2535, 6.0
        %v2560 = vmin.f32 %v2536, 6.0
        %v2561 = vmin.f32 %v2537, 6.0
        %v2562 = vmin.f32 %v2538, 6.0
        %v2563 = vmin.f32 %v2539, 6.0
        %v2564 = vmin.f32 %v2540, 6.0
        %v2565 = vmin.f32 %v2541, 6.0
        %v2566 = vmin.f32 %v2542, 6.0
        %v2567 = vmin.f32 %v2543, 6.0
        %v2568 = vmin.f32 %v2544, 6.0
        %v2569 = vmin.f32 %v2545, 6.0
        %v2570 = vmin.f32 %v2546, 6.0
        %v2571 = vmin.f32 %v2547, 6.0
        %v2572 = vmin.f32 %v2548, 6.0
        %v2573 = vmin.f32 %v2549, 6.0
        %v2574 = vmin.f32 %v2550, 6.0
        %v2575 = vmin.f32 %v2551, 6.0
        %v2576 = vmin.f32 %v2552, 6.0
        %v2577 = vmin.f32 %v2553, 6.0
        %v2578 = vmin.f32 %v2554, 6.0
        %v2579 = vmin.f32 %v2555, 6.0
        %v2580 = vmin.f32 %v2556, 6.0
        %v2581 = vmin.f32 %v2557, 6.0
        %v2582 = vmin.f32 %v2558, 6.0
        %v2583 = vmul.f32 %v2559, 0.16666667
        %v2584 = vmul.f32 %v2560, 0.16666667
        %v2585 = vmul.f32 %v2561, 0.16666667
        %v2586 = vmul.f32 %v2562, 0.16666667
        %v2587 = vmul.f32 %v2563, 0.16666667
        %v2588 = vmul.f32 %v2564, 0.16666667
        %v2589 = vmul.f32 %v2565, 0.16666667
        %v2590 = vmul.f32 %v2566, 0.16666667
        %v2591 = vmul.f32 %v2567, 0.16666667
        %v2592 = vmul.f32 %v2568, 0.16666667
        %v2593 = vmul.f32 %v2569, 0.16666667
        %v2594 = vmul.f32 %v2570, 0.16666667
        %v2595 = vmul.f32 %v2571, 0.16666667
        %v2596 = vmul.f32 %v2572, 0.16666667
        %v2597 = vmul.f32 %v2573, 0.16666667
        %v2598 = vmul.f32 %v2574, 0.16666667
        %v2599 = vmul.f32 %v2575, 0.16666667
        %v2600 = vmul.f32 %v2576, 0.16666667
        %v2601 = vmul.f32 %v2577, 0.16666667
        %v2602 = vmul.f32 %v2578, 0.16666667
        %v2603 = vmul.f32 %v2579, 0.16666667
        %v2604 = vmul.f32 %v2580, 0.16666667
        %v2605 = vmul.f32 %v2581, 0.16666667
        %v2606 = vmul.f32 %v2582, 0.16666667
        %v2607 = vmul.f32 %v2393, %v2583
        %v2608 = vmul.f32 %v2398, %v2584
        %v2609 = vmul.f32 %v2403, %v2585
        %v2610 = vmul.f32 %v2408, %v2586
        %v2611 = vmul.f32 %v2413, %v2587
        %v2612 = vmul.f32 %v2418, %v2588
        %v2613 = vmul.f32 %v2423, %v2589
        %v2614 = vmul.f32 %v2428, %v2590
        %v2615 = vmul.f32 %v2433, %v2591
        %v2616 = vmul.f32 %v2438, %v2592
        %v2617 = vmul.f32 %v2443, %v2593
        %v2618 = vmul.f32 %v2448, %v2594
        %v2619 = vmul.f32 %v2453, %v2595
        %v2620 = vmul.f32 %v2458, %v2596
        %v2621 = vmul.f32 %v2463, %v2597
        %v2622 = vmul.f32 %v2468, %v2598
        %v2623 = vmul.f32 %v2473, %v2599
        %v2624 = vmul.f32 %v2478, %v2600
        %v2625 = vmul.f32 %v2483, %v2601
        %v2626 = vmul.f32 %v2488, %v2602
        %v2627 = vmul.f32 %v2493, %v2603
        %v2628 = vmul.f32 %v2498, %v2604
        %v2629 = vmul.f32 %v2503, %v2605
        %v2630 = vmul.f32 %v2508, %v2606
        %v2631 = vld [vmem:[%s3] sm:$0xff]
        %v2632 = vld [vmem:[%s3 + $0x8] sm:$0xff]
        %v2633 = vld [vmem:[%s3 + $0x10] sm:$0xff]
        %v2634 = vld [vmem:[%s3 + $0x18] sm:$0xff]
        %v2635 = vld [vmem:[%s3 + $0x20] sm:$0xff]
        %v2636 = vld [vmem:[%s3 + $0x28] sm:$0xff]
        %v2637 = vld [vmem:[%s3 + $0x30] sm:$0xff]
        %v2638 = vld [vmem:[%s3 + $0x38] sm:$0xff]
        %v2639 = vld [vmem:[%s4] sm:$0x3]
        %v2641 = vlaneseq
        %v2642 = vshrl.u32 %v2641, 7
        %v2643 = vsub.s32 0, %v2642
        %v2644 = vrot.slane %v2639, %v2643
        %v2645 = vlaneseq
        %v2646 = vshrl.u32 %v2645, 7
        %v2647 = vsub.s32 1, %v2646
        %v2648 = vrot.slane %v2639, %v2647
        %vm2651 = vcmask 261120
        %v2653 = vsel %vm2651, %v2607, 0
        %v2656 = vsel %vm2651, %v2608, 0
        %v2659 = vsel %vm2651, %v2609, 0
        %v2662 = vsel %vm2651, %v2610, 0
        %v2665 = vsel %vm2651, %v2611, 0
        %v2668 = vsel %vm2651, %v2612, 0
        %v2671 = vsel %vm2651, %v2613, 0
        %v2674 = vsel %vm2651, %v2614, 0
        %v2677 = vsel %vm2651, %v2615, 0
        %v2680 = vsel %vm2651, %v2616, 0
        %v2683 = vsel %vm2651, %v2617, 0
        %v2686 = vsel %vm2651, %v2618, 0
        %v2689 = vsel %vm2651, %v2619, 0
        %v2692 = vsel %vm2651, %v2620, 0
        %v2695 = vsel %vm2651, %v2621, 0
        %v2698 = vsel %vm2651, %v2622, 0
        %v2701 = vsel %vm2651, %v2623, 0
        %v2704 = vsel %vm2651, %v2624, 0
        %v2707 = vsel %vm2651, %v2625, 0
        %v2710 = vsel %vm2651, %v2626, 0
        %v2713 = vsel %vm2651, %v2627, 0
        %v2716 = vsel %vm2651, %v2628, 0
        %v2719 = vsel %vm2651, %v2629, 0
        %v2722 = vsel %vm2651, %v2630, 0
        %2724 = vmatprep.subr.mxu0 %v2632
        %2725 = vmatpush1.msra.mxu0 %v2631
        %2726 = vmatprep.subr.mxu0 %v2634
        %2727 = vmatpush1.msra.mxu0 %v2633
        %2728 = vmatprep.subr.mxu0 %v2636
        %2729 = vmatpush1.msra.mxu0 %v2635
        %2730 = vmatprep.subr.mxu0 %v2638
        %2731 = vmatpush1.msra.mxu0 %v2637
        %2732 = vmatprep.subr.mxu0 0.0
        %2733 = vmatpush1.msra.mxu0 0.0
        %2734 = vmatprep.subr.mxu0 0.0
        %2735 = vmatpush1.msra.mxu0 0.0
        %2736 = vmatprep.subr.mxu0 0.0
        %2737 = vmatpush1.msra.mxu0 0.0
        %2738 = vmatprep.subr.mxu0 0.0
        %2739 = vmatpush1.msra.mxu0 0.0
        %2740 = vmatprep.subr.mxu0 0.0
        %2741 = vmatpush1.msra.mxu0 0.0
        %2742 = vmatprep.subr.mxu0 0.0
        %2743 = vmatpush1.msra.mxu0 0.0
        %2744 = vmatprep.subr.mxu0 0.0
        %2745 = vmatpush1.msra.mxu0 0.0
        %2746 = vmatprep.subr.mxu0 0.0
        %2747 = vmatpush1.msra.mxu0 0.0
        %2748 = vmatprep.subr.mxu0 0.0
        %2749 = vmatpush1.msra.mxu0 0.0
        %2750 = vmatprep.subr.mxu0 0.0
        %2751 = vmatpush1.msra.mxu0 0.0
        %2752 = vmatprep.subr.mxu0 0.0
        %2753 = vmatpush1.msra.mxu0 0.0
        %2754 = vmatprep.subr.mxu0 0.0
        %2755 = vmatpush1.msra.mxu0 0.0
        %2756 = vmatprep.subr.mxu0 0.0
        %2757 = vmatpush1.msra.mxu0 0.0
        %2758 = vmatprep.subr.mxu0 0.0
        %2759 = vmatpush1.msra.mxu0 0.0
        %2760 = vmatprep.subr.mxu0 0.0
        %2761 = vmatpush1.msra.mxu0 0.0
        %2762 = vmatprep.subr.mxu0 0.0
        %2763 = vmatpush1.msra.mxu0 0.0
        %2764 = vmatprep.subr.mxu0 0.0
        %2765 = vmatpush1.msra.mxu0 0.0
        %2766 = vmatprep.subr.mxu0 0.0
        %2767 = vmatpush1.msra.mxu0 0.0
        %2768 = vmatprep.subr.mxu0 0.0
        %2769 = vmatpush1.msra.mxu0 0.0
        %2770 = vmatprep.subr.mxu0 0.0
        %2771 = vmatpush1.msra.mxu0 0.0
        %2772 = vmatprep.subr.mxu0 0.0
        %2773 = vmatpush1.msra.mxu0 0.0
        %2774 = vmatprep.subr.mxu0 0.0
        %2775 = vmatpush1.msra.mxu0 0.0
        %2776 = vmatprep.subr.mxu0 0.0
        %2777 = vmatpush1.msra.mxu0 0.0
        %2778 = vmatprep.subr.mxu0 0.0
        %2779 = vmatpush1.msra.mxu0 0.0
        %2780 = vmatprep.subr.mxu0 0.0
        %2781 = vmatpush1.msra.mxu0 0.0
        %2782 = vmatprep.subr.mxu0 0.0
        %2783 = vmatpush1.msra.mxu0 0.0
        %2784 = vmatprep.subr.mxu0 0.0
        %2785 = vmatpush1.msra.mxu0 0.0
        %2786 = vmatprep.subr.mxu0 0.0
        %2787 = vmatpush1.msra.mxu0 0.0
        %2788 = vmatprep.mubr.f32.mxu0 0.0
        %2789 = vmatmul.mubr.f32.gmra.mrb[0].mxu0 %v2653
        %v2790 = vpop.f32.mrb[0].mxu0
        %v2791 = vadd.f32 %v2644, %v2790
        %v2792 = vpop.f32.mrb[0].mxu0
        %2793 = vmatprep.mubr.f32.mxu0 0.0
        %2794 = vmatmul.mubr.f32.gmra.mrb[0].mxu0 %v2656
        %v2795 = vpop.f32.mrb[0].mxu0
        %v2796 = vadd.f32 %v2644, %v2795
        %v2797 = vpop.f32.mrb[0].mxu0
        %2798 = vmatprep.mubr.f32.mxu0 0.0
        %2799 = vmatmul.mubr.f32.gmra.mrb[0].mxu0 %v2659
        %v2800 = vpop.f32.mrb[0].mxu0
        %v2801 = vadd.f32 %v2644, %v2800
        %v2802 = vpop.f32.mrb[0].mxu0
        %2803 = vmatprep.mubr.f32.mxu0 0.0
        %2804 = vmatmul.mubr.f32.gmra.mrb[0].mxu0 %v2662
        %v2805 = vpop.f32.mrb[0].mxu0
        %v2806 = vadd.f32 %v2644, %v2805
        %v2807 = vpop.f32.mrb[0].mxu0
        %2808 = vmatprep.mubr.f32.mxu0 0.0
        %2809 = vmatmul.mubr.f32.gmra.mrb[0].mxu0 %v2665
        %v2810 = vpop.f32.mrb[0].mxu0
        %v2811 = vadd.f32 %v2644, %v2810
        %v2812 = vpop.f32.mrb[0].mxu0
        %2813 = vmatprep.mubr.f32.mxu0 0.0
        %2814 = vmatmul.mubr.f32.gmra.mrb[0].mxu0 %v2668
        %v2815 = vpop.f32.mrb[0].mxu0
        %v2816 = vadd.f32 %v2644, %v2815
        %v2817 = vpop.f32.mrb[0].mxu0
        %2818 = vmatprep.mubr.f32.mxu0 0.0
        %2819 = vmatmul.mubr.f32.gmra.mrb[0].mxu0 %v2671
        %v2820 = vpop.f32.mrb[0].mxu0
        %v2821 = vadd.f32 %v2644, %v2820
        %v2822 = vpop.f32.mrb[0].mxu0
        %2823 = vmatprep.mubr.f32.mxu0 0.0
        %2824 = vmatmul.mubr.f32.gmra.mrb[0].mxu0 %v2674
        %v2825 = vpop.f32.mrb[0].mxu0
        %v2826 = vadd.f32 %v2644, %v2825
        %v2827 = vpop.f32.mrb[0].mxu0
        %2828 = vmatprep.mubr.f32.mxu0 0.0
        %2829 = vmatmul.mubr.f32.gmra.mrb[0].mxu0 %v2677
        %v2830 = vpop.f32.mrb[0].mxu0
        %v2831 = vadd.f32 %v2644, %v2830
        %v2832 = vpop.f32.mrb[0].mxu0
        %2833 = vmatprep.mubr.f32.mxu0 0.0
        %2834 = vmatmul.mubr.f32.gmra.mrb[0].mxu0 %v2680
        %v2835 = vpop.f32.mrb[0].mxu0
        %v2836 = vadd.f32 %v2644, %v2835
        %v2837 = vpop.f32.mrb[0].mxu0
        %2838 = vmatprep.mubr.f32.mxu0 0.0
        %2839 = vmatmul.mubr.f32.gmra.mrb[0].mxu0 %v2683
        %v2840 = vpop.f32.mrb[0].mxu0
        %v2841 = vadd.f32 %v2644, %v2840
        %v2842 = vpop.f32.mrb[0].mxu0
        %2843 = vmatprep.mubr.f32.mxu0 0.0
        %2844 = vmatmul.mubr.f32.gmra.mrb[0].mxu0 %v2686
        %v2845 = vpop.f32.mrb[0].mxu0
        %v2846 = vadd.f32 %v2644, %v2845
        %v2847 = vpop.f32.mrb[0].mxu0
        %2848 = vmatprep.mubr.f32.mxu0 0.0
        %2849 = vmatmul.mubr.f32.gmra.mrb[0].mxu0 %v2689
        %v2850 = vpop.f32.mrb[0].mxu0
        %v2851 = vadd.f32 %v2644, %v2850
        %v2852 = vpop.f32.mrb[0].mxu0
        %2853 = vmatprep.mubr.f32.mxu0 0.0
        %2854 = vmatmul.mubr.f32.gmra.mrb[0].mxu0 %v2692
        %v2855 = vpop.f32.mrb[0].mxu0
        %v2856 = vadd.f32 %v2644, %v2855
        %v2857 = vpop.f32.mrb[0].mxu0
        %2858 = vmatprep.mubr.f32.mxu0 0.0
        %2859 = vmatmul.mubr.f32.gmra.mrb[0].mxu0 %v2695
        %v2860 = vpop.f32.mrb[0].mxu0
        %v2861 = vadd.f32 %v2644, %v2860
        %v2862 = vpop.f32.mrb[0].mxu0
        %2863 = vmatprep.mubr.f32.mxu0 0.0
        %2864 = vmatmul.mubr.f32.gmra.mrb[0].mxu0 %v2698
        %v2865 = vpop.f32.mrb[0].mxu0
        %v2866 = vadd.f32 %v2644, %v2865
        %v2867 = vpop.f32.mrb[0].mxu0
        %2868 = vmatprep.mubr.f32.mxu0 0.0
        %2869 = vmatmul.mubr.f32.gmra.mrb[0].mxu0 %v2701
        %v2870 = vpop.f32.mrb[0].mxu0
        %v2871 = vpop.f32.mrb[0].mxu0
        %v2872 = vadd.f32 %v2648, %v2871
        %2873 = vmatprep.mubr.f32.mxu0 0.0
        %2874 = vmatmul.mubr.f32.gmra.mrb[0].mxu0 %v2704
        %v2875 = vpop.f32.mrb[0].mxu0
        %v2876 = vpop.f32.mrb[0].mxu0
        %v2877 = vadd.f32 %v2648, %v2876
        %2878 = vmatprep.mubr.f32.mxu0 0.0
        %2879 = vmatmul.mubr.f32.gmra.mrb[0].mxu0 %v2707
        %v2880 = vpop.f32.mrb[0].mxu0
        %v2881 = vpop.f32.mrb[0].mxu0
        %v2882 = vadd.f32 %v2648, %v2881
        %2883 = vmatprep.mubr.f32.mxu0 0.0
        %2884 = vmatmul.mubr.f32.gmra.mrb[0].mxu0 %v2710
        %v2885 = vpop.f32.mrb[0].mxu0
        %v2886 = vpop.f32.mrb[0].mxu0
        %v2887 = vadd.f32 %v2648, %v2886
        %2888 = vmatprep.mubr.f32.mxu0 0.0
        %2889 = vmatmul.mubr.f32.gmra.mrb[0].mxu0 %v2713
        %v2890 = vpop.f32.mrb[0].mxu0
        %v2891 = vpop.f32.mrb[0].mxu0
        %v2892 = vadd.f32 %v2648, %v2891
        %2893 = vmatprep.mubr.f32.mxu0 0.0
        %2894 = vmatmul.mubr.f32.gmra.mrb[0].mxu0 %v2716
        %v2895 = vpop.f32.mrb[0].mxu0
        %v2896 = vpop.f32.mrb[0].mxu0
        %v2897 = vadd.f32 %v2648, %v2896
        %2898 = vmatprep.mubr.f32.mxu0 0.0
        %2899 = vmatmul.mubr.f32.gmra.mrb[0].mxu0 %v2719
        %v2900 = vpop.f32.mrb[0].mxu0
        %v2901 = vpop.f32.mrb[0].mxu0
        %v2902 = vadd.f32 %v2648, %v2901
        %2903 = vmatprep.mubr.f32.mxu0 0.0
        %2904 = vmatmul.mubr.f32.gmra.mrb[0].mxu0 %v2722
        %v2905 = vpop.f32.mrb[0].mxu0
        %v2906 = vpop.f32.mrb[0].mxu0
        %v2907 = vadd.f32 %v2648, %v2906
        %2908 = vdwg.mxu0
        %v2909 = vxor.u32 %v2791, 2147483648
        %v2910 = vxor.u32 %v2796, 2147483648
        %v2911 = vxor.u32 %v2801, 2147483648
        %v2912 = vxor.u32 %v2806, 2147483648
        %v2913 = vxor.u32 %v2811, 2147483648
        %v2914 = vxor.u32 %v2816, 2147483648
        %v2915 = vxor.u32 %v2821, 2147483648
        %v2916 = vxor.u32 %v2826, 2147483648
        %v2917 = vxor.u32 %v2831, 2147483648
        %v2918 = vxor.u32 %v2836, 2147483648
        %v2919 = vxor.u32 %v2841, 2147483648
        %v2920 = vxor.u32 %v2846, 2147483648
        %v2921 = vxor.u32 %v2851, 2147483648
        %v2922 = vxor.u32 %v2856, 2147483648
        %v2923 = vxor.u32 %v2861, 2147483648
        %v2924 = vxor.u32 %v2866, 2147483648
        %v2925 = vxor.u32 %v2872, 2147483648
        %v2926 = vxor.u32 %v2877, 2147483648
        %v2927 = vxor.u32 %v2882, 2147483648
        %v2928 = vxor.u32 %v2887, 2147483648
        %v2929 = vxor.u32 %v2892, 2147483648
        %v2930 = vxor.u32 %v2897, 2147483648
        %v2931 = vxor.u32 %v2902, 2147483648
        %v2932 = vxor.u32 %v2907, 2147483648
        %v2933 = vmul.f32 %v2909, 1.442695
        %v2934 = vpow.pop %v2933
        %v2935 = vmul.f32 %v2910, 1.442695
        %v2936 = vpow.pop %v2935
        %v2937 = vmul.f32 %v2911, 1.442695
        %v2938 = vpow.pop %v2937
        %v2939 = vmul.f32 %v2912, 1.442695
        %v2940 = vpow.pop %v2939
        %v2941 = vmul.f32 %v2913, 1.442695
        %v2942 = vpow.pop %v2941
        %v2943 = vmul.f32 %v2914, 1.442695
        %v2944 = vpow.pop %v2943
        %v2945 = vmul.f32 %v2915, 1.442695
        %v2946 = vpow.pop %v2945
        %v2947 = vmul.f32 %v2916, 1.442695
        %v2948 = vpow.pop %v2947
        %v2949 = vmul.f32 %v2917, 1.442695
        %v2950 = vpow.pop %v2949
        %v2951 = vmul.f32 %v2918, 1.442695
        %v2952 = vpow.pop %v2951
        %v2953 = vmul.f32 %v2919, 1.442695
        %v2954 = vpow.pop %v2953
        %v2955 = vmul.f32 %v2920, 1.442695
        %v2956 = vpow.pop %v2955
        %v2957 = vmul.f32 %v2921, 1.442695
        %v2958 = vpow.pop %v2957
        %v2959 = vmul.f32 %v2922, 1.442695
        %v2960 = vpow.pop %v2959
        %v2961 = vmul.f32 %v2923, 1.442695
        %v2962 = vpow.pop %v2961
        %v2963 = vmul.f32 %v2924, 1.442695
        %v2964 = vpow.pop %v2963
        %v2965 = vmul.f32 %v2925, 1.442695
        %v2966 = vpow.pop %v2965
        %v2967 = vmul.f32 %v2926, 1.442695
        %v2968 = vpow.pop %v2967
        %v2969 = vmul.f32 %v2927, 1.442695
        %v2970 = vpow.pop %v2969
        %v2971 = vmul.f32 %v2928, 1.442695
        %v2972 = vpow.pop %v2971
        %v2973 = vmul.f32 %v2929, 1.442695
        %v2974 = vpow.pop %v2973
        %v2975 = vmul.f32 %v2930, 1.442695
        %v2976 = vpow.pop %v2975
        %v2977 = vmul.f32 %v2931, 1.442695
        %v2978 = vpow.pop %v2977
        %v2979 = vmul.f32 %v2932, 1.442695
        %v2980 = vpow.pop %v2979
        %v2981 = vadd.f32 %v2934, 1.0
        %v2982 = vadd.f32 %v2936, 1.0
        %v2983 = vadd.f32 %v2938, 1.0
        %v2984 = vadd.f32 %v2940, 1.0
        %v2985 = vadd.f32 %v2942, 1.0
        %v2986 = vadd.f32 %v2944, 1.0
        %v2987 = vadd.f32 %v2946, 1.0
        %v2988 = vadd.f32 %v2948, 1.0
        %v2989 = vadd.f32 %v2950, 1.0
        %v2990 = vadd.f32 %v2952, 1.0
        %v2991 = vadd.f32 %v2954, 1.0
        %v2992 = vadd.f32 %v2956, 1.0
        %v2993 = vadd.f32 %v2958, 1.0
        %v2994 = vadd.f32 %v2960, 1.0
        %v2995 = vadd.f32 %v2962, 1.0
        %v2996 = vadd.f32 %v2964, 1.0
        %v2997 = vadd.f32 %v2966, 1.0
        %v2998 = vadd.f32 %v2968, 1.0
        %v2999 = vadd.f32 %v2970, 1.0
        %v3000 = vadd.f32 %v2972, 1.0
        %v3001 = vadd.f32 %v2974, 1.0
        %v3002 = vadd.f32 %v2976, 1.0
        %v3003 = vadd.f32 %v2978, 1.0
        %v3004 = vadd.f32 %v2980, 1.0
        %v3005 = vrcp.pop %v2981
        %v3006 = vmul.f32 1.0, %v3005
        %v3007 = vrcp.pop %v2982
        %v3008 = vmul.f32 1.0, %v3007
        %v3009 = vrcp.pop %v2983
        %v3010 = vmul.f32 1.0, %v3009
        %v3011 = vrcp.pop %v2984
        %v3012 = vmul.f32 1.0, %v3011
        %v3013 = vrcp.pop %v2985
        %v3014 = vmul.f32 1.0, %v3013
        %v3015 = vrcp.pop %v2986
        %v3016 = vmul.f32 1.0, %v3015
        %v3017 = vrcp.pop %v2987
        %v3018 = vmul.f32 1.0, %v3017
        %v3019 = vrcp.pop %v2988
        %v3020 = vmul.f32 1.0, %v3019
        %v3021 = vrcp.pop %v2989
        %v3022 = vmul.f32 1.0, %v3021
        %v3023 = vrcp.pop %v2990
        %v3024 = vmul.f32 1.0, %v3023
        %v3025 = vrcp.pop %v2991
        %v3026 = vmul.f32 1.0, %v3025
        %v3027 = vrcp.pop %v2992
        %v3028 = vmul.f32 1.0, %v3027
        %v3029 = vrcp.pop %v2993
        %v3030 = vmul.f32 1.0, %v3029
        %v3031 = vrcp.pop %v2994
        %v3032 = vmul.f32 1.0, %v3031
        %v3033 = vrcp.pop %v2995
        %v3034 = vmul.f32 1.0, %v3033
        %v3035 = vrcp.pop %v2996
        %v3036 = vmul.f32 1.0, %v3035
        %v3037 = vrcp.pop %v2997
        %v3038 = vmul.f32 1.0, %v3037
        %v3039 = vrcp.pop %v2998
        %v3040 = vmul.f32 1.0, %v3039
        %v3041 = vrcp.pop %v2999
        %v3042 = vmul.f32 1.0, %v3041
        %v3043 = vrcp.pop %v3000
        %v3044 = vmul.f32 1.0, %v3043
        %v3045 = vrcp.pop %v3001
        %v3046 = vmul.f32 1.0, %v3045
        %v3047 = vrcp.pop %v3002
        %v3048 = vmul.f32 1.0, %v3047
        %v3049 = vrcp.pop %v3003
        %v3050 = vmul.f32 1.0, %v3049
        %v3051 = vrcp.pop %v3004
        %v3052 = vmul.f32 1.0, %v3051
        %v3069 = vcombine.high %v3006, %v3006
        %v3071 = vunpack.c.l.s4 1966171168
        %v3072 = vunpack.c.0.s8 %v3071
        %v3073 = vlaneseq
        %v3074 = vshrl.u32 %v3073, 7
        %v3075 = vsub.s32 %v3072, %v3074
        %v3076 = vrot.slane %v3006, %v3075
        %v3078 = vunpack.c.l.s4 1966171168
        %v3079 = vunpack.c.0.s8 %v3078
        %v3080 = vlaneseq
        %v3081 = vshrl.u32 %v3080, 7
        %v3082 = vsub.s32 %v3079, %v3081
        %v3083 = vrot.slane %v3069, %v3082
        %v3084 = vcombine.high %v3076, %v3076
        %v3085 = vcombine.high %v3083, %v3083
        %v3087 = vunpack.c.l.s4 1966171168
        %v3088 = vunpack.c.0.s8 %v3087
        %v3089 = vlaneseq
        %v3090 = vshrl.u32 %v3089, 7
        %v3091 = vsub.s32 %v3088, %v3090
        %v3092 = vrot.slane %v3076, %v3091
        %v3094 = vunpack.c.l.s4 1966171168
        %v3095 = vunpack.c.0.s8 %v3094
        %v3096 = vlaneseq
        %v3097 = vshrl.u32 %v3096, 7
        %v3098 = vsub.s32 %v3095, %v3097
        %v3099 = vrot.slane %v3083, %v3098
        %v3101 = vunpack.c.l.s4 1966171168
        %v3102 = vunpack.c.0.s8 %v3101
        %v3103 = vlaneseq
        %v3104 = vshrl.u32 %v3103, 7
        %v3105 = vsub.s32 %v3102, %v3104
        %v3106 = vrot.slane %v3084, %v3105
        %v3108 = vunpack.c.l.s4 1966171168
        %v3109 = vunpack.c.0.s8 %v3108
        %v3110 = vlaneseq
        %v3111 = vshrl.u32 %v3110, 7
        %v3112 = vsub.s32 %v3109, %v3111
        %v3113 = vrot.slane %v3085, %v3112
        %v3114 = vcombine.high %v3092, %v3092
        %v3115 = vcombine.high %v3099, %v3099
        %v3116 = vcombine.high %v3106, %v3106
        %v3117 = vcombine.high %v3113, %v3113
        %v3118 = vcombine.high %v3008, %v3008
        %v3120 = vunpack.c.l.s4 1966171168
        %v3121 = vunpack.c.0.s8 %v3120
        %v3122 = vlaneseq
        %v3123 = vshrl.u32 %v3122, 7
        %v3124 = vsub.s32 %v3121, %v3123
        %v3125 = vrot.slane %v3008, %v3124
        %v3127 = vunpack.c.l.s4 1966171168
        %v3128 = vunpack.c.0.s8 %v3127
        %v3129 = vlaneseq
        %v3130 = vshrl.u32 %v3129, 7
        %v3131 = vsub.s32 %v3128, %v3130
        %v3132 = vrot.slane %v3118, %v3131
        %v3133 = vcombine.high %v3125, %v3125
        %v3134 = vcombine.high %v3132, %v3132
        %v3136 = vunpack.c.l.s4 1966171168
        %v3137 = vunpack.c.0.s8 %v3136
        %v3138 = vlaneseq
        %v3139 = vshrl.u32 %v3138, 7
        %v3140 = vsub.s32 %v3137, %v3139
        %v3141 = vrot.slane %v3125, %v3140
        %v3143 = vunpack.c.l.s4 1966171168
        %v3144 = vunpack.c.0.s8 %v3143
        %v3145 = vlaneseq
        %v3146 = vshrl.u32 %v3145, 7
        %v3147 = vsub.s32 %v3144, %v3146
        %v3148 = vrot.slane %v3132, %v3147
        %v3150 = vunpack.c.l.s4 1966171168
        %v3151 = vunpack.c.0.s8 %v3150
        %v3152 = vlaneseq
        %v3153 = vshrl.u32 %v3152, 7
        %v3154 = vsub.s32 %v3151, %v3153
        %v3155 = vrot.slane %v3133, %v3154
        %v3157 = vunpack.c.l.s4 1966171168
        %v3158 = vunpack.c.0.s8 %v3157
        %v3159 = vlaneseq
        %v3160 = vshrl.u32 %v3159, 7
        %v3161 = vsub.s32 %v3158, %v3160
        %v3162 = vrot.slane %v3134, %v3161
        %v3163 = vcombine.high %v3141, %v3141
        %v3164 = vcombine.high %v3148, %v3148
        %v3165 = vcombine.high %v3155, %v3155
        %v3166 = vcombine.high %v3162, %v3162
        %v3167 = vcombine.high %v3010, %v3010
        %v3169 = vunpack.c.l.s4 1966171168
        %v3170 = vunpack.c.0.s8 %v3169
        %v3171 = vlaneseq
        %v3172 = vshrl.u32 %v3171, 7
        %v3173 = vsub.s32 %v3170, %v3172
        %v3174 = vrot.slane %v3010, %v3173
        %v3176 = vunpack.c.l.s4 1966171168
        %v3177 = vunpack.c.0.s8 %v3176
        %v3178 = vlaneseq
        %v3179 = vshrl.u32 %v3178, 7
        %v3180 = vsub.s32 %v3177, %v3179
        %v3181 = vrot.slane %v3167, %v3180
        %v3182 = vcombine.high %v3174, %v3174
        %v3183 = vcombine.high %v3181, %v3181
        %v3185 = vunpack.c.l.s4 1966171168
        %v3186 = vunpack.c.0.s8 %v3185
        %v3187 = vlaneseq
        %v3188 = vshrl.u32 %v3187, 7
        %v3189 = vsub.s32 %v3186, %v3188
        %v3190 = vrot.slane %v3174, %v3189
        %v3192 = vunpack.c.l.s4 1966171168
        %v3193 = vunpack.c.0.s8 %v3192
        %v3194 = vlaneseq
        %v3195 = vshrl.u32 %v3194, 7
        %v3196 = vsub.s32 %v3193, %v3195
        %v3197 = vrot.slane %v3181, %v3196
        %v3199 = vunpack.c.l.s4 1966171168
        %v3200 = vunpack.c.0.s8 %v3199
        %v3201 = vlaneseq
        %v3202 = vshrl.u32 %v3201, 7
        %v3203 = vsub.s32 %v3200, %v3202
        %v3204 = vrot.slane %v3182, %v3203
        %v3206 = vunpack.c.l.s4 1966171168
        %v3207 = vunpack.c.0.s8 %v3206
        %v3208 = vlaneseq
        %v3209 = vshrl.u32 %v3208, 7
        %v3210 = vsub.s32 %v3207, %v3209
        %v3211 = vrot.slane %v3183, %v3210
        %v3212 = vcombine.high %v3190, %v3190
        %v3213 = vcombine.high %v3197, %v3197
        %v3214 = vcombine.high %v3204, %v3204
        %v3215 = vcombine.high %v3211, %v3211
        %v3216 = vcombine.high %v3012, %v3012
        %v3218 = vunpack.c.l.s4 1966171168
        %v3219 = vunpack.c.0.s8 %v3218
        %v3220 = vlaneseq
        %v3221 = vshrl.u32 %v3220, 7
        %v3222 = vsub.s32 %v3219, %v3221
        %v3223 = vrot.slane %v3012, %v3222
        %v3225 = vunpack.c.l.s4 1966171168
        %v3226 = vunpack.c.0.s8 %v3225
        %v3227 = vlaneseq
        %v3228 = vshrl.u32 %v3227, 7
        %v3229 = vsub.s32 %v3226, %v3228
        %v3230 = vrot.slane %v3216, %v3229
        %v3231 = vcombine.high %v3223, %v3223
        %v3232 = vcombine.high %v3230, %v3230
        %v3234 = vunpack.c.l.s4 1966171168
        %v3235 = vunpack.c.0.s8 %v3234
        %v3236 = vlaneseq
        %v3237 = vshrl.u32 %v3236, 7
        %v3238 = vsub.s32 %v3235, %v3237
        %v3239 = vrot.slane %v3223, %v3238
        %v3241 = vunpack.c.l.s4 1966171168
        %v3242 = vunpack.c.0.s8 %v3241
        %v3243 = vlaneseq
        %v3244 = vshrl.u32 %v3243, 7
        %v3245 = vsub.s32 %v3242, %v3244
        %v3246 = vrot.slane %v3230, %v3245
        %v3248 = vunpack.c.l.s4 1966171168
        %v3249 = vunpack.c.0.s8 %v3248
        %v3250 = vlaneseq
        %v3251 = vshrl.u32 %v3250, 7
        %v3252 = vsub.s32 %v3249, %v3251
        %v3253 = vrot.slane %v3231, %v3252
        %v3255 = vunpack.c.l.s4 1966171168
        %v3256 = vunpack.c.0.s8 %v3255
        %v3257 = vlaneseq
        %v3258 = vshrl.u32 %v3257, 7
        %v3259 = vsub.s32 %v3256, %v3258
        %v3260 = vrot.slane %v3232, %v3259
        %v3261 = vcombine.high %v3239, %v3239
        %v3262 = vcombine.high %v3246, %v3246
        %v3263 = vcombine.high %v3253, %v3253
        %v3264 = vcombine.high %v3260, %v3260
        %v3265 = vcombine.high %v3014, %v3014
        %v3267 = vunpack.c.l.s4 1966171168
        %v3268 = vunpack.c.0.s8 %v3267
        %v3269 = vlaneseq
        %v3270 = vshrl.u32 %v3269, 7
        %v3271 = vsub.s32 %v3268, %v3270
        %v3272 = vrot.slane %v3014, %v3271
        %v3274 = vunpack.c.l.s4 1966171168
        %v3275 = vunpack.c.0.s8 %v3274
        %v3276 = vlaneseq
        %v3277 = vshrl.u32 %v3276, 7
        %v3278 = vsub.s32 %v3275, %v3277
        %v3279 = vrot.slane %v3265, %v3278
        %v3280 = vcombine.high %v3272, %v3272
        %v3281 = vcombine.high %v3279, %v3279
        %v3283 = vunpack.c.l.s4 1966171168
        %v3284 = vunpack.c.0.s8 %v3283
        %v3285 = vlaneseq
        %v3286 = vshrl.u32 %v3285, 7
        %v3287 = vsub.s32 %v3284, %v3286
        %v3288 = vrot.slane %v3272, %v3287
        %v3290 = vunpack.c.l.s4 1966171168
        %v3291 = vunpack.c.0.s8 %v3290
        %v3292 = vlaneseq
        %v3293 = vshrl.u32 %v3292, 7
        %v3294 = vsub.s32 %v3291, %v3293
        %v3295 = vrot.slane %v3279, %v3294
        %v3297 = vunpack.c.l.s4 1966171168
        %v3298 = vunpack.c.0.s8 %v3297
        %v3299 = vlaneseq
        %v3300 = vshrl.u32 %v3299, 7
        %v3301 = vsub.s32 %v3298, %v3300
        %v3302 = vrot.slane %v3280, %v3301
        %v3304 = vunpack.c.l.s4 1966171168
        %v3305 = vunpack.c.0.s8 %v3304
        %v3306 = vlaneseq
        %v3307 = vshrl.u32 %v3306, 7
        %v3308 = vsub.s32 %v3305, %v3307
        %v3309 = vrot.slane %v3281, %v3308
        %v3310 = vcombine.high %v3288, %v3288
        %v3311 = vcombine.high %v3295, %v3295
        %v3312 = vcombine.high %v3302, %v3302
        %v3313 = vcombine.high %v3309, %v3309
        %v3314 = vcombine.high %v3016, %v3016
        %v3316 = vunpack.c.l.s4 1966171168
        %v3317 = vunpack.c.0.s8 %v3316
        %v3318 = vlaneseq
        %v3319 = vshrl.u32 %v3318, 7
        %v3320 = vsub.s32 %v3317, %v3319
        %v3321 = vrot.slane %v3016, %v3320
        %v3323 = vunpack.c.l.s4 1966171168
        %v3324 = vunpack.c.0.s8 %v3323
        %v3325 = vlaneseq
        %v3326 = vshrl.u32 %v3325, 7
        %v3327 = vsub.s32 %v3324, %v3326
        %v3328 = vrot.slane %v3314, %v3327
        %v3329 = vcombine.high %v3321, %v3321
        %v3330 = vcombine.high %v3328, %v3328
        %v3332 = vunpack.c.l.s4 1966171168
        %v3333 = vunpack.c.0.s8 %v3332
        %v3334 = vlaneseq
        %v3335 = vshrl.u32 %v3334, 7
        %v3336 = vsub.s32 %v3333, %v3335
        %v3337 = vrot.slane %v3321, %v3336
        %v3339 = vunpack.c.l.s4 1966171168
        %v3340 = vunpack.c.0.s8 %v3339
        %v3341 = vlaneseq
        %v3342 = vshrl.u32 %v3341, 7
        %v3343 = vsub.s32 %v3340, %v3342
        %v3344 = vrot.slane %v3328, %v3343
        %v3346 = vunpack.c.l.s4 1966171168
        %v3347 = vunpack.c.0.s8 %v3346
        %v3348 = vlaneseq
        %v3349 = vshrl.u32 %v3348, 7
        %v3350 = vsub.s32 %v3347, %v3349
        %v3351 = vrot.slane %v3329, %v3350
        %v3353 = vunpack.c.l.s4 1966171168
        %v3354 = vunpack.c.0.s8 %v3353
        %v3355 = vlaneseq
        %v3356 = vshrl.u32 %v3355, 7
        %v3357 = vsub.s32 %v3354, %v3356
        %v3358 = vrot.slane %v3330, %v3357
        %v3359 = vcombine.high %v3337, %v3337
        %v3360 = vcombine.high %v3344, %v3344
        %v3361 = vcombine.high %v3351, %v3351
        %v3362 = vcombine.high %v3358, %v3358
        %v3363 = vcombine.high %v3018, %v3018
        %v3365 = vunpack.c.l.s4 1966171168
        %v3366 = vunpack.c.0.s8 %v3365
        %v3367 = vlaneseq
        %v3368 = vshrl.u32 %v3367, 7
        %v3369 = vsub.s32 %v3366, %v3368
        %v3370 = vrot.slane %v3018, %v3369
        %v3372 = vunpack.c.l.s4 1966171168
        %v3373 = vunpack.c.0.s8 %v3372
        %v3374 = vlaneseq
        %v3375 = vshrl.u32 %v3374, 7
        %v3376 = vsub.s32 %v3373, %v3375
        %v3377 = vrot.slane %v3363, %v3376
        %v3378 = vcombine.high %v3370, %v3370
        %v3379 = vcombine.high %v3377, %v3377
        %v3381 = vunpack.c.l.s4 1966171168
        %v3382 = vunpack.c.0.s8 %v3381
        %v3383 = vlaneseq
        %v3384 = vshrl.u32 %v3383, 7
        %v3385 = vsub.s32 %v3382, %v3384
        %v3386 = vrot.slane %v3370, %v3385
        %v3388 = vunpack.c.l.s4 1966171168
        %v3389 = vunpack.c.0.s8 %v3388
        %v3390 = vlaneseq
        %v3391 = vshrl.u32 %v3390, 7
        %v3392 = vsub.s32 %v3389, %v3391
        %v3393 = vrot.slane %v3377, %v3392
        %v3395 = vunpack.c.l.s4 1966171168
        %v3396 = vunpack.c.0.s8 %v3395
        %v3397 = vlaneseq
        %v3398 = vshrl.u32 %v3397, 7
        %v3399 = vsub.s32 %v3396, %v3398
        %v3400 = vrot.slane %v3378, %v3399
        %v3402 = vunpack.c.l.s4 1966171168
        %v3403 = vunpack.c.0.s8 %v3402
        %v3404 = vlaneseq
        %v3405 = vshrl.u32 %v3404, 7
        %v3406 = vsub.s32 %v3403, %v3405
        %v3407 = vrot.slane %v3379, %v3406
        %v3408 = vcombine.high %v3386, %v3386
        %v3409 = vcombine.high %v3393, %v3393
        %v3410 = vcombine.high %v3400, %v3400
        %v3411 = vcombine.high %v3407, %v3407
        %v3412 = vcombine.high %v3020, %v3020
        %v3414 = vunpack.c.l.s4 1966171168
        %v3415 = vunpack.c.0.s8 %v3414
        %v3416 = vlaneseq
        %v3417 = vshrl.u32 %v3416, 7
        %v3418 = vsub.s32 %v3415, %v3417
        %v3419 = vrot.slane %v3020, %v3418
        %v3421 = vunpack.c.l.s4 1966171168
        %v3422 = vunpack.c.0.s8 %v3421
        %v3423 = vlaneseq
        %v3424 = vshrl.u32 %v3423, 7
        %v3425 = vsub.s32 %v3422, %v3424
        %v3426 = vrot.slane %v3412, %v3425
        %v3427 = vcombine.high %v3419, %v3419
        %v3428 = vcombine.high %v3426, %v3426
        %v3430 = vunpack.c.l.s4 1966171168
        %v3431 = vunpack.c.0.s8 %v3430
        %v3432 = vlaneseq
        %v3433 = vshrl.u32 %v3432, 7
        %v3434 = vsub.s32 %v3431, %v3433
        %v3435 = vrot.slane %v3419, %v3434
        %v3437 = vunpack.c.l.s4 1966171168
        %v3438 = vunpack.c.0.s8 %v3437
        %v3439 = vlaneseq
        %v3440 = vshrl.u32 %v3439, 7
        %v3441 = vsub.s32 %v3438, %v3440
        %v3442 = vrot.slane %v3426, %v3441
        %v3444 = vunpack.c.l.s4 1966171168
        %v3445 = vunpack.c.0.s8 %v3444
        %v3446 = vlaneseq
        %v3447 = vshrl.u32 %v3446, 7
        %v3448 = vsub.s32 %v3445, %v3447
        %v3449 = vrot.slane %v3427, %v3448
        %v3451 = vunpack.c.l.s4 1966171168
        %v3452 = vunpack.c.0.s8 %v3451
        %v3453 = vlaneseq
        %v3454 = vshrl.u32 %v3453, 7
        %v3455 = vsub.s32 %v3452, %v3454
        %v3456 = vrot.slane %v3428, %v3455
        %v3457 = vcombine.high %v3435, %v3435
        %v3458 = vcombine.high %v3442, %v3442
        %v3459 = vcombine.high %v3449, %v3449
        %v3460 = vcombine.high %v3456, %v3456
        %v3461 = vcombine.high %v3022, %v3022
        %v3463 = vunpack.c.l.s4 1966171168
        %v3464 = vunpack.c.0.s8 %v3463
        %v3465 = vlaneseq
        %v3466 = vshrl.u32 %v3465, 7
        %v3467 = vsub.s32 %v3464, %v3466
        %v3468 = vrot.slane %v3022, %v3467
        %v3470 = vunpack.c.l.s4 1966171168
        %v3471 = vunpack.c.0.s8 %v3470
        %v3472 = vlaneseq
        %v3473 = vshrl.u32 %v3472, 7
        %v3474 = vsub.s32 %v3471, %v3473
        %v3475 = vrot.slane %v3461, %v3474
        %v3476 = vcombine.high %v3468, %v3468
        %v3477 = vcombine.high %v3475, %v3475
        %v3479 = vunpack.c.l.s4 1966171168
        %v3480 = vunpack.c.0.s8 %v3479
        %v3481 = vlaneseq
        %v3482 = vshrl.u32 %v3481, 7
        %v3483 = vsub.s32 %v3480, %v3482
        %v3484 = vrot.slane %v3468, %v3483
        %v3486 = vunpack.c.l.s4 1966171168
        %v3487 = vunpack.c.0.s8 %v3486
        %v3488 = vlaneseq
        %v3489 = vshrl.u32 %v3488, 7
        %v3490 = vsub.s32 %v3487, %v3489
        %v3491 = vrot.slane %v3475, %v3490
        %v3493 = vunpack.c.l.s4 1966171168
        %v3494 = vunpack.c.0.s8 %v3493
        %v3495 = vlaneseq
        %v3496 = vshrl.u32 %v3495, 7
        %v3497 = vsub.s32 %v3494, %v3496
        %v3498 = vrot.slane %v3476, %v3497
        %v3500 = vunpack.c.l.s4 1966171168
        %v3501 = vunpack.c.0.s8 %v3500
        %v3502 = vlaneseq
        %v3503 = vshrl.u32 %v3502, 7
        %v3504 = vsub.s32 %v3501, %v3503
        %v3505 = vrot.slane %v3477, %v3504
        %v3506 = vcombine.high %v3484, %v3484
        %v3507 = vcombine.high %v3491, %v3491
        %v3508 = vcombine.high %v3498, %v3498
        %v3509 = vcombine.high %v3505, %v3505
        %v3510 = vcombine.high %v3024, %v3024
        %v3512 = vunpack.c.l.s4 1966171168
        %v3513 = vunpack.c.0.s8 %v3512
        %v3514 = vlaneseq
        %v3515 = vshrl.u32 %v3514, 7
        %v3516 = vsub.s32 %v3513, %v3515
        %v3517 = vrot.slane %v3024, %v3516
        %v3519 = vunpack.c.l.s4 1966171168
        %v3520 = vunpack.c.0.s8 %v3519
        %v3521 = vlaneseq
        %v3522 = vshrl.u32 %v3521, 7
        %v3523 = vsub.s32 %v3520, %v3522
        %v3524 = vrot.slane %v3510, %v3523
        %v3525 = vcombine.high %v3517, %v3517
        %v3526 = vcombine.high %v3524, %v3524
        %v3528 = vunpack.c.l.s4 1966171168
        %v3529 = vunpack.c.0.s8 %v3528
        %v3530 = vlaneseq
        %v3531 = vshrl.u32 %v3530, 7
        %v3532 = vsub.s32 %v3529, %v3531
        %v3533 = vrot.slane %v3517, %v3532
        %v3535 = vunpack.c.l.s4 1966171168
        %v3536 = vunpack.c.0.s8 %v3535
        %v3537 = vlaneseq
        %v3538 = vshrl.u32 %v3537, 7
        %v3539 = vsub.s32 %v3536, %v3538
        %v3540 = vrot.slane %v3524, %v3539
        %v3542 = vunpack.c.l.s4 1966171168
        %v3543 = vunpack.c.0.s8 %v3542
        %v3544 = vlaneseq
        %v3545 = vshrl.u32 %v3544, 7
        %v3546 = vsub.s32 %v3543, %v3545
        %v3547 = vrot.slane %v3525, %v3546
        %v3549 = vunpack.c.l.s4 1966171168
        %v3550 = vunpack.c.0.s8 %v3549
        %v3551 = vlaneseq
        %v3552 = vshrl.u32 %v3551, 7
        %v3553 = vsub.s32 %v3550, %v3552
        %v3554 = vrot.slane %v3526, %v3553
        %v3555 = vcombine.high %v3533, %v3533
        %v3556 = vcombine.high %v3540, %v3540
        %v3557 = vcombine.high %v3547, %v3547
        %v3558 = vcombine.high %v3554, %v3554
        %v3559 = vcombine.high %v3026, %v3026
        %v3561 = vunpack.c.l.s4 1966171168
        %v3562 = vunpack.c.0.s8 %v3561
        %v3563 = vlaneseq
        %v3564 = vshrl.u32 %v3563, 7
        %v3565 = vsub.s32 %v3562, %v3564
        %v3566 = vrot.slane %v3026, %v3565
        %v3568 = vunpack.c.l.s4 1966171168
        %v3569 = vunpack.c.0.s8 %v3568
        %v3570 = vlaneseq
        %v3571 = vshrl.u32 %v3570, 7
        %v3572 = vsub.s32 %v3569, %v3571
        %v3573 = vrot.slane %v3559, %v3572
        %v3574 = vcombine.high %v3566, %v3566
        %v3575 = vcombine.high %v3573, %v3573
        %v3577 = vunpack.c.l.s4 1966171168
        %v3578 = vunpack.c.0.s8 %v3577
        %v3579 = vlaneseq
        %v3580 = vshrl.u32 %v3579, 7
        %v3581 = vsub.s32 %v3578, %v3580
        %v3582 = vrot.slane %v3566, %v3581
        %v3584 = vunpack.c.l.s4 1966171168
        %v3585 = vunpack.c.0.s8 %v3584
        %v3586 = vlaneseq
        %v3587 = vshrl.u32 %v3586, 7
        %v3588 = vsub.s32 %v3585, %v3587
        %v3589 = vrot.slane %v3573, %v3588
        %v3591 = vunpack.c.l.s4 1966171168
        %v3592 = vunpack.c.0.s8 %v3591
        %v3593 = vlaneseq
        %v3594 = vshrl.u32 %v3593, 7
        %v3595 = vsub.s32 %v3592, %v3594
        %v3596 = vrot.slane %v3574, %v3595
        %v3598 = vunpack.c.l.s4 1966171168
        %v3599 = vunpack.c.0.s8 %v3598
        %v3600 = vlaneseq
        %v3601 = vshrl.u32 %v3600, 7
        %v3602 = vsub.s32 %v3599, %v3601
        %v3603 = vrot.slane %v3575, %v3602
        %v3604 = vcombine.high %v3582, %v3582
        %v3605 = vcombine.high %v3589, %v3589
        %v3606 = vcombine.high %v3596, %v3596
        %v3607 = vcombine.high %v3603, %v3603
        %v3608 = vcombine.high %v3028, %v3028
        %v3610 = vunpack.c.l.s4 1966171168
        %v3611 = vunpack.c.0.s8 %v3610
        %v3612 = vlaneseq
        %v3613 = vshrl.u32 %v3612, 7
        %v3614 = vsub.s32 %v3611, %v3613
        %v3615 = vrot.slane %v3028, %v3614
        %v3617 = vunpack.c.l.s4 1966171168
        %v3618 = vunpack.c.0.s8 %v3617
        %v3619 = vlaneseq
        %v3620 = vshrl.u32 %v3619, 7
        %v3621 = vsub.s32 %v3618, %v3620
        %v3622 = vrot.slane %v3608, %v3621
        %v3623 = vcombine.high %v3615, %v3615
        %v3624 = vcombine.high %v3622, %v3622
        %v3626 = vunpack.c.l.s4 1966171168
        %v3627 = vunpack.c.0.s8 %v3626
        %v3628 = vlaneseq
        %v3629 = vshrl.u32 %v3628, 7
        %v3630 = vsub.s32 %v3627, %v3629
        %v3631 = vrot.slane %v3615, %v3630
        %v3633 = vunpack.c.l.s4 1966171168
        %v3634 = vunpack.c.0.s8 %v3633
        %v3635 = vlaneseq
        %v3636 = vshrl.u32 %v3635, 7
        %v3637 = vsub.s32 %v3634, %v3636
        %v3638 = vrot.slane %v3622, %v3637
        %v3640 = vunpack.c.l.s4 1966171168
        %v3641 = vunpack.c.0.s8 %v3640
        %v3642 = vlaneseq
        %v3643 = vshrl.u32 %v3642, 7
        %v3644 = vsub.s32 %v3641, %v3643
        %v3645 = vrot.slane %v3623, %v3644
        %v3647 = vunpack.c.l.s4 1966171168
        %v3648 = vunpack.c.0.s8 %v3647
        %v3649 = vlaneseq
        %v3650 = vshrl.u32 %v3649, 7
        %v3651 = vsub.s32 %v3648, %v3650
        %v3652 = vrot.slane %v3624, %v3651
        %v3653 = vcombine.high %v3631, %v3631
        %v3654 = vcombine.high %v3638, %v3638
        %v3655 = vcombine.high %v3645, %v3645
        %v3656 = vcombine.high %v3652, %v3652
        %v3657 = vcombine.high %v3030, %v3030
        %v3659 = vunpack.c.l.s4 1966171168
        %v3660 = vunpack.c.0.s8 %v3659
        %v3661 = vlaneseq
        %v3662 = vshrl.u32 %v3661, 7
        %v3663 = vsub.s32 %v3660, %v3662
        %v3664 = vrot.slane %v3030, %v3663
        %v3666 = vunpack.c.l.s4 1966171168
        %v3667 = vunpack.c.0.s8 %v3666
        %v3668 = vlaneseq
        %v3669 = vshrl.u32 %v3668, 7
        %v3670 = vsub.s32 %v3667, %v3669
        %v3671 = vrot.slane %v3657, %v3670
        %v3672 = vcombine.high %v3664, %v3664
        %v3673 = vcombine.high %v3671, %v3671
        %v3675 = vunpack.c.l.s4 1966171168
        %v3676 = vunpack.c.0.s8 %v3675
        %v3677 = vlaneseq
        %v3678 = vshrl.u32 %v3677, 7
        %v3679 = vsub.s32 %v3676, %v3678
        %v3680 = vrot.slane %v3664, %v3679
        %v3682 = vunpack.c.l.s4 1966171168
        %v3683 = vunpack.c.0.s8 %v3682
        %v3684 = vlaneseq
        %v3685 = vshrl.u32 %v3684, 7
        %v3686 = vsub.s32 %v3683, %v3685
        %v3687 = vrot.slane %v3671, %v3686
        %v3689 = vunpack.c.l.s4 1966171168
        %v3690 = vunpack.c.0.s8 %v3689
        %v3691 = vlaneseq
        %v3692 = vshrl.u32 %v3691, 7
        %v3693 = vsub.s32 %v3690, %v3692
        %v3694 = vrot.slane %v3672, %v3693
        %v3696 = vunpack.c.l.s4 1966171168
        %v3697 = vunpack.c.0.s8 %v3696
        %v3698 = vlaneseq
        %v3699 = vshrl.u32 %v3698, 7
        %v3700 = vsub.s32 %v3697, %v3699
        %v3701 = vrot.slane %v3673, %v3700
        %v3702 = vcombine.high %v3680, %v3680
        %v3703 = vcombine.high %v3687, %v3687
        %v3704 = vcombine.high %v3694, %v3694
        %v3705 = vcombine.high %v3701, %v3701
        %v3706 = vcombine.high %v3032, %v3032
        %v3708 = vunpack.c.l.s4 1966171168
        %v3709 = vunpack.c.0.s8 %v3708
        %v3710 = vlaneseq
        %v3711 = vshrl.u32 %v3710, 7
        %v3712 = vsub.s32 %v3709, %v3711
        %v3713 = vrot.slane %v3032, %v3712
        %v3715 = vunpack.c.l.s4 1966171168
        %v3716 = vunpack.c.0.s8 %v3715
        %v3717 = vlaneseq
        %v3718 = vshrl.u32 %v3717, 7
        %v3719 = vsub.s32 %v3716, %v3718
        %v3720 = vrot.slane %v3706, %v3719
        %v3721 = vcombine.high %v3713, %v3713
        %v3722 = vcombine.high %v3720, %v3720
        %v3724 = vunpack.c.l.s4 1966171168
        %v3725 = vunpack.c.0.s8 %v3724
        %v3726 = vlaneseq
        %v3727 = vshrl.u32 %v3726, 7
        %v3728 = vsub.s32 %v3725, %v3727
        %v3729 = vrot.slane %v3713, %v3728
        %v3731 = vunpack.c.l.s4 1966171168
        %v3732 = vunpack.c.0.s8 %v3731
        %v3733 = vlaneseq
        %v3734 = vshrl.u32 %v3733, 7
        %v3735 = vsub.s32 %v3732, %v3734
        %v3736 = vrot.slane %v3720, %v3735
        %v3738 = vunpack.c.l.s4 1966171168
        %v3739 = vunpack.c.0.s8 %v3738
        %v3740 = vlaneseq
        %v3741 = vshrl.u32 %v3740, 7
        %v3742 = vsub.s32 %v3739, %v3741
        %v3743 = vrot.slane %v3721, %v3742
        %v3745 = vunpack.c.l.s4 1966171168
        %v3746 = vunpack.c.0.s8 %v3745
        %v3747 = vlaneseq
        %v3748 = vshrl.u32 %v3747, 7
        %v3749 = vsub.s32 %v3746, %v3748
        %v3750 = vrot.slane %v3722, %v3749
        %v3751 = vcombine.high %v3729, %v3729
        %v3752 = vcombine.high %v3736, %v3736
        %v3753 = vcombine.high %v3743, %v3743
        %v3754 = vcombine.high %v3750, %v3750
        %v3755 = vcombine.high %v3034, %v3034
        %v3757 = vunpack.c.l.s4 1966171168
        %v3758 = vunpack.c.0.s8 %v3757
        %v3759 = vlaneseq
        %v3760 = vshrl.u32 %v3759, 7
        %v3761 = vsub.s32 %v3758, %v3760
        %v3762 = vrot.slane %v3034, %v3761
        %v3764 = vunpack.c.l.s4 1966171168
        %v3765 = vunpack.c.0.s8 %v3764
        %v3766 = vlaneseq
        %v3767 = vshrl.u32 %v3766, 7
        %v3768 = vsub.s32 %v3765, %v3767
        %v3769 = vrot.slane %v3755, %v3768
        %v3770 = vcombine.high %v3762, %v3762
        %v3771 = vcombine.high %v3769, %v3769
        %v3773 = vunpack.c.l.s4 1966171168
        %v3774 = vunpack.c.0.s8 %v3773
        %v3775 = vlaneseq
        %v3776 = vshrl.u32 %v3775, 7
        %v3777 = vsub.s32 %v3774, %v3776
        %v3778 = vrot.slane %v3762, %v3777
        %v3780 = vunpack.c.l.s4 1966171168
        %v3781 = vunpack.c.0.s8 %v3780
        %v3782 = vlaneseq
        %v3783 = vshrl.u32 %v3782, 7
        %v3784 = vsub.s32 %v3781, %v3783
        %v3785 = vrot.slane %v3769, %v3784
        %v3787 = vunpack.c.l.s4 1966171168
        %v3788 = vunpack.c.0.s8 %v3787
        %v3789 = vlaneseq
        %v3790 = vshrl.u32 %v3789, 7
        %v3791 = vsub.s32 %v3788, %v3790
        %v3792 = vrot.slane %v3770, %v3791
        %v3794 = vunpack.c.l.s4 1966171168
        %v3795 = vunpack.c.0.s8 %v3794
        %v3796 = vlaneseq
        %v3797 = vshrl.u32 %v3796, 7
        %v3798 = vsub.s32 %v3795, %v3797
        %v3799 = vrot.slane %v3771, %v3798
        %v3800 = vcombine.high %v3778, %v3778
        %v3801 = vcombine.high %v3785, %v3785
        %v3802 = vcombine.high %v3792, %v3792
        %v3803 = vcombine.high %v3799, %v3799
        %v3804 = vcombine.high %v3036, %v3036
        %v3806 = vunpack.c.l.s4 1966171168
        %v3807 = vunpack.c.0.s8 %v3806
        %v3808 = vlaneseq
        %v3809 = vshrl.u32 %v3808, 7
        %v3810 = vsub.s32 %v3807, %v3809
        %v3811 = vrot.slane %v3036, %v3810
        %v3813 = vunpack.c.l.s4 1966171168
        %v3814 = vunpack.c.0.s8 %v3813
        %v3815 = vlaneseq
        %v3816 = vshrl.u32 %v3815, 7
        %v3817 = vsub.s32 %v3814, %v3816
        %v3818 = vrot.slane %v3804, %v3817
        %v3819 = vcombine.high %v3811, %v3811
        %v3820 = vcombine.high %v3818, %v3818
        %v3822 = vunpack.c.l.s4 1966171168
        %v3823 = vunpack.c.0.s8 %v3822
        %v3824 = vlaneseq
        %v3825 = vshrl.u32 %v3824, 7
        %v3826 = vsub.s32 %v3823, %v3825
        %v3827 = vrot.slane %v3811, %v3826
        %v3829 = vunpack.c.l.s4 1966171168
        %v3830 = vunpack.c.0.s8 %v3829
        %v3831 = vlaneseq
        %v3832 = vshrl.u32 %v3831, 7
        %v3833 = vsub.s32 %v3830, %v3832
        %v3834 = vrot.slane %v3818, %v3833
        %v3836 = vunpack.c.l.s4 1966171168
        %v3837 = vunpack.c.0.s8 %v3836
        %v3838 = vlaneseq
        %v3839 = vshrl.u32 %v3838, 7
        %v3840 = vsub.s32 %v3837, %v3839
        %v3841 = vrot.slane %v3819, %v3840
        %v3843 = vunpack.c.l.s4 1966171168
        %v3844 = vunpack.c.0.s8 %v3843
        %v3845 = vlaneseq
        %v3846 = vshrl.u32 %v3845, 7
        %v3847 = vsub.s32 %v3844, %v3846
        %v3848 = vrot.slane %v3820, %v3847
        %v3849 = vcombine.high %v3827, %v3827
        %v3850 = vcombine.high %v3834, %v3834
        %v3851 = vcombine.high %v3841, %v3841
        %v3852 = vcombine.high %v3848, %v3848
        %v3853 = vlaneseq
        %v3854 = vshrl.u32 %v3853, 7
        %v3855 = vsub.s32 0, %v3854
        %v3856 = vrot.slane %v3092, %v3855
        %v3857 = vlaneseq
        %v3858 = vshrl.u32 %v3857, 7
        %v3859 = vsub.s32 0, %v3858
        %v3860 = vrot.slane %v3106, %v3859
        %v3861 = vlaneseq
        %v3862 = vshrl.u32 %v3861, 7
        %v3863 = vsub.s32 0, %v3862
        %v3864 = vrot.slane %v3114, %v3863
        %v3865 = vlaneseq
        %v3866 = vshrl.u32 %v3865, 7
        %v3867 = vsub.s32 0, %v3866
        %v3868 = vrot.slane %v3116, %v3867
        %v3869 = vlaneseq
        %v3870 = vshrl.u32 %v3869, 7
        %v3871 = vsub.s32 0, %v3870
        %v3872 = vrot.slane %v3099, %v3871
        %v3873 = vlaneseq
        %v3874 = vshrl.u32 %v3873, 7
        %v3875 = vsub.s32 0, %v3874
        %v3876 = vrot.slane %v3113, %v3875
        %v3877 = vlaneseq
        %v3878 = vshrl.u32 %v3877, 7
        %v3879 = vsub.s32 0, %v3878
        %v3880 = vrot.slane %v3115, %v3879
        %v3881 = vlaneseq
        %v3882 = vshrl.u32 %v3881, 7
        %v3883 = vsub.s32 0, %v3882
        %v3884 = vrot.slane %v3117, %v3883
        %v3885 = vlaneseq
        %v3886 = vshrl.u32 %v3885, 7
        %v3887 = vsub.s32 0, %v3886
        %v3888 = vrot.slane %v3141, %v3887
        %v3889 = vlaneseq
        %v3890 = vshrl.u32 %v3889, 7
        %v3891 = vsub.s32 0, %v3890
        %v3892 = vrot.slane %v3155, %v3891
        %v3893 = vlaneseq
        %v3894 = vshrl.u32 %v3893, 7
        %v3895 = vsub.s32 0, %v3894
        %v3896 = vrot.slane %v3163, %v3895
        %v3897 = vlaneseq
        %v3898 = vshrl.u32 %v3897, 7
        %v3899 = vsub.s32 0, %v3898
        %v3900 = vrot.slane %v3165, %v3899
        %v3901 = vlaneseq
        %v3902 = vshrl.u32 %v3901, 7
        %v3903 = vsub.s32 0, %v3902
        %v3904 = vrot.slane %v3148, %v3903
        %v3905 = vlaneseq
        %v3906 = vshrl.u32 %v3905, 7
        %v3907 = vsub.s32 0, %v3906
        %v3908 = vrot.slane %v3162, %v3907
        %v3909 = vlaneseq
        %v3910 = vshrl.u32 %v3909, 7
        %v3911 = vsub.s32 0, %v3910
        %v3912 = vrot.slane %v3164, %v3911
        %v3913 = vlaneseq
        %v3914 = vshrl.u32 %v3913, 7
        %v3915 = vsub.s32 0, %v3914
        %v3916 = vrot.slane %v3166, %v3915
        %v3917 = vlaneseq
        %v3918 = vshrl.u32 %v3917, 7
        %v3919 = vsub.s32 0, %v3918
        %v3920 = vrot.slane %v3190, %v3919
        %v3921 = vlaneseq
        %v3922 = vshrl.u32 %v3921, 7
        %v3923 = vsub.s32 0, %v3922
        %v3924 = vrot.slane %v3204, %v3923
        %v3925 = vlaneseq
        %v3926 = vshrl.u32 %v3925, 7
        %v3927 = vsub.s32 0, %v3926
        %v3928 = vrot.slane %v3212, %v3927
        %v3929 = vlaneseq
        %v3930 = vshrl.u32 %v3929, 7
        %v3931 = vsub.s32 0, %v3930
        %v3932 = vrot.slane %v3214, %v3931
        %v3933 = vlaneseq
        %v3934 = vshrl.u32 %v3933, 7
        %v3935 = vsub.s32 0, %v3934
        %v3936 = vrot.slane %v3197, %v3935
        %v3937 = vlaneseq
        %v3938 = vshrl.u32 %v3937, 7
        %v3939 = vsub.s32 0, %v3938
        %v3940 = vrot.slane %v3211, %v3939
        %v3941 = vlaneseq
        %v3942 = vshrl.u32 %v3941, 7
        %v3943 = vsub.s32 0, %v3942
        %v3944 = vrot.slane %v3213, %v3943
        %v3945 = vlaneseq
        %v3946 = vshrl.u32 %v3945, 7
        %v3947 = vsub.s32 0, %v3946
        %v3948 = vrot.slane %v3215, %v3947
        %v3949 = vlaneseq
        %v3950 = vshrl.u32 %v3949, 7
        %v3951 = vsub.s32 0, %v3950
        %v3952 = vrot.slane %v3239, %v3951
        %v3953 = vlaneseq
        %v3954 = vshrl.u32 %v3953, 7
        %v3955 = vsub.s32 0, %v3954
        %v3956 = vrot.slane %v3253, %v3955
        %v3957 = vlaneseq
        %v3958 = vshrl.u32 %v3957, 7
        %v3959 = vsub.s32 0, %v3958
        %v3960 = vrot.slane %v3261, %v3959
        %v3961 = vlaneseq
        %v3962 = vshrl.u32 %v3961, 7
        %v3963 = vsub.s32 0, %v3962
        %v3964 = vrot.slane %v3263, %v3963
        %v3965 = vlaneseq
        %v3966 = vshrl.u32 %v3965, 7
        %v3967 = vsub.s32 0, %v3966
        %v3968 = vrot.slane %v3246, %v3967
        %v3969 = vlaneseq
        %v3970 = vshrl.u32 %v3969, 7
        %v3971 = vsub.s32 0, %v3970
        %v3972 = vrot.slane %v3260, %v3971
        %v3973 = vlaneseq
        %v3974 = vshrl.u32 %v3973, 7
        %v3975 = vsub.s32 0, %v3974
        %v3976 = vrot.slane %v3262, %v3975
        %v3977 = vlaneseq
        %v3978 = vshrl.u32 %v3977, 7
        %v3979 = vsub.s32 0, %v3978
        %v3980 = vrot.slane %v3264, %v3979
        %v3981 = vlaneseq
        %v3982 = vshrl.u32 %v3981, 7
        %v3983 = vsub.s32 0, %v3982
        %v3984 = vrot.slane %v3288, %v3983
        %v3985 = vlaneseq
        %v3986 = vshrl.u32 %v3985, 7
        %v3987 = vsub.s32 0, %v3986
        %v3988 = vrot.slane %v3302, %v3987
        %v3989 = vlaneseq
        %v3990 = vshrl.u32 %v3989, 7
        %v3991 = vsub.s32 0, %v3990
        %v3992 = vrot.slane %v3310, %v3991
        %v3993 = vlaneseq
        %v3994 = vshrl.u32 %v3993, 7
        %v3995 = vsub.s32 0, %v3994
        %v3996 = vrot.slane %v3312, %v3995
        %v3997 = vlaneseq
        %v3998 = vshrl.u32 %v3997, 7
        %v3999 = vsub.s32 0, %v3998
        %v4000 = vrot.slane %v3295, %v3999
        %v4001 = vlaneseq
        %v4002 = vshrl.u32 %v4001, 7
        %v4003 = vsub.s32 0, %v4002
        %v4004 = vrot.slane %v3309, %v4003
        %v4005 = vlaneseq
        %v4006 = vshrl.u32 %v4005, 7
        %v4007 = vsub.s32 0, %v4006
        %v4008 = vrot.slane %v3311, %v4007
        %v4009 = vlaneseq
        %v4010 = vshrl.u32 %v4009, 7
        %v4011 = vsub.s32 0, %v4010
        %v4012 = vrot.slane %v3313, %v4011
        %v4013 = vlaneseq
        %v4014 = vshrl.u32 %v4013, 7
        %v4015 = vsub.s32 0, %v4014
        %v4016 = vrot.slane %v3337, %v4015
        %v4017 = vlaneseq
        %v4018 = vshrl.u32 %v4017, 7
        %v4019 = vsub.s32 0, %v4018
        %v4020 = vrot.slane %v3351, %v4019
        %v4021 = vlaneseq
        %v4022 = vshrl.u32 %v4021, 7
        %v4023 = vsub.s32 0, %v4022
        %v4024 = vrot.slane %v3359, %v4023
        %v4025 = vlaneseq
        %v4026 = vshrl.u32 %v4025, 7
        %v4027 = vsub.s32 0, %v4026
        %v4028 = vrot.slane %v3361, %v4027
        %v4029 = vlaneseq
        %v4030 = vshrl.u32 %v4029, 7
        %v4031 = vsub.s32 0, %v4030
        %v4032 = vrot.slane %v3344, %v4031
        %v4033 = vlaneseq
        %v4034 = vshrl.u32 %v4033, 7
        %v4035 = vsub.s32 0, %v4034
        %v4036 = vrot.slane %v3358, %v4035
        %v4037 = vlaneseq
        %v4038 = vshrl.u32 %v4037, 7
        %v4039 = vsub.s32 0, %v4038
        %v4040 = vrot.slane %v3360, %v4039
        %v4041 = vlaneseq
        %v4042 = vshrl.u32 %v4041, 7
        %v4043 = vsub.s32 0, %v4042
        %v4044 = vrot.slane %v3362, %v4043
        %v4045 = vlaneseq
        %v4046 = vshrl.u32 %v4045, 7
        %v4047 = vsub.s32 0, %v4046
        %v4048 = vrot.slane %v3386, %v4047
        %v4049 = vlaneseq
        %v4050 = vshrl.u32 %v4049, 7
        %v4051 = vsub.s32 0, %v4050
        %v4052 = vrot.slane %v3400, %v4051
        %v4053 = vlaneseq
        %v4054 = vshrl.u32 %v4053, 7
        %v4055 = vsub.s32 0, %v4054
        %v4056 = vrot.slane %v3408, %v4055
        %v4057 = vlaneseq
        %v4058 = vshrl.u32 %v4057, 7
        %v4059 = vsub.s32 0, %v4058
        %v4060 = vrot.slane %v3410, %v4059
        %v4061 = vlaneseq
        %v4062 = vshrl.u32 %v4061, 7
        %v4063 = vsub.s32 0, %v4062
        %v4064 = vrot.slane %v3393, %v4063
        %v4065 = vlaneseq
        %v4066 = vshrl.u32 %v4065, 7
        %v4067 = vsub.s32 0, %v4066
        %v4068 = vrot.slane %v3407, %v4067
        %v4069 = vlaneseq
        %v4070 = vshrl.u32 %v4069, 7
        %v4071 = vsub.s32 0, %v4070
        %v4072 = vrot.slane %v3409, %v4071
        %v4073 = vlaneseq
        %v4074 = vshrl.u32 %v4073, 7
        %v4075 = vsub.s32 0, %v4074
        %v4076 = vrot.slane %v3411, %v4075
        %v4077 = vlaneseq
        %v4078 = vshrl.u32 %v4077, 7
        %v4079 = vsub.s32 0, %v4078
        %v4080 = vrot.slane %v3435, %v4079
        %v4081 = vlaneseq
        %v4082 = vshrl.u32 %v4081, 7
        %v4083 = vsub.s32 0, %v4082
        %v4084 = vrot.slane %v3449, %v4083
        %v4085 = vlaneseq
        %v4086 = vshrl.u32 %v4085, 7
        %v4087 = vsub.s32 0, %v4086
        %v4088 = vrot.slane %v3457, %v4087
        %v4089 = vlaneseq
        %v4090 = vshrl.u32 %v4089, 7
        %v4091 = vsub.s32 0, %v4090
        %v4092 = vrot.slane %v3459, %v4091
        %v4093 = vlaneseq
        %v4094 = vshrl.u32 %v4093, 7
        %v4095 = vsub.s32 0, %v4094
        %v4096 = vrot.slane %v3442, %v4095
        %v4097 = vlaneseq
        %v4098 = vshrl.u32 %v4097, 7
        %v4099 = vsub.s32 0, %v4098
        %v4100 = vrot.slane %v3456, %v4099
        %v4101 = vlaneseq
        %v4102 = vshrl.u32 %v4101, 7
        %v4103 = vsub.s32 0, %v4102
        %v4104 = vrot.slane %v3458, %v4103
        %v4105 = vlaneseq
        %v4106 = vshrl.u32 %v4105, 7
        %v4107 = vsub.s32 0, %v4106
        %v4108 = vrot.slane %v3460, %v4107
        %v4109 = vlaneseq
        %v4110 = vshrl.u32 %v4109, 7
        %v4111 = vsub.s32 0, %v4110
        %v4112 = vrot.slane %v3484, %v4111
        %v4113 = vlaneseq
        %v4114 = vshrl.u32 %v4113, 7
        %v4115 = vsub.s32 0, %v4114
        %v4116 = vrot.slane %v3498, %v4115
        %v4117 = vlaneseq
        %v4118 = vshrl.u32 %v4117, 7
        %v4119 = vsub.s32 0, %v4118
        %v4120 = vrot.slane %v3506, %v4119
        %v4121 = vlaneseq
        %v4122 = vshrl.u32 %v4121, 7
        %v4123 = vsub.s32 0, %v4122
        %v4124 = vrot.slane %v3508, %v4123
        %v4125 = vlaneseq
        %v4126 = vshrl.u32 %v4125, 7
        %v4127 = vsub.s32 0, %v4126
        %v4128 = vrot.slane %v3491, %v4127
        %v4129 = vlaneseq
        %v4130 = vshrl.u32 %v4129, 7
        %v4131 = vsub.s32 0, %v4130
        %v4132 = vrot.slane %v3505, %v4131
        %v4133 = vlaneseq
        %v4134 = vshrl.u32 %v4133, 7
        %v4135 = vsub.s32 0, %v4134
        %v4136 = vrot.slane %v3507, %v4135
        %v4137 = vlaneseq
        %v4138 = vshrl.u32 %v4137, 7
        %v4139 = vsub.s32 0, %v4138
        %v4140 = vrot.slane %v3509, %v4139
        %v4141 = vlaneseq
        %v4142 = vshrl.u32 %v4141, 7
        %v4143 = vsub.s32 0, %v4142
        %v4144 = vrot.slane %v3533, %v4143
        %v4145 = vlaneseq
        %v4146 = vshrl.u32 %v4145, 7
        %v4147 = vsub.s32 0, %v4146
        %v4148 = vrot.slane %v3547, %v4147
        %v4149 = vlaneseq
        %v4150 = vshrl.u32 %v4149, 7
        %v4151 = vsub.s32 0, %v4150
        %v4152 = vrot.slane %v3555, %v4151
        %v4153 = vlaneseq
        %v4154 = vshrl.u32 %v4153, 7
        %v4155 = vsub.s32 0, %v4154
        %v4156 = vrot.slane %v3557, %v4155
        %v4157 = vlaneseq
        %v4158 = vshrl.u32 %v4157, 7
        %v4159 = vsub.s32 0, %v4158
        %v4160 = vrot.slane %v3540, %v4159
        %v4161 = vlaneseq
        %v4162 = vshrl.u32 %v4161, 7
        %v4163 = vsub.s32 0, %v4162
        %v4164 = vrot.slane %v3554, %v4163
        %v4165 = vlaneseq
        %v4166 = vshrl.u32 %v4165, 7
        %v4167 = vsub.s32 0, %v4166
        %v4168 = vrot.slane %v3556, %v4167
        %v4169 = vlaneseq
        %v4170 = vshrl.u32 %v4169, 7
        %v4171 = vsub.s32 0, %v4170
        %v4172 = vrot.slane %v3558, %v4171
        %v4173 = vlaneseq
        %v4174 = vshrl.u32 %v4173, 7
        %v4175 = vsub.s32 0, %v4174
        %v4176 = vrot.slane %v3582, %v4175
        %v4177 = vlaneseq
        %v4178 = vshrl.u32 %v4177, 7
        %v4179 = vsub.s32 0, %v4178
        %v4180 = vrot.slane %v3596, %v4179
        %v4181 = vlaneseq
        %v4182 = vshrl.u32 %v4181, 7
        %v4183 = vsub.s32 0, %v4182
        %v4184 = vrot.slane %v3604, %v4183
        %v4185 = vlaneseq
        %v4186 = vshrl.u32 %v4185, 7
        %v4187 = vsub.s32 0, %v4186
        %v4188 = vrot.slane %v3606, %v4187
        %v4189 = vlaneseq
        %v4190 = vshrl.u32 %v4189, 7
        %v4191 = vsub.s32 0, %v4190
        %v4192 = vrot.slane %v3589, %v4191
        %v4193 = vlaneseq
        %v4194 = vshrl.u32 %v4193, 7
        %v4195 = vsub.s32 0, %v4194
        %v4196 = vrot.slane %v3603, %v4195
        %v4197 = vlaneseq
        %v4198 = vshrl.u32 %v4197, 7
        %v4199 = vsub.s32 0, %v4198
        %v4200 = vrot.slane %v3605, %v4199
        %v4201 = vlaneseq
        %v4202 = vshrl.u32 %v4201, 7
        %v4203 = vsub.s32 0, %v4202
        %v4204 = vrot.slane %v3607, %v4203
        %v4205 = vlaneseq
        %v4206 = vshrl.u32 %v4205, 7
        %v4207 = vsub.s32 0, %v4206
        %v4208 = vrot.slane %v3631, %v4207
        %v4209 = vlaneseq
        %v4210 = vshrl.u32 %v4209, 7
        %v4211 = vsub.s32 0, %v4210
        %v4212 = vrot.slane %v3645, %v4211
        %v4213 = vlaneseq
        %v4214 = vshrl.u32 %v4213, 7
        %v4215 = vsub.s32 0, %v4214
        %v4216 = vrot.slane %v3653, %v4215
        %v4217 = vlaneseq
        %v4218 = vshrl.u32 %v4217, 7
        %v4219 = vsub.s32 0, %v4218
        %v4220 = vrot.slane %v3655, %v4219
        %v4221 = vlaneseq
        %v4222 = vshrl.u32 %v4221, 7
        %v4223 = vsub.s32 0, %v4222
        %v4224 = vrot.slane %v3638, %v4223
        %v4225 = vlaneseq
        %v4226 = vshrl.u32 %v4225, 7
        %v4227 = vsub.s32 0, %v4226
        %v4228 = vrot.slane %v3652, %v4227
        %v4229 = vlaneseq
        %v4230 = vshrl.u32 %v4229, 7
        %v4231 = vsub.s32 0, %v4230
        %v4232 = vrot.slane %v3654, %v4231
        %v4233 = vlaneseq
        %v4234 = vshrl.u32 %v4233, 7
        %v4235 = vsub.s32 0, %v4234
        %v4236 = vrot.slane %v3656, %v4235
        %v4237 = vlaneseq
        %v4238 = vshrl.u32 %v4237, 7
        %v4239 = vsub.s32 0, %v4238
        %v4240 = vrot.slane %v3680, %v4239
        %v4241 = vlaneseq
        %v4242 = vshrl.u32 %v4241, 7
        %v4243 = vsub.s32 0, %v4242
        %v4244 = vrot.slane %v3694, %v4243
        %v4245 = vlaneseq
        %v4246 = vshrl.u32 %v4245, 7
        %v4247 = vsub.s32 0, %v4246
        %v4248 = vrot.slane %v3702, %v4247
        %v4249 = vlaneseq
        %v4250 = vshrl.u32 %v4249, 7
        %v4251 = vsub.s32 0, %v4250
        %v4252 = vrot.slane %v3704, %v4251
        %v4253 = vlaneseq
        %v4254 = vshrl.u32 %v4253, 7
        %v4255 = vsub.s32 0, %v4254
        %v4256 = vrot.slane %v3687, %v4255
        %v4257 = vlaneseq
        %v4258 = vshrl.u32 %v4257, 7
        %v4259 = vsub.s32 0, %v4258
        %v4260 = vrot.slane %v3701, %v4259
        %v4261 = vlaneseq
        %v4262 = vshrl.u32 %v4261, 7
        %v4263 = vsub.s32 0, %v4262
        %v4264 = vrot.slane %v3703, %v4263
        %v4265 = vlaneseq
        %v4266 = vshrl.u32 %v4265, 7
        %v4267 = vsub.s32 0, %v4266
        %v4268 = vrot.slane %v3705, %v4267
        %v4269 = vlaneseq
        %v4270 = vshrl.u32 %v4269, 7
        %v4271 = vsub.s32 0, %v4270
        %v4272 = vrot.slane %v3729, %v4271
        %v4273 = vlaneseq
        %v4274 = vshrl.u32 %v4273, 7
        %v4275 = vsub.s32 0, %v4274
        %v4276 = vrot.slane %v3743, %v4275
        %v4277 = vlaneseq
        %v4278 = vshrl.u32 %v4277, 7
        %v4279 = vsub.s32 0, %v4278
        %v4280 = vrot.slane %v3751, %v4279
        %v4281 = vlaneseq
        %v4282 = vshrl.u32 %v4281, 7
        %v4283 = vsub.s32 0, %v4282
        %v4284 = vrot.slane %v3753, %v4283
        %v4285 = vlaneseq
        %v4286 = vshrl.u32 %v4285, 7
        %v4287 = vsub.s32 0, %v4286
        %v4288 = vrot.slane %v3736, %v4287
        %v4289 = vlaneseq
        %v4290 = vshrl.u32 %v4289, 7
        %v4291 = vsub.s32 0, %v4290
        %v4292 = vrot.slane %v3750, %v4291
        %v4293 = vlaneseq
        %v4294 = vshrl.u32 %v4293, 7
        %v4295 = vsub.s32 0, %v4294
        %v4296 = vrot.slane %v3752, %v4295
        %v4297 = vlaneseq
        %v4298 = vshrl.u32 %v4297, 7
        %v4299 = vsub.s32 0, %v4298
        %v4300 = vrot.slane %v3754, %v4299
        %v4301 = vlaneseq
        %v4302 = vshrl.u32 %v4301, 7
        %v4303 = vsub.s32 0, %v4302
        %v4304 = vrot.slane %v3778, %v4303
        %v4305 = vlaneseq
        %v4306 = vshrl.u32 %v4305, 7
        %v4307 = vsub.s32 0, %v4306
        %v4308 = vrot.slane %v3792, %v4307
        %v4309 = vlaneseq
        %v4310 = vshrl.u32 %v4309, 7
        %v4311 = vsub.s32 0, %v4310
        %v4312 = vrot.slane %v3800, %v4311
        %v4313 = vlaneseq
        %v4314 = vshrl.u32 %v4313, 7
        %v4315 = vsub.s32 0, %v4314
        %v4316 = vrot.slane %v3802, %v4315
        %v4317 = vlaneseq
        %v4318 = vshrl.u32 %v4317, 7
        %v4319 = vsub.s32 0, %v4318
        %v4320 = vrot.slane %v3785, %v4319
        %v4321 = vlaneseq
        %v4322 = vshrl.u32 %v4321, 7
        %v4323 = vsub.s32 0, %v4322
        %v4324 = vrot.slane %v3799, %v4323
        %v4325 = vlaneseq
        %v4326 = vshrl.u32 %v4325, 7
        %v4327 = vsub.s32 0, %v4326
        %v4328 = vrot.slane %v3801, %v4327
        %v4329 = vlaneseq
        %v4330 = vshrl.u32 %v4329, 7
        %v4331 = vsub.s32 0, %v4330
        %v4332 = vrot.slane %v3803, %v4331
        %v4333 = vlaneseq
        %v4334 = vshrl.u32 %v4333, 7
        %v4335 = vsub.s32 0, %v4334
        %v4336 = vrot.slane %v3827, %v4335
        %v4337 = vlaneseq
        %v4338 = vshrl.u32 %v4337, 7
        %v4339 = vsub.s32 0, %v4338
        %v4340 = vrot.slane %v3841, %v4339
        %v4341 = vlaneseq
        %v4342 = vshrl.u32 %v4341, 7
        %v4343 = vsub.s32 0, %v4342
        %v4344 = vrot.slane %v3849, %v4343
        %v4345 = vlaneseq
        %v4346 = vshrl.u32 %v4345, 7
        %v4347 = vsub.s32 0, %v4346
        %v4348 = vrot.slane %v3851, %v4347
        %v4349 = vlaneseq
        %v4350 = vshrl.u32 %v4349, 7
        %v4351 = vsub.s32 0, %v4350
        %v4352 = vrot.slane %v3834, %v4351
        %v4353 = vlaneseq
        %v4354 = vshrl.u32 %v4353, 7
        %v4355 = vsub.s32 0, %v4354
        %v4356 = vrot.slane %v3848, %v4355
        %v4357 = vlaneseq
        %v4358 = vshrl.u32 %v4357, 7
        %v4359 = vsub.s32 0, %v4358
        %v4360 = vrot.slane %v3850, %v4359
        %v4361 = vlaneseq
        %v4362 = vshrl.u32 %v4361, 7
        %v4363 = vsub.s32 0, %v4362
        %v4364 = vrot.slane %v3852, %v4363
        %v4493 = vmul.f32 %v3856, %v3038
        %v4494 = vmul.f32 %v3856, %v3040
        %v4495 = vmul.f32 %v3860, %v3038
        %v4496 = vmul.f32 %v3860, %v3040
        %v4497 = vmul.f32 %v3864, %v3038
        %v4498 = vmul.f32 %v3864, %v3040
        %v4499 = vmul.f32 %v3868, %v3038
        %v4500 = vmul.f32 %v3868, %v3040
        %v4501 = vmul.f32 %v3872, %v3038
        %v4502 = vmul.f32 %v3872, %v3040
        %v4503 = vmul.f32 %v3876, %v3038
        %v4504 = vmul.f32 %v3876, %v3040
        %v4505 = vmul.f32 %v3880, %v3038
        %v4506 = vmul.f32 %v3880, %v3040
        %v4507 = vmul.f32 %v3884, %v3038
        %v4508 = vmul.f32 %v3884, %v3040
        %v4509 = vmul.f32 %v3888, %v3038
        %v4510 = vmul.f32 %v3888, %v3040
        %v4511 = vmul.f32 %v3892, %v3038
        %v4512 = vmul.f32 %v3892, %v3040
        %v4513 = vmul.f32 %v3896, %v3038
        %v4514 = vmul.f32 %v3896, %v3040
        %v4515 = vmul.f32 %v3900, %v3038
        %v4516 = vmul.f32 %v3900, %v3040
        %v4517 = vmul.f32 %v3904, %v3038
        %v4518 = vmul.f32 %v3904, %v3040
        %v4519 = vmul.f32 %v3908, %v3038
        %v4520 = vmul.f32 %v3908, %v3040
        %v4521 = vmul.f32 %v3912, %v3038
        %v4522 = vmul.f32 %v3912, %v3040
        %v4523 = vmul.f32 %v3916, %v3038
        %v4524 = vmul.f32 %v3916, %v3040
        %v4525 = vmul.f32 %v3920, %v3038
        %v4526 = vmul.f32 %v3920, %v3040
        %v4527 = vmul.f32 %v3924, %v3038
        %v4528 = vmul.f32 %v3924, %v3040
        %v4529 = vmul.f32 %v3928, %v3038
        %v4530 = vmul.f32 %v3928, %v3040
        %v4531 = vmul.f32 %v3932, %v3038
        %v4532 = vmul.f32 %v3932, %v3040
        %v4533 = vmul.f32 %v3936, %v3038
        %v4534 = vmul.f32 %v3936, %v3040
        %v4535 = vmul.f32 %v3940, %v3038
        %v4536 = vmul.f32 %v3940, %v3040
        %v4537 = vmul.f32 %v3944, %v3038
        %v4538 = vmul.f32 %v3944, %v3040
        %v4539 = vmul.f32 %v3948, %v3038
        %v4540 = vmul.f32 %v3948, %v3040
        %v4541 = vmul.f32 %v3952, %v3038
        %v4542 = vmul.f32 %v3952, %v3040
        %v4543 = vmul.f32 %v3956, %v3038
        %v4544 = vmul.f32 %v3956, %v3040
        %v4545 = vmul.f32 %v3960, %v3038
        %v4546 = vmul.f32 %v3960, %v3040
        %v4547 = vmul.f32 %v3964, %v3038
        %v4548 = vmul.f32 %v3964, %v3040
        %v4549 = vmul.f32 %v3968, %v3038
        %v4550 = vmul.f32 %v3968, %v3040
        %v4551 = vmul.f32 %v3972, %v3038
        %v4552 = vmul.f32 %v3972, %v3040
        %v4553 = vmul.f32 %v3976, %v3038
        %v4554 = vmul.f32 %v3976, %v3040
        %v4555 = vmul.f32 %v3980, %v3038
        %v4556 = vmul.f32 %v3980, %v3040
        %v4557 = vmul.f32 %v3984, %v3042
        %v4558 = vmul.f32 %v3984, %v3044
        %v4559 = vmul.f32 %v3988, %v3042
        %v4560 = vmul.f32 %v3988, %v3044
        %v4561 = vmul.f32 %v3992, %v3042
        %v4562 = vmul.f32 %v3992, %v3044
        %v4563 = vmul.f32 %v3996, %v3042
        %v4564 = vmul.f32 %v3996, %v3044
        %v4565 = vmul.f32 %v4000, %v3042
        %v4566 = vmul.f32 %v4000, %v3044
        %v4567 = vmul.f32 %v4004, %v3042
        %v4568 = vmul.f32 %v4004, %v3044
        %v4569 = vmul.f32 %v4008, %v3042
        %v4570 = vmul.f32 %v4008, %v3044
        %v4571 = vmul.f32 %v4012, %v3042
        %v4572 = vmul.f32 %v4012, %v3044
        %v4573 = vmul.f32 %v4016, %v3042
        %v4574 = vmul.f32 %v4016, %v3044
        %v4575 = vmul.f32 %v4020, %v3042
        %v4576 = vmul.f32 %v4020, %v3044
        %v4577 = vmul.f32 %v4024, %v3042
        %v4578 = vmul.f32 %v4024, %v3044
        %v4579 = vmul.f32 %v4028, %v3042
        %v4580 = vmul.f32 %v4028, %v3044
        %v4581 = vmul.f32 %v4032, %v3042
        %v4582 = vmul.f32 %v4032, %v3044
        %v4583 = vmul.f32 %v4036, %v3042
        %v4584 = vmul.f32 %v4036, %v3044
        %v4585 = vmul.f32 %v4040, %v3042
        %v4586 = vmul.f32 %v4040, %v3044
        %v4587 = vmul.f32 %v4044, %v3042
        %v4588 = vmul.f32 %v4044, %v3044
        %v4589 = vmul.f32 %v4048, %v3042
        %v4590 = vmul.f32 %v4048, %v3044
        %v4591 = vmul.f32 %v4052, %v3042
        %v4592 = vmul.f32 %v4052, %v3044
        %v4593 = vmul.f32 %v4056, %v3042
        %v4594 = vmul.f32 %v4056, %v3044
        %v4595 = vmul.f32 %v4060, %v3042
        %v4596 = vmul.f32 %v4060, %v3044
        %v4597 = vmul.f32 %v4064, %v3042
        %v4598 = vmul.f32 %v4064, %v3044
        %v4599 = vmul.f32 %v4068, %v3042
        %v4600 = vmul.f32 %v4068, %v3044
        %v4601 = vmul.f32 %v4072, %v3042
        %v4602 = vmul.f32 %v4072, %v3044
        %v4603 = vmul.f32 %v4076, %v3042
        %v4604 = vmul.f32 %v4076, %v3044
        %v4605 = vmul.f32 %v4080, %v3042
        %v4606 = vmul.f32 %v4080, %v3044
        %v4607 = vmul.f32 %v4084, %v3042
        %v4608 = vmul.f32 %v4084, %v3044
        %v4609 = vmul.f32 %v4088, %v3042
        %v4610 = vmul.f32 %v4088, %v3044
        %v4611 = vmul.f32 %v4092, %v3042
        %v4612 = vmul.f32 %v4092, %v3044
        %v4613 = vmul.f32 %v4096, %v3042
        %v4614 = vmul.f32 %v4096, %v3044
        %v4615 = vmul.f32 %v4100, %v3042
        %v4616 = vmul.f32 %v4100, %v3044
        %v4617 = vmul.f32 %v4104, %v3042
        %v4618 = vmul.f32 %v4104, %v3044
        %v4619 = vmul.f32 %v4108, %v3042
        %v4620 = vmul.f32 %v4108, %v3044
        %v4621 = vmul.f32 %v4112, %v3046
        %v4622 = vmul.f32 %v4112, %v3048
        %v4623 = vmul.f32 %v4116, %v3046
        %v4624 = vmul.f32 %v4116, %v3048
        %v4625 = vmul.f32 %v4120, %v3046
        %v4626 = vmul.f32 %v4120, %v3048
        %v4627 = vmul.f32 %v4124, %v3046
        %v4628 = vmul.f32 %v4124, %v3048
        %v4629 = vmul.f32 %v4128, %v3046
        %v4630 = vmul.f32 %v4128, %v3048
        %v4631 = vmul.f32 %v4132, %v3046
        %v4632 = vmul.f32 %v4132, %v3048
        %v4633 = vmul.f32 %v4136, %v3046
        %v4634 = vmul.f32 %v4136, %v3048
        %v4635 = vmul.f32 %v4140, %v3046
        %v4636 = vmul.f32 %v4140, %v3048
        %v4637 = vmul.f32 %v4144, %v3046
        %v4638 = vmul.f32 %v4144, %v3048
        %v4639 = vmul.f32 %v4148, %v3046
        %v4640 = vmul.f32 %v4148, %v3048
        %v4641 = vmul.f32 %v4152, %v3046
        %v4642 = vmul.f32 %v4152, %v3048
        %v4643 = vmul.f32 %v4156, %v3046
        %v4644 = vmul.f32 %v4156, %v3048
        %v4645 = vmul.f32 %v4160, %v3046
        %v4646 = vmul.f32 %v4160, %v3048
        %v4647 = vmul.f32 %v4164, %v3046
        %v4648 = vmul.f32 %v4164, %v3048
        %v4649 = vmul.f32 %v4168, %v3046
        %v4650 = vmul.f32 %v4168, %v3048
        %v4651 = vmul.f32 %v4172, %v3046
        %v4652 = vmul.f32 %v4172, %v3048
        %v4653 = vmul.f32 %v4176, %v3046
        %v4654 = vmul.f32 %v4176, %v3048
        %v4655 = vmul.f32 %v4180, %v3046
        %v4656 = vmul.f32 %v4180, %v3048
        %v4657 = vmul.f32 %v4184, %v3046
        %v4658 = vmul.f32 %v4184, %v3048
        %v4659 = vmul.f32 %v4188, %v3046
        %v4660 = vmul.f32 %v4188, %v3048
        %v4661 = vmul.f32 %v4192, %v3046
        %v4662 = vmul.f32 %v4192, %v3048
        %v4663 = vmul.f32 %v4196, %v3046
        %v4664 = vmul.f32 %v4196, %v3048
        %v4665 = vmul.f32 %v4200, %v3046
        %v4666 = vmul.f32 %v4200, %v3048
        %v4667 = vmul.f32 %v4204, %v3046
        %v4668 = vmul.f32 %v4204, %v3048
        %v4669 = vmul.f32 %v4208, %v3046
        %v4670 = vmul.f32 %v4208, %v3048
        %v4671 = vmul.f32 %v4212, %v3046
        %v4672 = vmul.f32 %v4212, %v3048
        %v4673 = vmul.f32 %v4216, %v3046
        %v4674 = vmul.f32 %v4216, %v3048
        %v4675 = vmul.f32 %v4220, %v3046
        %v4676 = vmul.f32 %v4220, %v3048
        %v4677 = vmul.f32 %v4224, %v3046
        %v4678 = vmul.f32 %v4224, %v3048
        %v4679 = vmul.f32 %v4228, %v3046
        %v4680 = vmul.f32 %v4228, %v3048
        %v4681 = vmul.f32 %v4232, %v3046
        %v4682 = vmul.f32 %v4232, %v3048
        %v4683 = vmul.f32 %v4236, %v3046
        %v4684 = vmul.f32 %v4236, %v3048
        %v4685 = vmul.f32 %v4240, %v3050
        %v4686 = vmul.f32 %v4240, %v3052
        %v4687 = vmul.f32 %v4244, %v3050
        %v4688 = vmul.f32 %v4244, %v3052
        %v4689 = vmul.f32 %v4248, %v3050
        %v4690 = vmul.f32 %v4248, %v3052
        %v4691 = vmul.f32 %v4252, %v3050
        %v4692 = vmul.f32 %v4252, %v3052
        %v4693 = vmul.f32 %v4256, %v3050
        %v4694 = vmul.f32 %v4256, %v3052
        %v4695 = vmul.f32 %v4260, %v3050
        %v4696 = vmul.f32 %v4260, %v3052
        %v4697 = vmul.f32 %v4264, %v3050
        %v4698 = vmul.f32 %v4264, %v3052
        %v4699 = vmul.f32 %v4268, %v3050
        %v4700 = vmul.f32 %v4268, %v3052
        %v4701 = vmul.f32 %v4272, %v3050
        %v4702 = vmul.f32 %v4272, %v3052
        %v4703 = vmul.f32 %v4276, %v3050
        %v4704 = vmul.f32 %v4276, %v3052
        %v4705 = vmul.f32 %v4280, %v3050
        %v4706 = vmul.f32 %v4280, %v3052
        %v4707 = vmul.f32 %v4284, %v3050
        %v4708 = vmul.f32 %v4284, %v3052
        %v4709 = vmul.f32 %v4288, %v3050
        %v4710 = vmul.f32 %v4288, %v3052
        %v4711 = vmul.f32 %v4292, %v3050
        %v4712 = vmul.f32 %v4292, %v3052
        %v4713 = vmul.f32 %v4296, %v3050
        %v4714 = vmul.f32 %v4296, %v3052
        %v4715 = vmul.f32 %v4300, %v3050
        %v4716 = vmul.f32 %v4300, %v3052
        %v4717 = vmul.f32 %v4304, %v3050
        %v4718 = vmul.f32 %v4304, %v3052
        %v4719 = vmul.f32 %v4308, %v3050
        %v4720 = vmul.f32 %v4308, %v3052
        %v4721 = vmul.f32 %v4312, %v3050
        %v4722 = vmul.f32 %v4312, %v3052
        %v4723 = vmul.f32 %v4316, %v3050
        %v4724 = vmul.f32 %v4316, %v3052
        %v4725 = vmul.f32 %v4320, %v3050
        %v4726 = vmul.f32 %v4320, %v3052
        %v4727 = vmul.f32 %v4324, %v3050
        %v4728 = vmul.f32 %v4324, %v3052
        %v4729 = vmul.f32 %v4328, %v3050
        %v4730 = vmul.f32 %v4328, %v3052
        %v4731 = vmul.f32 %v4332, %v3050
        %v4732 = vmul.f32 %v4332, %v3052
        %v4733 = vmul.f32 %v4336, %v3050
        %v4734 = vmul.f32 %v4336, %v3052
        %v4735 = vmul.f32 %v4340, %v3050
        %v4736 = vmul.f32 %v4340, %v3052
        %v4737 = vmul.f32 %v4344, %v3050
        %v4738 = vmul.f32 %v4344, %v3052
        %v4739 = vmul.f32 %v4348, %v3050
        %v4740 = vmul.f32 %v4348, %v3052
        %v4741 = vmul.f32 %v4352, %v3050
        %v4742 = vmul.f32 %v4352, %v3052
        %v4743 = vmul.f32 %v4356, %v3050
        %v4744 = vmul.f32 %v4356, %v3052
        %v4745 = vmul.f32 %v4360, %v3050
        %v4746 = vmul.f32 %v4360, %v3052
        %v4747 = vmul.f32 %v4364, %v3050
        %v4748 = vmul.f32 %v4364, %v3052
        %v4749 = vpack.c.bf16 %v4494, %v4493
        %v4750 = vpack.c.bf16 %v4496, %v4495
        %v4751 = vpack.c.bf16 %v4498, %v4497
        %v4752 = vpack.c.bf16 %v4500, %v4499
        %v4753 = vpack.c.bf16 %v4502, %v4501
        %v4754 = vpack.c.bf16 %v4504, %v4503
        %v4755 = vpack.c.bf16 %v4506, %v4505
        %v4756 = vpack.c.bf16 %v4508, %v4507
        %v4757 = vpack.c.bf16 %v4510, %v4509
        %v4758 = vpack.c.bf16 %v4512, %v4511
        %v4759 = vpack.c.bf16 %v4514, %v4513
        %v4760 = vpack.c.bf16 %v4516, %v4515
        %v4761 = vpack.c.bf16 %v4518, %v4517
        %v4762 = vpack.c.bf16 %v4520, %v4519
        %v4763 = vpack.c.bf16 %v4522, %v4521
        %v4764 = vpack.c.bf16 %v4524, %v4523
        %v4765 = vpack.c.bf16 %v4526, %v4525
        %v4766 = vpack.c.bf16 %v4528, %v4527
        %v4767 = vpack.c.bf16 %v4530, %v4529
        %v4768 = vpack.c.bf16 %v4532, %v4531
        %v4769 = vpack.c.bf16 %v4534, %v4533
        %v4770 = vpack.c.bf16 %v4536, %v4535
        %v4771 = vpack.c.bf16 %v4538, %v4537
        %v4772 = vpack.c.bf16 %v4540, %v4539
        %v4773 = vpack.c.bf16 %v4542, %v4541
        %v4774 = vpack.c.bf16 %v4544, %v4543
        %v4775 = vpack.c.bf16 %v4546, %v4545
        %v4776 = vpack.c.bf16 %v4548, %v4547
        %v4777 = vpack.c.bf16 %v4550, %v4549
        %v4778 = vpack.c.bf16 %v4552, %v4551
        %v4779 = vpack.c.bf16 %v4554, %v4553
        %v4780 = vpack.c.bf16 %v4556, %v4555
        %v4781 = vpack.c.bf16 %v4558, %v4557
        %v4782 = vpack.c.bf16 %v4560, %v4559
        %v4783 = vpack.c.bf16 %v4562, %v4561
        %v4784 = vpack.c.bf16 %v4564, %v4563
        %v4785 = vpack.c.bf16 %v4566, %v4565
        %v4786 = vpack.c.bf16 %v4568, %v4567
        %v4787 = vpack.c.bf16 %v4570, %v4569
        %v4788 = vpack.c.bf16 %v4572, %v4571
        %v4789 = vpack.c.bf16 %v4574, %v4573
        %v4790 = vpack.c.bf16 %v4576, %v4575
        %v4791 = vpack.c.bf16 %v4578, %v4577
        %v4792 = vpack.c.bf16 %v4580, %v4579
        %v4793 = vpack.c.bf16 %v4582, %v4581
        %v4794 = vpack.c.bf16 %v4584, %v4583
        %v4795 = vpack.c.bf16 %v4586, %v4585
        %v4796 = vpack.c.bf16 %v4588, %v4587
        %v4797 = vpack.c.bf16 %v4590, %v4589
        %v4798 = vpack.c.bf16 %v4592, %v4591
        %v4799 = vpack.c.bf16 %v4594, %v4593
        %v4800 = vpack.c.bf16 %v4596, %v4595
        %v4801 = vpack.c.bf16 %v4598, %v4597
        %v4802 = vpack.c.bf16 %v4600, %v4599
        %v4803 = vpack.c.bf16 %v4602, %v4601
        %v4804 = vpack.c.bf16 %v4604, %v4603
        %v4805 = vpack.c.bf16 %v4606, %v4605
        %v4806 = vpack.c.bf16 %v4608, %v4607
        %v4807 = vpack.c.bf16 %v4610, %v4609
        %v4808 = vpack.c.bf16 %v4612, %v4611
        %v4809 = vpack.c.bf16 %v4614, %v4613
        %v4810 = vpack.c.bf16 %v4616, %v4615
        %v4811 = vpack.c.bf16 %v4618, %v4617
        %v4812 = vpack.c.bf16 %v4620, %v4619
        %v4813 = vpack.c.bf16 %v4622, %v4621
        %v4814 = vpack.c.bf16 %v4624, %v4623
        %v4815 = vpack.c.bf16 %v4626, %v4625
        %v4816 = vpack.c.bf16 %v4628, %v4627
        %v4817 = vpack.c.bf16 %v4630, %v4629
        %v4818 = vpack.c.bf16 %v4632, %v4631
        %v4819 = vpack.c.bf16 %v4634, %v4633
        %v4820 = vpack.c.bf16 %v4636, %v4635
        %v4821 = vpack.c.bf16 %v4638, %v4637
        %v4822 = vpack.c.bf16 %v4640, %v4639
        %v4823 = vpack.c.bf16 %v4642, %v4641
        %v4824 = vpack.c.bf16 %v4644, %v4643
        %v4825 = vpack.c.bf16 %v4646, %v4645
        %v4826 = vpack.c.bf16 %v4648, %v4647
        %v4827 = vpack.c.bf16 %v4650, %v4649
        %v4828 = vpack.c.bf16 %v4652, %v4651
        %v4829 = vpack.c.bf16 %v4654, %v4653
        %v4830 = vpack.c.bf16 %v4656, %v4655
        %v4831 = vpack.c.bf16 %v4658, %v4657
        %v4832 = vpack.c.bf16 %v4660, %v4659
        %v4833 = vpack.c.bf16 %v4662, %v4661
        %v4834 = vpack.c.bf16 %v4664, %v4663
        %v4835 = vpack.c.bf16 %v4666, %v4665
        %v4836 = vpack.c.bf16 %v4668, %v4667
        %v4837 = vpack.c.bf16 %v4670, %v4669
        %v4838 = vpack.c.bf16 %v4672, %v4671
        %v4839 = vpack.c.bf16 %v4674, %v4673
        %v4840 = vpack.c.bf16 %v4676, %v4675
        %v4841 = vpack.c.bf16 %v4678, %v4677
        %v4842 = vpack.c.bf16 %v4680, %v4679
        %v4843 = vpack.c.bf16 %v4682, %v4681
        %v4844 = vpack.c.bf16 %v4684, %v4683
        %v4845 = vpack.c.bf16 %v4686, %v4685
        %v4846 = vpack.c.bf16 %v4688, %v4687
        %v4847 = vpack.c.bf16 %v4690, %v4689
        %v4848 = vpack.c.bf16 %v4692, %v4691
        %v4849 = vpack.c.bf16 %v4694, %v4693
        %v4850 = vpack.c.bf16 %v4696, %v4695
        %v4851 = vpack.c.bf16 %v4698, %v4697
        %v4852 = vpack.c.bf16 %v4700, %v4699
        %v4853 = vpack.c.bf16 %v4702, %v4701
        %v4854 = vpack.c.bf16 %v4704, %v4703
        %v4855 = vpack.c.bf16 %v4706, %v4705
        %v4856 = vpack.c.bf16 %v4708, %v4707
        %v4857 = vpack.c.bf16 %v4710, %v4709
        %v4858 = vpack.c.bf16 %v4712, %v4711
        %v4859 = vpack.c.bf16 %v4714, %v4713
        %v4860 = vpack.c.bf16 %v4716, %v4715
        %v4861 = vpack.c.bf16 %v4718, %v4717
        %v4862 = vpack.c.bf16 %v4720, %v4719
        %v4863 = vpack.c.bf16 %v4722, %v4721
        %v4864 = vpack.c.bf16 %v4724, %v4723
        %v4865 = vpack.c.bf16 %v4726, %v4725
        %v4866 = vpack.c.bf16 %v4728, %v4727
        %v4867 = vpack.c.bf16 %v4730, %v4729
        %v4868 = vpack.c.bf16 %v4732, %v4731
        %v4869 = vpack.c.bf16 %v4734, %v4733
        %v4870 = vpack.c.bf16 %v4736, %v4735
        %v4871 = vpack.c.bf16 %v4738, %v4737
        %v4872 = vpack.c.bf16 %v4740, %v4739
        %v4873 = vpack.c.bf16 %v4742, %v4741
        %v4874 = vpack.c.bf16 %v4744, %v4743
        %v4875 = vpack.c.bf16 %v4746, %v4745
        %v4876 = vpack.c.bf16 %v4748, %v4747
        %v5005 = vunpack.c.l.b16 %v4749
        %v5006 = vunpack.c.h.b16 %v4749
        %v5007 = vunpack.c.l.b16 %v4750
        %v5008 = vunpack.c.h.b16 %v4750
        %v5009 = vunpack.c.l.b16 %v4751
        %v5010 = vunpack.c.h.b16 %v4751
        %v5011 = vunpack.c.l.b16 %v4752
        %v5012 = vunpack.c.h.b16 %v4752
        %v5013 = vunpack.c.l.b16 %v4753
        %v5014 = vunpack.c.h.b16 %v4753
        %v5015 = vunpack.c.l.b16 %v4754
        %v5016 = vunpack.c.h.b16 %v4754
        %v5017 = vunpack.c.l.b16 %v4755
        %v5018 = vunpack.c.h.b16 %v4755
        %v5019 = vunpack.c.l.b16 %v4756
        %v5020 = vunpack.c.h.b16 %v4756
        %v5021 = vunpack.c.l.b16 %v4757
        %v5022 = vunpack.c.h.b16 %v4757
        %v5023 = vunpack.c.l.b16 %v4758
        %v5024 = vunpack.c.h.b16 %v4758
        %v5025 = vunpack.c.l.b16 %v4759
        %v5026 = vunpack.c.h.b16 %v4759
        %v5027 = vunpack.c.l.b16 %v4760
        %v5028 = vunpack.c.h.b16 %v4760
        %v5029 = vunpack.c.l.b16 %v4761
        %v5030 = vunpack.c.h.b16 %v4761
        %v5031 = vunpack.c.l.b16 %v4762
        %v5032 = vunpack.c.h.b16 %v4762
        %v5033 = vunpack.c.l.b16 %v4763
        %v5034 = vunpack.c.h.b16 %v4763
        %v5035 = vunpack.c.l.b16 %v4764
        %v5036 = vunpack.c.h.b16 %v4764
        %v5037 = vunpack.c.l.b16 %v4765
        %v5038 = vunpack.c.h.b16 %v4765
        %v5039 = vunpack.c.l.b16 %v4766
        %v5040 = vunpack.c.h.b16 %v4766
        %v5041 = vunpack.c.l.b16 %v4767
        %v5042 = vunpack.c.h.b16 %v4767
        %v5043 = vunpack.c.l.b16 %v4768
        %v5044 = vunpack.c.h.b16 %v4768
        %v5045 = vunpack.c.l.b16 %v4769
        %v5046 = vunpack.c.h.b16 %v4769
        %v5047 = vunpack.c.l.b16 %v4770
        %v5048 = vunpack.c.h.b16 %v4770
        %v5049 = vunpack.c.l.b16 %v4771
        %v5050 = vunpack.c.h.b16 %v4771
        %v5051 = vunpack.c.l.b16 %v4772
        %v5052 = vunpack.c.h.b16 %v4772
        %v5053 = vunpack.c.l.b16 %v4773
        %v5054 = vunpack.c.h.b16 %v4773
        %v5055 = vunpack.c.l.b16 %v4774
        %v5056 = vunpack.c.h.b16 %v4774
        %v5057 = vunpack.c.l.b16 %v4775
        %v5058 = vunpack.c.h.b16 %v4775
        %v5059 = vunpack.c.l.b16 %v4776
        %v5060 = vunpack.c.h.b16 %v4776
        %v5061 = vunpack.c.l.b16 %v4777
        %v5062 = vunpack.c.h.b16 %v4777
        %v5063 = vunpack.c.l.b16 %v4778
        %v5064 = vunpack.c.h.b16 %v4778
        %v5065 = vunpack.c.l.b16 %v4779
        %v5066 = vunpack.c.h.b16 %v4779
        %v5067 = vunpack.c.l.b16 %v4780
        %v5068 = vunpack.c.h.b16 %v4780
        %v5069 = vunpack.c.l.b16 %v4781
        %v5070 = vunpack.c.h.b16 %v4781
        %v5071 = vunpack.c.l.b16 %v4782
        %v5072 = vunpack.c.h.b16 %v4782
        %v5073 = vunpack.c.l.b16 %v4783
        %v5074 = vunpack.c.h.b16 %v4783
        %v5075 = vunpack.c.l.b16 %v4784
        %v5076 = vunpack.c.h.b16 %v4784
        %v5077 = vunpack.c.l.b16 %v4785
        %v5078 = vunpack.c.h.b16 %v4785
        %v5079 = vunpack.c.l.b16 %v4786
        %v5080 = vunpack.c.h.b16 %v4786
        %v5081 = vunpack.c.l.b16 %v4787
        %v5082 = vunpack.c.h.b16 %v4787
        %v5083 = vunpack.c.l.b16 %v4788
        %v5084 = vunpack.c.h.b16 %v4788
        %v5085 = vunpack.c.l.b16 %v4789
        %v5086 = vunpack.c.h.b16 %v4789
        %v5087 = vunpack.c.l.b16 %v4790
        %v5088 = vunpack.c.h.b16 %v4790
        %v5089 = vunpack.c.l.b16 %v4791
        %v5090 = vunpack.c.h.b16 %v4791
        %v5091 = vunpack.c.l.b16 %v4792
        %v5092 = vunpack.c.h.b16 %v4792
        %v5093 = vunpack.c.l.b16 %v4793
        %v5094 = vunpack.c.h.b16 %v4793
        %v5095 = vunpack.c.l.b16 %v4794
        %v5096 = vunpack.c.h.b16 %v4794
        %v5097 = vunpack.c.l.b16 %v4795
        %v5098 = vunpack.c.h.b16 %v4795
        %v5099 = vunpack.c.l.b16 %v4796
        %v5100 = vunpack.c.h.b16 %v4796
        %v5101 = vunpack.c.l.b16 %v4797
        %v5102 = vunpack.c.h.b16 %v4797
        %v5103 = vunpack.c.l.b16 %v4798
        %v5104 = vunpack.c.h.b16 %v4798
        %v5105 = vunpack.c.l.b16 %v4799
        %v5106 = vunpack.c.h.b16 %v4799
        %v5107 = vunpack.c.l.b16 %v4800
        %v5108 = vunpack.c.h.b16 %v4800
        %v5109 = vunpack.c.l.b16 %v4801
        %v5110 = vunpack.c.h.b16 %v4801
        %v5111 = vunpack.c.l.b16 %v4802
        %v5112 = vunpack.c.h.b16 %v4802
        %v5113 = vunpack.c.l.b16 %v4803
        %v5114 = vunpack.c.h.b16 %v4803
        %v5115 = vunpack.c.l.b16 %v4804
        %v5116 = vunpack.c.h.b16 %v4804
        %v5117 = vunpack.c.l.b16 %v4805
        %v5118 = vunpack.c.h.b16 %v4805
        %v5119 = vunpack.c.l.b16 %v4806
        %v5120 = vunpack.c.h.b16 %v4806
        %v5121 = vunpack.c.l.b16 %v4807
        %v5122 = vunpack.c.h.b16 %v4807
        %v5123 = vunpack.c.l.b16 %v4808
        %v5124 = vunpack.c.h.b16 %v4808
        %v5125 = vunpack.c.l.b16 %v4809
        %v5126 = vunpack.c.h.b16 %v4809
        %v5127 = vunpack.c.l.b16 %v4810
        %v5128 = vunpack.c.h.b16 %v4810
        %v5129 = vunpack.c.l.b16 %v4811
        %v5130 = vunpack.c.h.b16 %v4811
        %v5131 = vunpack.c.l.b16 %v4812
        %v5132 = vunpack.c.h.b16 %v4812
        %v5133 = vunpack.c.l.b16 %v4813
        %v5134 = vunpack.c.h.b16 %v4813
        %v5135 = vunpack.c.l.b16 %v4814
        %v5136 = vunpack.c.h.b16 %v4814
        %v5137 = vunpack.c.l.b16 %v4815
        %v5138 = vunpack.c.h.b16 %v4815
        %v5139 = vunpack.c.l.b16 %v4816
        %v5140 = vunpack.c.h.b16 %v4816
        %v5141 = vunpack.c.l.b16 %v4817
        %v5142 = vunpack.c.h.b16 %v4817
        %v5143 = vunpack.c.l.b16 %v4818
        %v5144 = vunpack.c.h.b16 %v4818
        %v5145 = vunpack.c.l.b16 %v4819
        %v5146 = vunpack.c.h.b16 %v4819
        %v5147 = vunpack.c.l.b16 %v4820
        %v5148 = vunpack.c.h.b16 %v4820
        %v5149 = vunpack.c.l.b16 %v4821
        %v5150 = vunpack.c.h.b16 %v4821
        %v5151 = vunpack.c.l.b16 %v4822
        %v5152 = vunpack.c.h.b16 %v4822
        %v5153 = vunpack.c.l.b16 %v4823
        %v5154 = vunpack.c.h.b16 %v4823
        %v5155 = vunpack.c.l.b16 %v4824
        %v5156 = vunpack.c.h.b16 %v4824
        %v5157 = vunpack.c.l.b16 %v4825
        %v5158 = vunpack.c.h.b16 %v4825
        %v5159 = vunpack.c.l.b16 %v4826
        %v5160 = vunpack.c.h.b16 %v4826
        %v5161 = vunpack.c.l.b16 %v4827
        %v5162 = vunpack.c.h.b16 %v4827
        %v5163 = vunpack.c.l.b16 %v4828
        %v5164 = vunpack.c.h.b16 %v4828
        %v5165 = vunpack.c.l.b16 %v4829
        %v5166 = vunpack.c.h.b16 %v4829
        %v5167 = vunpack.c.l.b16 %v4830
        %v5168 = vunpack.c.h.b16 %v4830
        %v5169 = vunpack.c.l.b16 %v4831
        %v5170 = vunpack.c.h.b16 %v4831
        %v5171 = vunpack.c.l.b16 %v4832
        %v5172 = vunpack.c.h.b16 %v4832
        %v5173 = vunpack.c.l.b16 %v4833
        %v5174 = vunpack.c.h.b16 %v4833
        %v5175 = vunpack.c.l.b16 %v4834
        %v5176 = vunpack.c.h.b16 %v4834
        %v5177 = vunpack.c.l.b16 %v4835
        %v5178 = vunpack.c.h.b16 %v4835
        %v5179 = vunpack.c.l.b16 %v4836
        %v5180 = vunpack.c.h.b16 %v4836
        %v5181 = vunpack.c.l.b16 %v4837
        %v5182 = vunpack.c.h.b16 %v4837
        %v5183 = vunpack.c.l.b16 %v4838
        %v5184 = vunpack.c.h.b16 %v4838
        %v5185 = vunpack.c.l.b16 %v4839
        %v5186 = vunpack.c.h.b16 %v4839
        %v5187 = vunpack.c.l.b16 %v4840
        %v5188 = vunpack.c.h.b16 %v4840
        %v5189 = vunpack.c.l.b16 %v4841
        %v5190 = vunpack.c.h.b16 %v4841
        %v5191 = vunpack.c.l.b16 %v4842
        %v5192 = vunpack.c.h.b16 %v4842
        %v5193 = vunpack.c.l.b16 %v4843
        %v5194 = vunpack.c.h.b16 %v4843
        %v5195 = vunpack.c.l.b16 %v4844
        %v5196 = vunpack.c.h.b16 %v4844
        %v5197 = vunpack.c.l.b16 %v4845
        %v5198 = vunpack.c.h.b16 %v4845
        %v5199 = vunpack.c.l.b16 %v4846
        %v5200 = vunpack.c.h.b16 %v4846
        %v5201 = vunpack.c.l.b16 %v4847
        %v5202 = vunpack.c.h.b16 %v4847
        %v5203 = vunpack.c.l.b16 %v4848
        %v5204 = vunpack.c.h.b16 %v4848
        %v5205 = vunpack.c.l.b16 %v4849
        %v5206 = vunpack.c.h.b16 %v4849
        %v5207 = vunpack.c.l.b16 %v4850
        %v5208 = vunpack.c.h.b16 %v4850
        %v5209 = vunpack.c.l.b16 %v4851
        %v5210 = vunpack.c.h.b16 %v4851
        %v5211 = vunpack.c.l.b16 %v4852
        %v5212 = vunpack.c.h.b16 %v4852
        %v5213 = vunpack.c.l.b16 %v4853
        %v5214 = vunpack.c.h.b16 %v4853
        %v5215 = vunpack.c.l.b16 %v4854
        %v5216 = vunpack.c.h.b16 %v4854
        %v5217 = vunpack.c.l.b16 %v4855
        %v5218 = vunpack.c.h.b16 %v4855
        %v5219 = vunpack.c.l.b16 %v4856
        %v5220 = vunpack.c.h.b16 %v4856
        %v5221 = vunpack.c.l.b16 %v4857
        %v5222 = vunpack.c.h.b16 %v4857
        %v5223 = vunpack.c.l.b16 %v4858
        %v5224 = vunpack.c.h.b16 %v4858
        %v5225 = vunpack.c.l.b16 %v4859
        %v5226 = vunpack.c.h.b16 %v4859
        %v5227 = vunpack.c.l.b16 %v4860
        %v5228 = vunpack.c.h.b16 %v4860
        %v5229 = vunpack.c.l.b16 %v4861
        %v5230 = vunpack.c.h.b16 %v4861
        %v5231 = vunpack.c.l.b16 %v4862
        %v5232 = vunpack.c.h.b16 %v4862
        %v5233 = vunpack.c.l.b16 %v4863
        %v5234 = vunpack.c.h.b16 %v4863
        %v5235 = vunpack.c.l.b16 %v4864
        %v5236 = vunpack.c.h.b16 %v4864
        %v5237 = vunpack.c.l.b16 %v4865
        %v5238 = vunpack.c.h.b16 %v4865
        %v5239 = vunpack.c.l.b16 %v4866
        %v5240 = vunpack.c.h.b16 %v4866
        %v5241 = vunpack.c.l.b16 %v4867
        %v5242 = vunpack.c.h.b16 %v4867
        %v5243 = vunpack.c.l.b16 %v4868
        %v5244 = vunpack.c.h.b16 %v4868
        %v5245 = vunpack.c.l.b16 %v4869
        %v5246 = vunpack.c.h.b16 %v4869
        %v5247 = vunpack.c.l.b16 %v4870
        %v5248 = vunpack.c.h.b16 %v4870
        %v5249 = vunpack.c.l.b16 %v4871
        %v5250 = vunpack.c.h.b16 %v4871
        %v5251 = vunpack.c.l.b16 %v4872
        %v5252 = vunpack.c.h.b16 %v4872
        %v5253 = vunpack.c.l.b16 %v4873
        %v5254 = vunpack.c.h.b16 %v4873
        %v5255 = vunpack.c.l.b16 %v4874
        %v5256 = vunpack.c.h.b16 %v4874
        %v5257 = vunpack.c.l.b16 %v4875
        %v5258 = vunpack.c.h.b16 %v4875
        %v5259 = vunpack.c.l.b16 %v4876
        %v5260 = vunpack.c.h.b16 %v4876
        %v5261 = vpack.c.b16 %v5005, %v5005
        %v5262 = vpack.c.b16 %v5006, %v5006
        %v5263 = vpack.c.b16 %v5007, %v5007
        %v5264 = vpack.c.b16 %v5008, %v5008
        %v5265 = vpack.c.b16 %v5009, %v5009
        %v5266 = vpack.c.b16 %v5010, %v5010
        %v5267 = vpack.c.b16 %v5011, %v5011
        %v5268 = vpack.c.b16 %v5012, %v5012
        %v5269 = vpack.c.b16 %v5013, %v5013
        %v5270 = vpack.c.b16 %v5014, %v5014
        %v5271 = vpack.c.b16 %v5015, %v5015
        %v5272 = vpack.c.b16 %v5016, %v5016
        %v5273 = vpack.c.b16 %v5017, %v5017
        %v5274 = vpack.c.b16 %v5018, %v5018
        %v5275 = vpack.c.b16 %v5019, %v5019
        %v5276 = vpack.c.b16 %v5020, %v5020
        %v5277 = vpack.c.b16 %v5021, %v5021
        %v5278 = vpack.c.b16 %v5022, %v5022
        %v5279 = vpack.c.b16 %v5023, %v5023
        %v5280 = vpack.c.b16 %v5024, %v5024
        %v5281 = vpack.c.b16 %v5025, %v5025
        %v5282 = vpack.c.b16 %v5026, %v5026
        %v5283 = vpack.c.b16 %v5027, %v5027
        %v5284 = vpack.c.b16 %v5028, %v5028
        %v5285 = vpack.c.b16 %v5029, %v5029
        %v5286 = vpack.c.b16 %v5030, %v5030
        %v5287 = vpack.c.b16 %v5031, %v5031
        %v5288 = vpack.c.b16 %v5032, %v5032
        %v5289 = vpack.c.b16 %v5033, %v5033
        %v5290 = vpack.c.b16 %v5034, %v5034
        %v5291 = vpack.c.b16 %v5035, %v5035
        %v5292 = vpack.c.b16 %v5036, %v5036
        %v5293 = vpack.c.b16 %v5037, %v5037
        %v5294 = vpack.c.b16 %v5038, %v5038
        %v5295 = vpack.c.b16 %v5039, %v5039
        %v5296 = vpack.c.b16 %v5040, %v5040
        %v5297 = vpack.c.b16 %v5041, %v5041
        %v5298 = vpack.c.b16 %v5042, %v5042
        %v5299 = vpack.c.b16 %v5043, %v5043
        %v5300 = vpack.c.b16 %v5044, %v5044
        %v5301 = vpack.c.b16 %v5045, %v5045
        %v5302 = vpack.c.b16 %v5046, %v5046
        %v5303 = vpack.c.b16 %v5047, %v5047
        %v5304 = vpack.c.b16 %v5048, %v5048
        %v5305 = vpack.c.b16 %v5049, %v5049
        %v5306 = vpack.c.b16 %v5050, %v5050
        %v5307 = vpack.c.b16 %v5051, %v5051
        %v5308 = vpack.c.b16 %v5052, %v5052
        %v5309 = vpack.c.b16 %v5053, %v5053
        %v5310 = vpack.c.b16 %v5054, %v5054
        %v5311 = vpack.c.b16 %v5055, %v5055
        %v5312 = vpack.c.b16 %v5056, %v5056
        %v5313 = vpack.c.b16 %v5057, %v5057
        %v5314 = vpack.c.b16 %v5058, %v5058
        %v5315 = vpack.c.b16 %v5059, %v5059
        %v5316 = vpack.c.b16 %v5060, %v5060
        %v5317 = vpack.c.b16 %v5061, %v5061
        %v5318 = vpack.c.b16 %v5062, %v5062
        %v5319 = vpack.c.b16 %v5063, %v5063
        %v5320 = vpack.c.b16 %v5064, %v5064
        %v5321 = vpack.c.b16 %v5065, %v5065
        %v5322 = vpack.c.b16 %v5066, %v5066
        %v5323 = vpack.c.b16 %v5067, %v5067
        %v5324 = vpack.c.b16 %v5068, %v5068
        %v5325 = vpack.c.b16 %v5069, %v5069
        %v5326 = vpack.c.b16 %v5070, %v5070
        %v5327 = vpack.c.b16 %v5071, %v5071
        %v5328 = vpack.c.b16 %v5072, %v5072
        %v5329 = vpack.c.b16 %v5073, %v5073
        %v5330 = vpack.c.b16 %v5074, %v5074
        %v5331 = vpack.c.b16 %v5075, %v5075
        %v5332 = vpack.c.b16 %v5076, %v5076
        %v5333 = vpack.c.b16 %v5077, %v5077
        %v5334 = vpack.c.b16 %v5078, %v5078
        %v5335 = vpack.c.b16 %v5079, %v5079
        %v5336 = vpack.c.b16 %v5080, %v5080
        %v5337 = vpack.c.b16 %v5081, %v5081
        %v5338 = vpack.c.b16 %v5082, %v5082
        %v5339 = vpack.c.b16 %v5083, %v5083
        %v5340 = vpack.c.b16 %v5084, %v5084
        %v5341 = vpack.c.b16 %v5085, %v5085
        %v5342 = vpack.c.b16 %v5086, %v5086
        %v5343 = vpack.c.b16 %v5087, %v5087
        %v5344 = vpack.c.b16 %v5088, %v5088
        %v5345 = vpack.c.b16 %v5089, %v5089
        %v5346 = vpack.c.b16 %v5090, %v5090
        %v5347 = vpack.c.b16 %v5091, %v5091
        %v5348 = vpack.c.b16 %v5092, %v5092
        %v5349 = vpack.c.b16 %v5093, %v5093
        %v5350 = vpack.c.b16 %v5094, %v5094
        %v5351 = vpack.c.b16 %v5095, %v5095
        %v5352 = vpack.c.b16 %v5096, %v5096
        %v5353 = vpack.c.b16 %v5097, %v5097
        %v5354 = vpack.c.b16 %v5098, %v5098
        %v5355 = vpack.c.b16 %v5099, %v5099
        %v5356 = vpack.c.b16 %v5100, %v5100
        %v5357 = vpack.c.b16 %v5101, %v5101
        %v5358 = vpack.c.b16 %v5102, %v5102
        %v5359 = vpack.c.b16 %v5103, %v5103
        %v5360 = vpack.c.b16 %v5104, %v5104
        %v5361 = vpack.c.b16 %v5105, %v5105
        %v5362 = vpack.c.b16 %v5106, %v5106
        %v5363 = vpack.c.b16 %v5107, %v5107
        %v5364 = vpack.c.b16 %v5108, %v5108
        %v5365 = vpack.c.b16 %v5109, %v5109
        %v5366 = vpack.c.b16 %v5110, %v5110
        %v5367 = vpack.c.b16 %v5111, %v5111
        %v5368 = vpack.c.b16 %v5112, %v5112
        %v5369 = vpack.c.b16 %v5113, %v5113
        %v5370 = vpack.c.b16 %v5114, %v5114
        %v5371 = vpack.c.b16 %v5115, %v5115
        %v5372 = vpack.c.b16 %v5116, %v5116
        %v5373 = vpack.c.b16 %v5117, %v5117
        %v5374 = vpack.c.b16 %v5118, %v5118
        %v5375 = vpack.c.b16 %v5119, %v5119
        %v5376 = vpack.c.b16 %v5120, %v5120
        %v5377 = vpack.c.b16 %v5121, %v5121
        %v5378 = vpack.c.b16 %v5122, %v5122
        %v5379 = vpack.c.b16 %v5123, %v5123
        %v5380 = vpack.c.b16 %v5124, %v5124
        %v5381 = vpack.c.b16 %v5125, %v5125
        %v5382 = vpack.c.b16 %v5126, %v5126
        %v5383 = vpack.c.b16 %v5127, %v5127
        %v5384 = vpack.c.b16 %v5128, %v5128
        %v5385 = vpack.c.b16 %v5129, %v5129
        %v5386 = vpack.c.b16 %v5130, %v5130
        %v5387 = vpack.c.b16 %v5131, %v5131
        %v5388 = vpack.c.b16 %v5132, %v5132
        %v5389 = vpack.c.b16 %v5133, %v5133
        %v5390 = vpack.c.b16 %v5134, %v5134
        %v5391 = vpack.c.b16 %v5135, %v5135
        %v5392 = vpack.c.b16 %v5136, %v5136
        %v5393 = vpack.c.b16 %v5137, %v5137
        %v5394 = vpack.c.b16 %v5138, %v5138
        %v5395 = vpack.c.b16 %v5139, %v5139
        %v5396 = vpack.c.b16 %v5140, %v5140
        %v5397 = vpack.c.b16 %v5141, %v5141
        %v5398 = vpack.c.b16 %v5142, %v5142
        %v5399 = vpack.c.b16 %v5143, %v5143
        %v5400 = vpack.c.b16 %v5144, %v5144
        %v5401 = vpack.c.b16 %v5145, %v5145
        %v5402 = vpack.c.b16 %v5146, %v5146
        %v5403 = vpack.c.b16 %v5147, %v5147
        %v5404 = vpack.c.b16 %v5148, %v5148
        %v5405 = vpack.c.b16 %v5149, %v5149
        %v5406 = vpack.c.b16 %v5150, %v5150
        %v5407 = vpack.c.b16 %v5151, %v5151
        %v5408 = vpack.c.b16 %v5152, %v5152
        %v5409 = vpack.c.b16 %v5153, %v5153
        %v5410 = vpack.c.b16 %v5154, %v5154
        %v5411 = vpack.c.b16 %v5155, %v5155
        %v5412 = vpack.c.b16 %v5156, %v5156
        %v5413 = vpack.c.b16 %v5157, %v5157
        %v5414 = vpack.c.b16 %v5158, %v5158
        %v5415 = vpack.c.b16 %v5159, %v5159
        %v5416 = vpack.c.b16 %v5160, %v5160
        %v5417 = vpack.c.b16 %v5161, %v5161
        %v5418 = vpack.c.b16 %v5162, %v5162
        %v5419 = vpack.c.b16 %v5163, %v5163
        %v5420 = vpack.c.b16 %v5164, %v5164
        %v5421 = vpack.c.b16 %v5165, %v5165
        %v5422 = vpack.c.b16 %v5166, %v5166
        %v5423 = vpack.c.b16 %v5167, %v5167
        %v5424 = vpack.c.b16 %v5168, %v5168
        %v5425 = vpack.c.b16 %v5169, %v5169
        %v5426 = vpack.c.b16 %v5170, %v5170
        %v5427 = vpack.c.b16 %v5171, %v5171
        %v5428 = vpack.c.b16 %v5172, %v5172
        %v5429 = vpack.c.b16 %v5173, %v5173
        %v5430 = vpack.c.b16 %v5174, %v5174
        %v5431 = vpack.c.b16 %v5175, %v5175
        %v5432 = vpack.c.b16 %v5176, %v5176
        %v5433 = vpack.c.b16 %v5177, %v5177
        %v5434 = vpack.c.b16 %v5178, %v5178
        %v5435 = vpack.c.b16 %v5179, %v5179
        %v5436 = vpack.c.b16 %v5180, %v5180
        %v5437 = vpack.c.b16 %v5181, %v5181
        %v5438 = vpack.c.b16 %v5182, %v5182
        %v5439 = vpack.c.b16 %v5183, %v5183
        %v5440 = vpack.c.b16 %v5184, %v5184
        %v5441 = vpack.c.b16 %v5185, %v5185
        %v5442 = vpack.c.b16 %v5186, %v5186
        %v5443 = vpack.c.b16 %v5187, %v5187
        %v5444 = vpack.c.b16 %v5188, %v5188
        %v5445 = vpack.c.b16 %v5189, %v5189
        %v5446 = vpack.c.b16 %v5190, %v5190
        %v5447 = vpack.c.b16 %v5191, %v5191
        %v5448 = vpack.c.b16 %v5192, %v5192
        %v5449 = vpack.c.b16 %v5193, %v5193
        %v5450 = vpack.c.b16 %v5194, %v5194
        %v5451 = vpack.c.b16 %v5195, %v5195
        %v5452 = vpack.c.b16 %v5196, %v5196
        %v5453 = vpack.c.b16 %v5197, %v5197
        %v5454 = vpack.c.b16 %v5198, %v5198
        %v5455 = vpack.c.b16 %v5199, %v5199
        %v5456 = vpack.c.b16 %v5200, %v5200
        %v5457 = vpack.c.b16 %v5201, %v5201
        %v5458 = vpack.c.b16 %v5202, %v5202
        %v5459 = vpack.c.b16 %v5203, %v5203
        %v5460 = vpack.c.b16 %v5204, %v5204
        %v5461 = vpack.c.b16 %v5205, %v5205
        %v5462 = vpack.c.b16 %v5206, %v5206
        %v5463 = vpack.c.b16 %v5207, %v5207
        %v5464 = vpack.c.b16 %v5208, %v5208
        %v5465 = vpack.c.b16 %v5209, %v5209
        %v5466 = vpack.c.b16 %v5210, %v5210
        %v5467 = vpack.c.b16 %v5211, %v5211
        %v5468 = vpack.c.b16 %v5212, %v5212
        %v5469 = vpack.c.b16 %v5213, %v5213
        %v5470 = vpack.c.b16 %v5214, %v5214
        %v5471 = vpack.c.b16 %v5215, %v5215
        %v5472 = vpack.c.b16 %v5216, %v5216
        %v5473 = vpack.c.b16 %v5217, %v5217
        %v5474 = vpack.c.b16 %v5218, %v5218
        %v5475 = vpack.c.b16 %v5219, %v5219
        %v5476 = vpack.c.b16 %v5220, %v5220
        %v5477 = vpack.c.b16 %v5221, %v5221
        %v5478 = vpack.c.b16 %v5222, %v5222
        %v5479 = vpack.c.b16 %v5223, %v5223
        %v5480 = vpack.c.b16 %v5224, %v5224
        %v5481 = vpack.c.b16 %v5225, %v5225
        %v5482 = vpack.c.b16 %v5226, %v5226
        %v5483 = vpack.c.b16 %v5227, %v5227
        %v5484 = vpack.c.b16 %v5228, %v5228
        %v5485 = vpack.c.b16 %v5229, %v5229
        %v5486 = vpack.c.b16 %v5230, %v5230
        %v5487 = vpack.c.b16 %v5231, %v5231
        %v5488 = vpack.c.b16 %v5232, %v5232
        %v5489 = vpack.c.b16 %v5233, %v5233
        %v5490 = vpack.c.b16 %v5234, %v5234
        %v5491 = vpack.c.b16 %v5235, %v5235
        %v5492 = vpack.c.b16 %v5236, %v5236
        %v5493 = vpack.c.b16 %v5237, %v5237
        %v5494 = vpack.c.b16 %v5238, %v5238
        %v5495 = vpack.c.b16 %v5239, %v5239
        %v5496 = vpack.c.b16 %v5240, %v5240
        %v5497 = vpack.c.b16 %v5241, %v5241
        %v5498 = vpack.c.b16 %v5242, %v5242
        %v5499 = vpack.c.b16 %v5243, %v5243
        %v5500 = vpack.c.b16 %v5244, %v5244
        %v5501 = vpack.c.b16 %v5245, %v5245
        %v5502 = vpack.c.b16 %v5246, %v5246
        %v5503 = vpack.c.b16 %v5247, %v5247
        %v5504 = vpack.c.b16 %v5248, %v5248
        %v5505 = vpack.c.b16 %v5249, %v5249
        %v5506 = vpack.c.b16 %v5250, %v5250
        %v5507 = vpack.c.b16 %v5251, %v5251
        %v5508 = vpack.c.b16 %v5252, %v5252
        %v5509 = vpack.c.b16 %v5253, %v5253
        %v5510 = vpack.c.b16 %v5254, %v5254
        %v5511 = vpack.c.b16 %v5255, %v5255
        %v5512 = vpack.c.b16 %v5256, %v5256
        %v5513 = vpack.c.b16 %v5257, %v5257
        %v5514 = vpack.c.b16 %v5258, %v5258
        %v5515 = vpack.c.b16 %v5259, %v5259
        %v5516 = vpack.c.b16 %v5260, %v5260
        %5773 = vst [vmem:[%s243] sm:$0xf] %v5261
        %5774 = vst [vmem:[%s243 + $0x4] sm:$0xf] %v5262
        %5775 = vst [vmem:[%s243 + $0x8] sm:$0xf] %v5263
        %5776 = vst [vmem:[%s243 + $0xc] sm:$0xf] %v5264
        %5777 = vst [vmem:[%s243 + $0x10] sm:$0xf] %v5265
        %5778 = vst [vmem:[%s243 + $0x14] sm:$0xf] %v5266
        %5779 = vst [vmem:[%s243 + $0x18] sm:$0xf] %v5267
        %5780 = vst [vmem:[%s243 + $0x1c] sm:$0xf] %v5268
        %5781 = vst [vmem:[%s243 + $0x20] sm:$0xf] %v5269
        %5782 = vst [vmem:[%s243 + $0x24] sm:$0xf] %v5270
        %5783 = vst [vmem:[%s243 + $0x28] sm:$0xf] %v5271
        %5784 = vst [vmem:[%s243 + $0x2c] sm:$0xf] %v5272
        %5785 = vst [vmem:[%s243 + $0x30] sm:$0xf] %v5273
        %5786 = vst [vmem:[%s243 + $0x34] sm:$0xf] %v5274
        %5787 = vst [vmem:[%s243 + $0x38] sm:$0xf] %v5275
        %5788 = vst [vmem:[%s243 + $0x3c] sm:$0xf] %v5276
        %5789 = vst [vmem:[%s243 + $0x40] sm:$0xf] %v5277
        %5790 = vst [vmem:[%s243 + $0x44] sm:$0xf] %v5278
        %5791 = vst [vmem:[%s243 + $0x48] sm:$0xf] %v5279
        %5792 = vst [vmem:[%s243 + $0x4c] sm:$0xf] %v5280
        %5793 = vst [vmem:[%s243 + $0x50] sm:$0xf] %v5281
        %5794 = vst [vmem:[%s243 + $0x54] sm:$0xf] %v5282
        %5795 = vst [vmem:[%s243 + $0x58] sm:$0xf] %v5283
        %5796 = vst [vmem:[%s243 + $0x5c] sm:$0xf] %v5284
        %5797 = vst [vmem:[%s243 + $0x60] sm:$0xf] %v5285
        %5798 = vst [vmem:[%s243 + $0x64] sm:$0xf] %v5286
        %5799 = vst [vmem:[%s243 + $0x68] sm:$0xf] %v5287
        %5800 = vst [vmem:[%s243 + $0x6c] sm:$0xf] %v5288
        %5801 = vst [vmem:[%s243 + $0x70] sm:$0xf] %v5289
        %5802 = vst [vmem:[%s243 + $0x74] sm:$0xf] %v5290
        %5803 = vst [vmem:[%s243 + $0x78] sm:$0xf] %v5291
        %5804 = vst [vmem:[%s243 + $0x7c] sm:$0xf] %v5292
        %5805 = vst [vmem:[%s243 + $0x80] sm:$0xf] %v5293
        %5806 = vst [vmem:[%s243 + $0x84] sm:$0xf] %v5294
        %5807 = vst [vmem:[%s243 + $0x88] sm:$0xf] %v5295
        %5808 = vst [vmem:[%s243 + $0x8c] sm:$0xf] %v5296
        %5809 = vst [vmem:[%s243 + $0x90] sm:$0xf] %v5297
        %5810 = vst [vmem:[%s243 + $0x94] sm:$0xf] %v5298
        %5811 = vst [vmem:[%s243 + $0x98] sm:$0xf] %v5299
        %5812 = vst [vmem:[%s243 + $0x9c] sm:$0xf] %v5300
        %5813 = vst [vmem:[%s243 + $0xa0] sm:$0xf] %v5301
        %5814 = vst [vmem:[%s243 + $0xa4] sm:$0xf] %v5302
        %5815 = vst [vmem:[%s243 + $0xa8] sm:$0xf] %v5303
        %5816 = vst [vmem:[%s243 + $0xac] sm:$0xf] %v5304
        %5817 = vst [vmem:[%s243 + $0xb0] sm:$0xf] %v5305
        %5818 = vst [vmem:[%s243 + $0xb4] sm:$0xf] %v5306
        %5819 = vst [vmem:[%s243 + $0xb8] sm:$0xf] %v5307
        %5820 = vst [vmem:[%s243 + $0xbc] sm:$0xf] %v5308
        %5821 = vst [vmem:[%s243 + $0xc0] sm:$0xf] %v5309
        %5822 = vst [vmem:[%s243 + $0xc4] sm:$0xf] %v5310
        %5823 = vst [vmem:[%s243 + $0xc8] sm:$0xf] %v5311
        %5824 = vst [vmem:[%s243 + $0xcc] sm:$0xf] %v5312
        %5825 = vst [vmem:[%s243 + $0xd0] sm:$0xf] %v5313
        %5826 = vst [vmem:[%s243 + $0xd4] sm:$0xf] %v5314
        %5827 = vst [vmem:[%s243 + $0xd8] sm:$0xf] %v5315
        %5828 = vst [vmem:[%s243 + $0xdc] sm:$0xf] %v5316
        %5829 = vst [vmem:[%s243 + $0xe0] sm:$0xf] %v5317
        %5830 = vst [vmem:[%s243 + $0xe4] sm:$0xf] %v5318
        %5831 = vst [vmem:[%s243 + $0xe8] sm:$0xf] %v5319
        %5832 = vst [vmem:[%s243 + $0xec] sm:$0xf] %v5320
        %5833 = vst [vmem:[%s243 + $0xf0] sm:$0xf] %v5321
        %5834 = vst [vmem:[%s243 + $0xf4] sm:$0xf] %v5322
        %5835 = vst [vmem:[%s243 + $0xf8] sm:$0xf] %v5323
        %5836 = vst [vmem:[%s243 + $0xfc] sm:$0xf] %v5324
        %5837 = vst [vmem:[%s243 + $0x100] sm:$0xf] %v5325
        %5838 = vst [vmem:[%s243 + $0x104] sm:$0xf] %v5326
        %5839 = vst [vmem:[%s243 + $0x108] sm:$0xf] %v5327
        %5840 = vst [vmem:[%s243 + $0x10c] sm:$0xf] %v5328
        %5841 = vst [vmem:[%s243 + $0x110] sm:$0xf] %v5329
        %5842 = vst [vmem:[%s243 + $0x114] sm:$0xf] %v5330
        %5843 = vst [vmem:[%s243 + $0x118] sm:$0xf] %v5331
        %5844 = vst [vmem:[%s243 + $0x11c] sm:$0xf] %v5332
        %5845 = vst [vmem:[%s243 + $0x120] sm:$0xf] %v5333
        %5846 = vst [vmem:[%s243 + $0x124] sm:$0xf] %v5334
        %5847 = vst [vmem:[%s243 + $0x128] sm:$0xf] %v5335
        %5848 = vst [vmem:[%s243 + $0x12c] sm:$0xf] %v5336
        %5849 = vst [vmem:[%s243 + $0x130] sm:$0xf] %v5337
        %5850 = vst [vmem:[%s243 + $0x134] sm:$0xf] %v5338
        %5851 = vst [vmem:[%s243 + $0x138] sm:$0xf] %v5339
        %5852 = vst [vmem:[%s243 + $0x13c] sm:$0xf] %v5340
        %5853 = vst [vmem:[%s243 + $0x140] sm:$0xf] %v5341
        %5854 = vst [vmem:[%s243 + $0x144] sm:$0xf] %v5342
        %5855 = vst [vmem:[%s243 + $0x148] sm:$0xf] %v5343
        %5856 = vst [vmem:[%s243 + $0x14c] sm:$0xf] %v5344
        %5857 = vst [vmem:[%s243 + $0x150] sm:$0xf] %v5345
        %5858 = vst [vmem:[%s243 + $0x154] sm:$0xf] %v5346
        %5859 = vst [vmem:[%s243 + $0x158] sm:$0xf] %v5347
        %5860 = vst [vmem:[%s243 + $0x15c] sm:$0xf] %v5348
        %5861 = vst [vmem:[%s243 + $0x160] sm:$0xf] %v5349
        %5862 = vst [vmem:[%s243 + $0x164] sm:$0xf] %v5350
        %5863 = vst [vmem:[%s243 + $0x168] sm:$0xf] %v5351
        %5864 = vst [vmem:[%s243 + $0x16c] sm:$0xf] %v5352
        %5865 = vst [vmem:[%s243 + $0x170] sm:$0xf] %v5353
        %5866 = vst [vmem:[%s243 + $0x174] sm:$0xf] %v5354
        %5867 = vst [vmem:[%s243 + $0x178] sm:$0xf] %v5355
        %5868 = vst [vmem:[%s243 + $0x17c] sm:$0xf] %v5356
        %5869 = vst [vmem:[%s243 + $0x180] sm:$0xf] %v5357
        %5870 = vst [vmem:[%s243 + $0x184] sm:$0xf] %v5358
        %5871 = vst [vmem:[%s243 + $0x188] sm:$0xf] %v5359
        %5872 = vst [vmem:[%s243 + $0x18c] sm:$0xf] %v5360
        %5873 = vst [vmem:[%s243 + $0x190] sm:$0xf] %v5361
        %5874 = vst [vmem:[%s243 + $0x194] sm:$0xf] %v5362
        %5875 = vst [vmem:[%s243 + $0x198] sm:$0xf] %v5363
        %5876 = vst [vmem:[%s243 + $0x19c] sm:$0xf] %v5364
        %5877 = vst [vmem:[%s243 + $0x1a0] sm:$0xf] %v5365
        %5878 = vst [vmem:[%s243 + $0x1a4] sm:$0xf] %v5366
        %5879 = vst [vmem:[%s243 + $0x1a8] sm:$0xf] %v5367
        %5880 = vst [vmem:[%s243 + $0x1ac] sm:$0xf] %v5368
        %5881 = vst [vmem:[%s243 + $0x1b0] sm:$0xf] %v5369
        %5882 = vst [vmem:[%s243 + $0x1b4] sm:$0xf] %v5370
        %5883 = vst [vmem:[%s243 + $0x1b8] sm:$0xf] %v5371
        %5884 = vst [vmem:[%s243 + $0x1bc] sm:$0xf] %v5372
        %5885 = vst [vmem:[%s243 + $0x1c0] sm:$0xf] %v5373
        %5886 = vst [vmem:[%s243 + $0x1c4] sm:$0xf] %v5374
        %5887 = vst [vmem:[%s243 + $0x1c8] sm:$0xf] %v5375
        %5888 = vst [vmem:[%s243 + $0x1cc] sm:$0xf] %v5376
        %5889 = vst [vmem:[%s243 + $0x1d0] sm:$0xf] %v5377
        %5890 = vst [vmem:[%s243 + $0x1d4] sm:$0xf] %v5378
        %5891 = vst [vmem:[%s243 + $0x1d8] sm:$0xf] %v5379
        %5892 = vst [vmem:[%s243 + $0x1dc] sm:$0xf] %v5380
        %5893 = vst [vmem:[%s243 + $0x1e0] sm:$0xf] %v5381
        %5894 = vst [vmem:[%s243 + $0x1e4] sm:$0xf] %v5382
        %5895 = vst [vmem:[%s243 + $0x1e8] sm:$0xf] %v5383
        %5896 = vst [vmem:[%s243 + $0x1ec] sm:$0xf] %v5384
        %5897 = vst [vmem:[%s243 + $0x1f0] sm:$0xf] %v5385
        %5898 = vst [vmem:[%s243 + $0x1f4] sm:$0xf] %v5386
        %5899 = vst [vmem:[%s243 + $0x1f8] sm:$0xf] %v5387
        %5900 = vst [vmem:[%s243 + $0x1fc] sm:$0xf] %v5388
        %5901 = vst [vmem:[%s243 + $0x200] sm:$0xf] %v5389
        %5902 = vst [vmem:[%s243 + $0x204] sm:$0xf] %v5390
        %5903 = vst [vmem:[%s243 + $0x208] sm:$0xf] %v5391
        %5904 = vst [vmem:[%s243 + $0x20c] sm:$0xf] %v5392
        %5905 = vst [vmem:[%s243 + $0x210] sm:$0xf] %v5393
        %5906 = vst [vmem:[%s243 + $0x214] sm:$0xf] %v5394
        %5907 = vst [vmem:[%s243 + $0x218] sm:$0xf] %v5395
        %5908 = vst [vmem:[%s243 + $0x21c] sm:$0xf] %v5396
        %5909 = vst [vmem:[%s243 + $0x220] sm:$0xf] %v5397
        %5910 = vst [vmem:[%s243 + $0x224] sm:$0xf] %v5398
        %5911 = vst [vmem:[%s243 + $0x228] sm:$0xf] %v5399
        %5912 = vst [vmem:[%s243 + $0x22c] sm:$0xf] %v5400
        %5913 = vst [vmem:[%s243 + $0x230] sm:$0xf] %v5401
        %5914 = vst [vmem:[%s243 + $0x234] sm:$0xf] %v5402
        %5915 = vst [vmem:[%s243 + $0x238] sm:$0xf] %v5403
        %5916 = vst [vmem:[%s243 + $0x23c] sm:$0xf] %v5404
        %5917 = vst [vmem:[%s243 + $0x240] sm:$0xf] %v5405
        %5918 = vst [vmem:[%s243 + $0x244] sm:$0xf] %v5406
        %5919 = vst [vmem:[%s243 + $0x248] sm:$0xf] %v5407
        %5920 = vst [vmem:[%s243 + $0x24c] sm:$0xf] %v5408
        %5921 = vst [vmem:[%s243 + $0x250] sm:$0xf] %v5409
        %5922 = vst [vmem:[%s243 + $0x254] sm:$0xf] %v5410
        %5923 = vst [vmem:[%s243 + $0x258] sm:$0xf] %v5411
        %5924 = vst [vmem:[%s243 + $0x25c] sm:$0xf] %v5412
        %5925 = vst [vmem:[%s243 + $0x260] sm:$0xf] %v5413
        %5926 = vst [vmem:[%s243 + $0x264] sm:$0xf] %v5414
        %5927 = vst [vmem:[%s243 + $0x268] sm:$0xf] %v5415
        %5928 = vst [vmem:[%s243 + $0x26c] sm:$0xf] %v5416
        %5929 = vst [vmem:[%s243 + $0x270] sm:$0xf] %v5417
        %5930 = vst [vmem:[%s243 + $0x274] sm:$0xf] %v5418
        %5931 = vst [vmem:[%s243 + $0x278] sm:$0xf] %v5419
        %5932 = vst [vmem:[%s243 + $0x27c] sm:$0xf] %v5420
        %5933 = vst [vmem:[%s243 + $0x280] sm:$0xf] %v5421
        %5934 = vst [vmem:[%s243 + $0x284] sm:$0xf] %v5422
        %5935 = vst [vmem:[%s243 + $0x288] sm:$0xf] %v5423
        %5936 = vst [vmem:[%s243 + $0x28c] sm:$0xf] %v5424
        %5937 = vst [vmem:[%s243 + $0x290] sm:$0xf] %v5425
        %5938 = vst [vmem:[%s243 + $0x294] sm:$0xf] %v5426
        %5939 = vst [vmem:[%s243 + $0x298] sm:$0xf] %v5427
        %5940 = vst [vmem:[%s243 + $0x29c] sm:$0xf] %v5428
        %5941 = vst [vmem:[%s243 + $0x2a0] sm:$0xf] %v5429
        %5942 = vst [vmem:[%s243 + $0x2a4] sm:$0xf] %v5430
        %5943 = vst [vmem:[%s243 + $0x2a8] sm:$0xf] %v5431
        %5944 = vst [vmem:[%s243 + $0x2ac] sm:$0xf] %v5432
        %5945 = vst [vmem:[%s243 + $0x2b0] sm:$0xf] %v5433
        %5946 = vst [vmem:[%s243 + $0x2b4] sm:$0xf] %v5434
        %5947 = vst [vmem:[%s243 + $0x2b8] sm:$0xf] %v5435
        %5948 = vst [vmem:[%s243 + $0x2bc] sm:$0xf] %v5436
        %5949 = vst [vmem:[%s243 + $0x2c0] sm:$0xf] %v5437
        %5950 = vst [vmem:[%s243 + $0x2c4] sm:$0xf] %v5438
        %5951 = vst [vmem:[%s243 + $0x2c8] sm:$0xf] %v5439
        %5952 = vst [vmem:[%s243 + $0x2cc] sm:$0xf] %v5440
        %5953 = vst [vmem:[%s243 + $0x2d0] sm:$0xf] %v5441
        %5954 = vst [vmem:[%s243 + $0x2d4] sm:$0xf] %v5442
        %5955 = vst [vmem:[%s243 + $0x2d8] sm:$0xf] %v5443
        %5956 = vst [vmem:[%s243 + $0x2dc] sm:$0xf] %v5444
        %5957 = vst [vmem:[%s243 + $0x2e0] sm:$0xf] %v5445
        %5958 = vst [vmem:[%s243 + $0x2e4] sm:$0xf] %v5446
        %5959 = vst [vmem:[%s243 + $0x2e8] sm:$0xf] %v5447
        %5960 = vst [vmem:[%s243 + $0x2ec] sm:$0xf] %v5448
        %5961 = vst [vmem:[%s243 + $0x2f0] sm:$0xf] %v5449
        %5962 = vst [vmem:[%s243 + $0x2f4] sm:$0xf] %v5450
        %5963 = vst [vmem:[%s243 + $0x2f8] sm:$0xf] %v5451
        %5964 = vst [vmem:[%s243 + $0x2fc] sm:$0xf] %v5452
        %5965 = vst [vmem:[%s243 + $0x300] sm:$0xf] %v5453
        %5966 = vst [vmem:[%s243 + $0x304] sm:$0xf] %v5454
        %5967 = vst [vmem:[%s243 + $0x308] sm:$0xf] %v5455
        %5968 = vst [vmem:[%s243 + $0x30c] sm:$0xf] %v5456
        %5969 = vst [vmem:[%s243 + $0x310] sm:$0xf] %v5457
        %5970 = vst [vmem:[%s243 + $0x314] sm:$0xf] %v5458
        %5971 = vst [vmem:[%s243 + $0x318] sm:$0xf] %v5459
        %5972 = vst [vmem:[%s243 + $0x31c] sm:$0xf] %v5460
        %5973 = vst [vmem:[%s243 + $0x320] sm:$0xf] %v5461
        %5974 = vst [vmem:[%s243 + $0x324] sm:$0xf] %v5462
        %5975 = vst [vmem:[%s243 + $0x328] sm:$0xf] %v5463
        %5976 = vst [vmem:[%s243 + $0x32c] sm:$0xf] %v5464
        %5977 = vst [vmem:[%s243 + $0x330] sm:$0xf] %v5465
        %5978 = vst [vmem:[%s243 + $0x334] sm:$0xf] %v5466
        %5979 = vst [vmem:[%s243 + $0x338] sm:$0xf] %v5467
        %5980 = vst [vmem:[%s243 + $0x33c] sm:$0xf] %v5468
        %5981 = vst [vmem:[%s243 + $0x340] sm:$0xf] %v5469
        %5982 = vst [vmem:[%s243 + $0x344] sm:$0xf] %v5470
        %5983 = vst [vmem:[%s243 + $0x348] sm:$0xf] %v5471
        %5984 = vst [vmem:[%s243 + $0x34c] sm:$0xf] %v5472
        %5985 = vst [vmem:[%s243 + $0x350] sm:$0xf] %v5473
        %5986 = vst [vmem:[%s243 + $0x354] sm:$0xf] %v5474
        %5987 = vst [vmem:[%s243 + $0x358] sm:$0xf] %v5475
        %5988 = vst [vmem:[%s243 + $0x35c] sm:$0xf] %v5476
        %5989 = vst [vmem:[%s243 + $0x360] sm:$0xf] %v5477
        %5990 = vst [vmem:[%s243 + $0x364] sm:$0xf] %v5478
        %5991 = vst [vmem:[%s243 + $0x368] sm:$0xf] %v5479
        %5992 = vst [vmem:[%s243 + $0x36c] sm:$0xf] %v5480
        %5993 = vst [vmem:[%s243 + $0x370] sm:$0xf] %v5481
        %5994 = vst [vmem:[%s243 + $0x374] sm:$0xf] %v5482
        %5995 = vst [vmem:[%s243 + $0x378] sm:$0xf] %v5483
        %5996 = vst [vmem:[%s243 + $0x37c] sm:$0xf] %v5484
        %5997 = vst [vmem:[%s243 + $0x380] sm:$0xf] %v5485
        %5998 = vst [vmem:[%s243 + $0x384] sm:$0xf] %v5486
        %5999 = vst [vmem:[%s243 + $0x388] sm:$0xf] %v5487
        %6000 = vst [vmem:[%s243 + $0x38c] sm:$0xf] %v5488
        %6001 = vst [vmem:[%s243 + $0x390] sm:$0xf] %v5489
        %6002 = vst [vmem:[%s243 + $0x394] sm:$0xf] %v5490
        %6003 = vst [vmem:[%s243 + $0x398] sm:$0xf] %v5491
        %6004 = vst [vmem:[%s243 + $0x39c] sm:$0xf] %v5492
        %6005 = vst [vmem:[%s243 + $0x3a0] sm:$0xf] %v5493
        %6006 = vst [vmem:[%s243 + $0x3a4] sm:$0xf] %v5494
        %6007 = vst [vmem:[%s243 + $0x3a8] sm:$0xf] %v5495
        %6008 = vst [vmem:[%s243 + $0x3ac] sm:$0xf] %v5496
        %6009 = vst [vmem:[%s243 + $0x3b0] sm:$0xf] %v5497
        %6010 = vst [vmem:[%s243 + $0x3b4] sm:$0xf] %v5498
        %6011 = vst [vmem:[%s243 + $0x3b8] sm:$0xf] %v5499
        %6012 = vst [vmem:[%s243 + $0x3bc] sm:$0xf] %v5500
        %6013 = vst [vmem:[%s243 + $0x3c0] sm:$0xf] %v5501
        %6014 = vst [vmem:[%s243 + $0x3c4] sm:$0xf] %v5502
        %6015 = vst [vmem:[%s243 + $0x3c8] sm:$0xf] %v5503
        %6016 = vst [vmem:[%s243 + $0x3cc] sm:$0xf] %v5504
        %6017 = vst [vmem:[%s243 + $0x3d0] sm:$0xf] %v5505
        %6018 = vst [vmem:[%s243 + $0x3d4] sm:$0xf] %v5506
        %6019 = vst [vmem:[%s243 + $0x3d8] sm:$0xf] %v5507
        %6020 = vst [vmem:[%s243 + $0x3dc] sm:$0xf] %v5508
        %6021 = vst [vmem:[%s243 + $0x3e0] sm:$0xf] %v5509
        %6022 = vst [vmem:[%s243 + $0x3e4] sm:$0xf] %v5510
        %6023 = vst [vmem:[%s243 + $0x3e8] sm:$0xf] %v5511
        %6024 = vst [vmem:[%s243 + $0x3ec] sm:$0xf] %v5512
        %6025 = vst [vmem:[%s243 + $0x3f0] sm:$0xf] %v5513
        %6026 = vst [vmem:[%s243 + $0x3f4] sm:$0xf] %v5514
        %6027 = vst [vmem:[%s243 + $0x3f8] sm:$0xf] %v5515
        %6028 = vst [vmem:[%s243 + $0x3fc] sm:$0xf] %v5516
        %s6029 = sand.u32 %s140, 1
        %s6030 = scalar_lea.sflag [#allocation4], %s6029
        %s6031 = sand.u32 %s140, 1
        %s6032 = smul.addr %s6031, 1024
        %s6033 = scalar_lea.vmem [#allocation5], %s6032
        // Predicated region
        $region45: #{tpu_custom_call.1} parent=39 // pred_check
          %p6034 = pneg %p150
        $region46: #{tpu_custom_call.1} parent=39 // pred_check_branch
          %6036 = sbr.rel (%p6034) target = $region48
        $region47: #{tpu_custom_call.1} parent=39 // pred_region
          %s6037 = smul.u32 4, %s22
          %s6039 = ssub.s32 16384, 16384
          %6040 = vsyncadd %s6030, %s6039
          %s6041 = smul.addr %s6037, 64
          %s6042 = smul.addr %s6041, 64
          %s6043 = scalar_lea.hbm %s5, %s6042
          %s6044 = sshll.u32 %s6033, 4
          %s6045 = int_to_ptr.vmem [resolvable:$true] %s6044
          %6050 = dma.vmem_to_hbm [thread:$0]  %s6045, 16384, %s6043, %s6030, 64, 64, 4
        $region48: #{tpu_custom_call.1} parent=39 // pred_fallthru
          _
      $region40: #{tpu_custom_call.1} parent=5 // pred_fallthru
        _
      %p6051 = scmp.le.s32.totalorder 2, %s17
      // Predicated region
      $region49: #{tpu_custom_call.1} parent=5 // pred_check
        %p6052 = pneg %p6051
      $region50: #{tpu_custom_call.1} parent=5 // pred_check_branch
        %6054 = sbr.rel (%p6052) target = $region52
      $region51: #{tpu_custom_call.1} parent=5 // pred_region
        %s6055 = ssub.s32 %s17, 2
        // Predicated region
        $region53: #{tpu_custom_call.1} parent=51 // pred_check
          %p6056 = pneg %p156
        $region54: #{tpu_custom_call.1} parent=51 // pred_check_branch
          %6058 = sbr.rel (%p6056) target = $region56
        $region55: #{tpu_custom_call.1} parent=51 // pred_region
          %s6059 = sand.u32 %s141, 1
          %s6060 = scalar_lea.sflag [#allocation4], %s6059
          %s6061 = sand.u32 %s141, 1
          %s6062 = smul.addr %s6061, 1024
          %s6063 = scalar_lea.vmem [#allocation5], %s6062
          %6064 = dma.done %s6060, 16384
        $region56: #{tpu_custom_call.1} parent=51 // pred_fallthru
          _
      $region52: #{tpu_custom_call.1} parent=5 // pred_fallthru
        _
    $region6: #{tpu_custom_call.1} parent=1 // loop_footer
      %s21 = sadd.s32 1, %s17
    $region7: #{tpu_custom_call.1} parent=1 // loop_footer_branch
      %16 = sbr.rel target = $region3
    $region8: #{tpu_custom_call.1} parent=1 // loop_exit
      _
    %6065 = vsyncpa [#allocation3], 1
    %s6066 = scalar_lea.sflag [#allocation3], 1
    %6067 = vsyncpa %s6066, 1
    %6068 = vsyncpa [#allocation4], 1
    %s6069 = scalar_lea.sflag [#allocation4], 1
    %6070 = vsyncpa %s6069, 1

</llo_original>
